<compile_context>
chip_gen: v7x
topology: tpu7x:2x2x1
jax: 0.10.0
libtpu: 0.0.40
codegen_flags: <defaults>
</compile_context>

<pallas_src>
import jax
import jax.numpy as jnp
from jax.experimental import pallas as pl
from jax.experimental.pallas import tpu as pltpu


def channel_att_kernel(xp_ref, w9_ref, b1_ref, w2_ref, b2_ref,
                       feat_ref, att_ref):
    # xp_ref : [1, Cin, H+2, W+2]   halo-padded input image for this batch idx
    # w9_ref : [9, Cout, Cin]       3x3 taps, BN1 scale pre-folded (f32)
    # b1_ref : [Cout, 1, 1]         BN1 shift
    # w2_ref : [Cout, Cout]         1x1 weight, BN2 scale and 1/(H*W) pre-folded
    # b2_ref : [Cout, 1]            BN2 shift
    # feat_ref: [1, Cout, H, W]     ReLU6(BN1(conv3x3(x)))
    # att_ref : [1, Cout, 1]        sigmoid(BN2(conv1x1(mean_hw(feat))))
    h = feat_ref.shape[2]
    w = feat_ref.shape[3]
    cout = feat_ref.shape[1]

    # ---- 3x3 conv (stride 1, pad 1, bias-free), f32 accumulation -----------
    acc = jnp.zeros((cout, h, w), jnp.float32)
    for kh in range(3):                              # statically unrolled (9 taps)
        for kw in range(3):
            # shifted [Cin, H, W] window of the halo-padded image
            xs = xp_ref[0, :, kh:kh + h, kw:kw + w].astype(jnp.float32)
            wt = w9_ref[kh * 3 + kw]                 # [Cout, Cin] f32
            # tiny channel contraction on the VPU; (H, W) stay on the
            # sublane/lane axes.
            acc = acc + jnp.sum(wt[:, :, None, None] * xs[None, :, :, :],
                                axis=1)

    # ---- BN1 shift + ReLU6 --------------------------------------------------
    feat = jnp.clip(acc + b1_ref[...], 0.0, 6.0)     # [Cout, H, W] f32
    feat_ref[0] = feat.astype(feat_ref.dtype)

    # ---- fused channel-attention head (fre=False) ---------------------------
    # per-channel spatial sum; 1/(H*W) and the BN2 scale live inside w2.
    s = jnp.sum(jnp.sum(feat, axis=2), axis=1, keepdims=True)        # [Cout, 1]
    a = jnp.sum(w2_ref[...][:, :, None] * s[None, :, :], axis=1)     # [Cout, 1]
    a = a + b2_ref[...]
    att_ref[0] = (1.0 / (1.0 + jnp.exp(-a))).astype(att_ref.dtype)


def channel_att_pallas(x, w3, scale1, shift1, w1x1, scale2, shift2):
    """Inference-mode ChannelAtt.forward(x, fre=False).

    x:      [B, Cin, H, W]  NCHW (consumed natively, no layout transposes)
    w3:     [Cout, Cin, 3, 3]  conv_bn_relu Conv2d weight (bias-free)
    scale1, shift1: [Cout]     folded BN1 (gamma/sqrt(var+eps), beta-mean*scale)
    w1x1:   [Cout, Cout]       conv_1x1 Conv2d weight (bias-free)
    scale2, shift2: [Cout]     folded BN2
    returns (feat [B, Cout, H, W], atten [B, Cout, 1, 1])
    """
    B, Cin, H, W = x.shape
    Cout = w3.shape[0]
    f32 = jnp.float32

    # Fold BN1 scale into the 3x3 weights; lay taps out as [9, Cout, Cin].
    w_eff = w3.astype(f32) * scale1.astype(f32)[:, None, None, None]
    w9 = jnp.transpose(w_eff, (2, 3, 0, 1)).reshape(9, Cout, Cin)
    b1 = shift1.astype(f32).reshape(Cout, 1, 1)
    # Fold BN2 scale and the 1/(H*W) mean factor into the 1x1 weight.
    w2 = w1x1.astype(f32) * scale2.astype(f32)[:, None] / float(H * W)
    b2 = shift2.astype(f32).reshape(Cout, 1)

    # Halo pad x once (+1 row/col each side).  The only extra HBM pass, and it
    # only touches x.
    xp = jnp.pad(x, ((0, 0), (0, 0), (1, 1), (1, 1)))
    Hp, Wp = H + 2, W + 2

    flops = (2 * B * H * W * Cin * Cout * 9      # 3x3 conv
             + 2 * B * Cout * Cout               # 1x1 conv on the means
             + 6 * B * Cout * H * W)             # bias / clip / reductions
    bytes_accessed = 4 * (B * Cin * Hp * Wp + B * Cout * H * W + B * Cout
                          + 9 * Cout * Cin + 2 * Cout * Cout + 4 * Cout)

    feat, att = pl.pallas_call(
        channel_att_kernel,
        out_shape=(
            jax.ShapeDtypeStruct((B, Cout, H, W), x.dtype),
            jax.ShapeDtypeStruct((B, Cout, 1), jnp.float32),
        ),
        grid_spec=pltpu.PrefetchScalarGridSpec(
            num_scalar_prefetch=0,
            # One full image per grid step; >= 2 parallel steps lets both v7x
            # TensorCores work.  For very large H*W, tile H as an extra grid
            # axis with a +2 halo.
            grid=(B,),
            in_specs=[
                pl.BlockSpec((1, Cin, Hp, Wp), lambda b: (b, 0, 0, 0)),
                # Grid-invariant params (< 2 KB total): default
                # double-buffering is immaterial.
                pl.BlockSpec((9, Cout, Cin), lambda b: (0, 0, 0)),
                pl.BlockSpec((Cout, 1, 1), lambda b: (0, 0, 0)),
                pl.BlockSpec((Cout, Cout), lambda b: (0, 0)),
                pl.BlockSpec((Cout, 1), lambda b: (0, 0)),
            ],
            out_specs=[
                pl.BlockSpec((1, Cout, H, W), lambda b: (b, 0, 0, 0)),
                pl.BlockSpec((1, Cout, 1), lambda b: (b, 0, 0)),
            ],
        ),
        compiler_params=pltpu.CompilerParams(
            dimension_semantics=("parallel",),
        ),
        cost_estimate=pl.CostEstimate(
            flops=flops,
            transcendentals=B * Cout,
            bytes_accessed=bytes_accessed),
    )(xp, w9, b1, w2, b2)

    return feat, att.reshape(B, Cout, 1, 1)


def fold_bn(gamma, beta, mean, var, eps=1e-5):
    scale = gamma / jnp.sqrt(var + eps)
    shift = beta - mean * scale
    return scale, shift


def channel_att_reference(x, w3, scale1, shift1, w1x1, scale2, shift2):
    """Pure-JAX reference of the PyTorch forward (fre=False, eval-mode BN)."""
    hi = jax.lax.Precision.HIGHEST
    feat = jax.lax.conv_general_dilated(
        x.astype(jnp.float32), w3.astype(jnp.float32),
        window_strides=(1, 1), padding=((1, 1), (1, 1)),
        dimension_numbers=("NCHW", "OIHW", "NCHW"), precision=hi)
    feat = feat * scale1[None, :, None, None] + shift1[None, :, None, None]
    feat = jnp.clip(feat, 0.0, 6.0)
    atten = jnp.mean(feat, axis=(2, 3), keepdims=True)                # [B,C,1,1]
    atten = jnp.einsum("oc,bcij->boij", w1x1, atten, precision=hi)    # 1x1 conv
    atten = atten * scale2[None, :, None, None] + shift2[None, :, None, None]
    return feat.astype(x.dtype), jax.nn.sigmoid(atten)


if __name__ == "__main__":
    key = jax.random.PRNGKey(0)
    ks = jax.random.split(key, 11)

    B, Cin, Cout, H, W = 2, 4, 8, 16, 16   # ChannelAtt(in_channels=4, out_channels=8)

    x = jax.random.normal(ks[0], (B, Cin, H, W), dtype=jnp.float32)
    w3 = 0.1 * jax.random.normal(ks[1], (Cout, Cin, 3, 3), dtype=jnp.float32)
    w1x1 = 0.1 * jax.random.normal(ks[2], (Cout, Cout), dtype=jnp.float32)

    gamma1 = 1.0 + 0.1 * jax.random.normal(ks[3], (Cout,), dtype=jnp.float32)
    beta1 = 0.1 * jax.random.normal(ks[4], (Cout,), dtype=jnp.float32)
    mean1 = 0.1 * jax.random.normal(ks[5], (Cout,), dtype=jnp.float32)
    var1 = 1.0 + 0.1 * jax.random.uniform(ks[6], (Cout,), dtype=jnp.float32)

    gamma2 = 1.0 + 0.1 * jax.random.normal(ks[7], (Cout,), dtype=jnp.float32)
    beta2 = 0.1 * jax.random.normal(ks[8], (Cout,), dtype=jnp.float32)
    mean2 = 0.1 * jax.random.normal(ks[9], (Cout,), dtype=jnp.float32)
    var2 = 1.0 + 0.1 * jax.random.uniform(ks[10], (Cout,), dtype=jnp.float32)

    scale1, shift1 = fold_bn(gamma1, beta1, mean1, var1)
    scale2, shift2 = fold_bn(gamma2, beta2, mean2, var2)

    feat, atten = channel_att_pallas(x, w3, scale1, shift1, w1x1, scale2, shift2)
    feat = jax.block_until_ready(feat)
    atten = jax.block_until_ready(atten)

    feat_ref, atten_ref = channel_att_reference(
        x, w3, scale1, shift1, w1x1, scale2, shift2)

    assert feat.shape == (B, Cout, H, W)
    assert atten.shape == (B, Cout, 1, 1)
    assert jnp.allclose(feat, feat_ref, atol=1e-4, rtol=1e-4)
    assert jnp.allclose(atten, atten_ref, atol=1e-4, rtol=1e-4)

    print("KERNEL_OK")
</pallas_src>

<mosaic_0001>
module attributes {stable_mosaic.version = 11 : i64} {
  func.func @channel_att_kernel(%arg0: i32, %arg1: memref<1x4x18x18xf32, #tpu.memory_space<vmem>>, %arg2: memref<9x8x4xf32, #tpu.memory_space<vmem>>, %arg3: memref<8x1x1xf32, #tpu.memory_space<vmem>>, %arg4: memref<8x8xf32, #tpu.memory_space<vmem>>, %arg5: memref<8x1xf32, #tpu.memory_space<vmem>>, %arg6: memref<1x8x16x16xf32, #tpu.memory_space<vmem>>, %arg7: memref<1x8x1xf32, #tpu.memory_space<vmem>>) attributes {dimension_semantics = [#tpu.dimension_semantics<parallel>], iteration_bounds = array<i64: 2>, scalar_prefetch = 0 : i64, scratch_operands = 0 : i64, tpu.core_type = #tpu.core_type<tc>, window_params = [{transform_indices = @transform_0, window_bounds = array<i64: 1, 4, 18, 18>}, {pipeline_mode = #tpu.pipeline_mode<synchronous>, transform_indices = @transform_1, window_bounds = array<i64: 9, 8, 4>}, {pipeline_mode = #tpu.pipeline_mode<synchronous>, transform_indices = @transform_2, window_bounds = array<i64: 8, 1, 1>}, {pipeline_mode = #tpu.pipeline_mode<synchronous>, transform_indices = @transform_3, window_bounds = array<i64: 8, 8>}, {pipeline_mode = #tpu.pipeline_mode<synchronous>, transform_indices = @transform_4, window_bounds = array<i64: 8, 1>}, {transform_indices = @transform_5, window_bounds = array<i64: 1, 8, 16, 16>}, {transform_indices = @transform_6, window_bounds = array<i64: 1, 8, 1>}]} {
    %cst = arith.constant 0.000000e+00 : f32
    %0 = vector.broadcast %cst : f32 to vector<8x16x16xf32>
    %c0 = arith.constant 0 : index
    %c0_0 = arith.constant 0 : index
    %c0_1 = arith.constant 0 : index
    %c0_2 = arith.constant 0 : index
    %1 = vector.load %arg1[%c0, %c0_0, %c0_1, %c0_2] : memref<1x4x18x18xf32, #tpu.memory_space<vmem>>, vector<1x4x16x16xf32>
    %2 = vector.shape_cast %1 : vector<1x4x16x16xf32> to vector<4x16x16xf32>
    %c0_3 = arith.constant 0 : index
    %c0_4 = arith.constant 0 : index
    %c0_5 = arith.constant 0 : index
    %3 = vector.load %arg2[%c0_3, %c0_4, %c0_5] : memref<9x8x4xf32, #tpu.memory_space<vmem>>, vector<1x8x4xf32>
    %4 = vector.shape_cast %3 : vector<1x8x4xf32> to vector<8x4xf32>
    %5 = vector.shape_cast %4 : vector<8x4xf32> to vector<8x4x1x1xf32>
    %6 = vector.shape_cast %2 : vector<4x16x16xf32> to vector<1x4x16x16xf32>
    %7 = vector.broadcast %5 : vector<8x4x1x1xf32> to vector<8x4x16x16xf32>
    %8 = vector.broadcast %6 : vector<1x4x16x16xf32> to vector<8x4x16x16xf32>
    %9 = arith.mulf %7, %8 : vector<8x4x16x16xf32>
    %cst_6 = arith.constant dense<0.000000e+00> : vector<8x16x16xf32>
    %10 = vector.multi_reduction <add>, %9, %cst_6 [1] : vector<8x4x16x16xf32> to vector<8x16x16xf32>
    %11 = arith.addf %0, %10 : vector<8x16x16xf32>
    %c0_7 = arith.constant 0 : index
    %c0_8 = arith.constant 0 : index
    %c0_9 = arith.constant 0 : index
    %c1 = arith.constant 1 : index
    %12 = vector.load %arg1[%c0_7, %c0_8, %c0_9, %c1] : memref<1x4x18x18xf32, #tpu.memory_space<vmem>>, vector<1x4x16x16xf32>
    %13 = vector.shape_cast %12 : vector<1x4x16x16xf32> to vector<4x16x16xf32>
    %c1_10 = arith.constant 1 : index
    %c0_11 = arith.constant 0 : index
    %c0_12 = arith.constant 0 : index
    %14 = vector.load %arg2[%c1_10, %c0_11, %c0_12] : memref<9x8x4xf32, #tpu.memory_space<vmem>>, vector<1x8x4xf32>
    %15 = vector.shape_cast %14 : vector<1x8x4xf32> to vector<8x4xf32>
    %16 = vector.shape_cast %15 : vector<8x4xf32> to vector<8x4x1x1xf32>
    %17 = vector.shape_cast %13 : vector<4x16x16xf32> to vector<1x4x16x16xf32>
    %18 = vector.broadcast %16 : vector<8x4x1x1xf32> to vector<8x4x16x16xf32>
    %19 = vector.broadcast %17 : vector<1x4x16x16xf32> to vector<8x4x16x16xf32>
    %20 = arith.mulf %18, %19 : vector<8x4x16x16xf32>
    %cst_13 = arith.constant dense<0.000000e+00> : vector<8x16x16xf32>
    %21 = vector.multi_reduction <add>, %20, %cst_13 [1] : vector<8x4x16x16xf32> to vector<8x16x16xf32>
    %22 = arith.addf %11, %21 : vector<8x16x16xf32>
    %c0_14 = arith.constant 0 : index
    %c0_15 = arith.constant 0 : index
    %c0_16 = arith.constant 0 : index
    %c2 = arith.constant 2 : index
    %23 = vector.load %arg1[%c0_14, %c0_15, %c0_16, %c2] : memref<1x4x18x18xf32, #tpu.memory_space<vmem>>, vector<1x4x16x16xf32>
    %24 = vector.shape_cast %23 : vector<1x4x16x16xf32> to vector<4x16x16xf32>
    %c2_17 = arith.constant 2 : index
    %c0_18 = arith.constant 0 : index
    %c0_19 = arith.constant 0 : index
    %25 = vector.load %arg2[%c2_17, %c0_18, %c0_19] : memref<9x8x4xf32, #tpu.memory_space<vmem>>, vector<1x8x4xf32>
    %26 = vector.shape_cast %25 : vector<1x8x4xf32> to vector<8x4xf32>
    %27 = vector.shape_cast %26 : vector<8x4xf32> to vector<8x4x1x1xf32>
    %28 = vector.shape_cast %24 : vector<4x16x16xf32> to vector<1x4x16x16xf32>
    %29 = vector.broadcast %27 : vector<8x4x1x1xf32> to vector<8x4x16x16xf32>
    %30 = vector.broadcast %28 : vector<1x4x16x16xf32> to vector<8x4x16x16xf32>
    %31 = arith.mulf %29, %30 : vector<8x4x16x16xf32>
    %cst_20 = arith.constant dense<0.000000e+00> : vector<8x16x16xf32>
    %32 = vector.multi_reduction <add>, %31, %cst_20 [1] : vector<8x4x16x16xf32> to vector<8x16x16xf32>
    %33 = arith.addf %22, %32 : vector<8x16x16xf32>
    %c0_21 = arith.constant 0 : index
    %c0_22 = arith.constant 0 : index
    %c1_23 = arith.constant 1 : index
    %c0_24 = arith.constant 0 : index
    %34 = vector.load %arg1[%c0_21, %c0_22, %c1_23, %c0_24] : memref<1x4x18x18xf32, #tpu.memory_space<vmem>>, vector<1x4x16x16xf32>
    %35 = vector.shape_cast %34 : vector<1x4x16x16xf32> to vector<4x16x16xf32>
    %c3 = arith.constant 3 : index
    %c0_25 = arith.constant 0 : index
    %c0_26 = arith.constant 0 : index
    %36 = vector.load %arg2[%c3, %c0_25, %c0_26] : memref<9x8x4xf32, #tpu.memory_space<vmem>>, vector<1x8x4xf32>
    %37 = vector.shape_cast %36 : vector<1x8x4xf32> to vector<8x4xf32>
    %38 = vector.shape_cast %37 : vector<8x4xf32> to vector<8x4x1x1xf32>
    %39 = vector.shape_cast %35 : vector<4x16x16xf32> to vector<1x4x16x16xf32>
    %40 = vector.broadcast %38 : vector<8x4x1x1xf32> to vector<8x4x16x16xf32>
    %41 = vector.broadcast %39 : vector<1x4x16x16xf32> to vector<8x4x16x16xf32>
    %42 = arith.mulf %40, %41 : vector<8x4x16x16xf32>
    %cst_27 = arith.constant dense<0.000000e+00> : vector<8x16x16xf32>
    %43 = vector.multi_reduction <add>, %42, %cst_27 [1] : vector<8x4x16x16xf32> to vector<8x16x16xf32>
    %44 = arith.addf %33, %43 : vector<8x16x16xf32>
    %c0_28 = arith.constant 0 : index
    %c0_29 = arith.constant 0 : index
    %c1_30 = arith.constant 1 : index
    %c1_31 = arith.constant 1 : index
    %45 = vector.load %arg1[%c0_28, %c0_29, %c1_30, %c1_31] : memref<1x4x18x18xf32, #tpu.memory_space<vmem>>, vector<1x4x16x16xf32>
    %46 = vector.shape_cast %45 : vector<1x4x16x16xf32> to vector<4x16x16xf32>
    %c4 = arith.constant 4 : index
    %c0_32 = arith.constant 0 : index
    %c0_33 = arith.constant 0 : index
    %47 = vector.load %arg2[%c4, %c0_32, %c0_33] : memref<9x8x4xf32, #tpu.memory_space<vmem>>, vector<1x8x4xf32>
    %48 = vector.shape_cast %47 : vector<1x8x4xf32> to vector<8x4xf32>
    %49 = vector.shape_cast %48 : vector<8x4xf32> to vector<8x4x1x1xf32>
    %50 = vector.shape_cast %46 : vector<4x16x16xf32> to vector<1x4x16x16xf32>
    %51 = vector.broadcast %49 : vector<8x4x1x1xf32> to vector<8x4x16x16xf32>
    %52 = vector.broadcast %50 : vector<1x4x16x16xf32> to vector<8x4x16x16xf32>
    %53 = arith.mulf %51, %52 : vector<8x4x16x16xf32>
    %cst_34 = arith.constant dense<0.000000e+00> : vector<8x16x16xf32>
    %54 = vector.multi_reduction <add>, %53, %cst_34 [1] : vector<8x4x16x16xf32> to vector<8x16x16xf32>
    %55 = arith.addf %44, %54 : vector<8x16x16xf32>
    %c0_35 = arith.constant 0 : index
    %c0_36 = arith.constant 0 : index
    %c1_37 = arith.constant 1 : index
    %c2_38 = arith.constant 2 : index
    %56 = vector.load %arg1[%c0_35, %c0_36, %c1_37, %c2_38] : memref<1x4x18x18xf32, #tpu.memory_space<vmem>>, vector<1x4x16x16xf32>
    %57 = vector.shape_cast %56 : vector<1x4x16x16xf32> to vector<4x16x16xf32>
    %c5 = arith.constant 5 : index
    %c0_39 = arith.constant 0 : index
    %c0_40 = arith.constant 0 : index
    %58 = vector.load %arg2[%c5, %c0_39, %c0_40] : memref<9x8x4xf32, #tpu.memory_space<vmem>>, vector<1x8x4xf32>
    %59 = vector.shape_cast %58 : vector<1x8x4xf32> to vector<8x4xf32>
    %60 = vector.shape_cast %59 : vector<8x4xf32> to vector<8x4x1x1xf32>
    %61 = vector.shape_cast %57 : vector<4x16x16xf32> to vector<1x4x16x16xf32>
    %62 = vector.broadcast %60 : vector<8x4x1x1xf32> to vector<8x4x16x16xf32>
    %63 = vector.broadcast %61 : vector<1x4x16x16xf32> to vector<8x4x16x16xf32>
    %64 = arith.mulf %62, %63 : vector<8x4x16x16xf32>
    %cst_41 = arith.constant dense<0.000000e+00> : vector<8x16x16xf32>
    %65 = vector.multi_reduction <add>, %64, %cst_41 [1] : vector<8x4x16x16xf32> to vector<8x16x16xf32>
    %66 = arith.addf %55, %65 : vector<8x16x16xf32>
    %c0_42 = arith.constant 0 : index
    %c0_43 = arith.constant 0 : index
    %c2_44 = arith.constant 2 : index
    %c0_45 = arith.constant 0 : index
    %67 = vector.load %arg1[%c0_42, %c0_43, %c2_44, %c0_45] : memref<1x4x18x18xf32, #tpu.memory_space<vmem>>, vector<1x4x16x16xf32>
    %68 = vector.shape_cast %67 : vector<1x4x16x16xf32> to vector<4x16x16xf32>
    %c6 = arith.constant 6 : index
    %c0_46 = arith.constant 0 : index
    %c0_47 = arith.constant 0 : index
    %69 = vector.load %arg2[%c6, %c0_46, %c0_47] : memref<9x8x4xf32, #tpu.memory_space<vmem>>, vector<1x8x4xf32>
    %70 = vector.shape_cast %69 : vector<1x8x4xf32> to vector<8x4xf32>
    %71 = vector.shape_cast %70 : vector<8x4xf32> to vector<8x4x1x1xf32>
    %72 = vector.shape_cast %68 : vector<4x16x16xf32> to vector<1x4x16x16xf32>
    %73 = vector.broadcast %71 : vector<8x4x1x1xf32> to vector<8x4x16x16xf32>
    %74 = vector.broadcast %72 : vector<1x4x16x16xf32> to vector<8x4x16x16xf32>
    %75 = arith.mulf %73, %74 : vector<8x4x16x16xf32>
    %cst_48 = arith.constant dense<0.000000e+00> : vector<8x16x16xf32>
    %76 = vector.multi_reduction <add>, %75, %cst_48 [1] : vector<8x4x16x16xf32> to vector<8x16x16xf32>
    %77 = arith.addf %66, %76 : vector<8x16x16xf32>
    %c0_49 = arith.constant 0 : index
    %c0_50 = arith.constant 0 : index
    %c2_51 = arith.constant 2 : index
    %c1_52 = arith.constant 1 : index
    %78 = vector.load %arg1[%c0_49, %c0_50, %c2_51, %c1_52] : memref<1x4x18x18xf32, #tpu.memory_space<vmem>>, vector<1x4x16x16xf32>
    %79 = vector.shape_cast %78 : vector<1x4x16x16xf32> to vector<4x16x16xf32>
    %c7 = arith.constant 7 : index
    %c0_53 = arith.constant 0 : index
    %c0_54 = arith.constant 0 : index
    %80 = vector.load %arg2[%c7, %c0_53, %c0_54] : memref<9x8x4xf32, #tpu.memory_space<vmem>>, vector<1x8x4xf32>
    %81 = vector.shape_cast %80 : vector<1x8x4xf32> to vector<8x4xf32>
    %82 = vector.shape_cast %81 : vector<8x4xf32> to vector<8x4x1x1xf32>
    %83 = vector.shape_cast %79 : vector<4x16x16xf32> to vector<1x4x16x16xf32>
    %84 = vector.broadcast %82 : vector<8x4x1x1xf32> to vector<8x4x16x16xf32>
    %85 = vector.broadcast %83 : vector<1x4x16x16xf32> to vector<8x4x16x16xf32>
    %86 = arith.mulf %84, %85 : vector<8x4x16x16xf32>
    %cst_55 = arith.constant dense<0.000000e+00> : vector<8x16x16xf32>
    %87 = vector.multi_reduction <add>, %86, %cst_55 [1] : vector<8x4x16x16xf32> to vector<8x16x16xf32>
    %88 = arith.addf %77, %87 : vector<8x16x16xf32>
    %c0_56 = arith.constant 0 : index
    %c0_57 = arith.constant 0 : index
    %c2_58 = arith.constant 2 : index
    %c2_59 = arith.constant 2 : index
    %89 = vector.load %arg1[%c0_56, %c0_57, %c2_58, %c2_59] : memref<1x4x18x18xf32, #tpu.memory_space<vmem>>, vector<1x4x16x16xf32>
    %90 = vector.shape_cast %89 : vector<1x4x16x16xf32> to vector<4x16x16xf32>
    %c8 = arith.constant 8 : index
    %c0_60 = arith.constant 0 : index
    %c0_61 = arith.constant 0 : index
    %91 = vector.load %arg2[%c8, %c0_60, %c0_61] : memref<9x8x4xf32, #tpu.memory_space<vmem>>, vector<1x8x4xf32>
    %92 = vector.shape_cast %91 : vector<1x8x4xf32> to vector<8x4xf32>
    %93 = vector.shape_cast %92 : vector<8x4xf32> to vector<8x4x1x1xf32>
    %94 = vector.shape_cast %90 : vector<4x16x16xf32> to vector<1x4x16x16xf32>
    %95 = vector.broadcast %93 : vector<8x4x1x1xf32> to vector<8x4x16x16xf32>
    %96 = vector.broadcast %94 : vector<1x4x16x16xf32> to vector<8x4x16x16xf32>
    %97 = arith.mulf %95, %96 : vector<8x4x16x16xf32>
    %cst_62 = arith.constant dense<0.000000e+00> : vector<8x16x16xf32>
    %98 = vector.multi_reduction <add>, %97, %cst_62 [1] : vector<8x4x16x16xf32> to vector<8x16x16xf32>
    %99 = arith.addf %88, %98 : vector<8x16x16xf32>
    %c0_63 = arith.constant 0 : index
    %c0_64 = arith.constant 0 : index
    %c0_65 = arith.constant 0 : index
    %100 = vector.load %arg3[%c0_63, %c0_64, %c0_65] : memref<8x1x1xf32, #tpu.memory_space<vmem>>, vector<8x1x1xf32>
    %101 = vector.broadcast %100 : vector<8x1x1xf32> to vector<8x16x16xf32>
    %102 = arith.addf %99, %101 : vector<8x16x16xf32>
    %cst_66 = arith.constant 0.000000e+00 : f32
    %cst_67 = arith.constant 6.000000e+00 : f32
    %103 = vector.broadcast %cst_66 : f32 to vector<8x16x16xf32>
    %104 = arith.maximumf %103, %102 : vector<8x16x16xf32>
    %105 = vector.broadcast %cst_67 : f32 to vector<8x16x16xf32>
    %106 = arith.minimumf %105, %104 : vector<8x16x16xf32>
    %c0_68 = arith.constant 0 : index
    %c0_69 = arith.constant 0 : index
    %c0_70 = arith.constant 0 : index
    %c0_71 = arith.constant 0 : index
    %107 = vector.load %arg6[%c0_68, %c0_69, %c0_70, %c0_71] : memref<1x8x16x16xf32, #tpu.memory_space<vmem>>, vector<1x8x16x16xf32>
    %108 = vector.shape_cast %107 : vector<1x8x16x16xf32> to vector<8x16x16xf32>
    %109 = vector.shape_cast %106 : vector<8x16x16xf32> to vector<1x8x16x16xf32>
    tpu.vector_store %arg6[%c0_68, %c0_69, %c0_70, %c0_71], %109 {strides = array<i32>} : memref<1x8x16x16xf32, #tpu.memory_space<vmem>>, vector<1x8x16x16xf32>,
    %cst_72 = arith.constant dense<0.000000e+00> : vector<8x16xf32>
    %110 = vector.multi_reduction <add>, %106, %cst_72 [2] : vector<8x16x16xf32> to vector<8x16xf32>
    %cst_73 = arith.constant dense<0.000000e+00> : vector<8xf32>
    %111 = vector.multi_reduction <add>, %110, %cst_73 [1] : vector<8x16xf32> to vector<8xf32>
    %112 = vector.shape_cast %111 : vector<8xf32> to vector<8x1xf32>
    %c0_74 = arith.constant 0 : index
    %c0_75 = arith.constant 0 : index
    %113 = vector.load %arg4[%c0_74, %c0_75] : memref<8x8xf32, #tpu.memory_space<vmem>>, vector<8x8xf32>
    %114 = vector.shape_cast %113 : vector<8x8xf32> to vector<8x8x1xf32>
    %115 = vector.shape_cast %112 : vector<8x1xf32> to vector<1x8x1xf32>
    %116 = vector.broadcast %115 : vector<1x8x1xf32> to vector<8x8x1xf32>
    %117 = arith.mulf %114, %116 : vector<8x8x1xf32>
    %cst_76 = arith.constant dense<0.000000e+00> : vector<8x1xf32>
    %118 = vector.multi_reduction <add>, %117, %cst_76 [1] : vector<8x8x1xf32> to vector<8x1xf32>
    %c0_77 = arith.constant 0 : index
    %c0_78 = arith.constant 0 : index
    %119 = vector.load %arg5[%c0_77, %c0_78] : memref<8x1xf32, #tpu.memory_space<vmem>>, vector<8x1xf32>
    %120 = arith.addf %118, %119 : vector<8x1xf32>
    %cst_79 = arith.constant 0.000000e+00 : f32
    %121 = vector.broadcast %cst_79 : f32 to vector<8x1xf32>
    %122 = arith.subf %121, %120 : vector<8x1xf32>
    %123 = math.exp %122 : vector<8x1xf32>
    %cst_80 = arith.constant 1.000000e+00 : f32
    %124 = vector.broadcast %cst_80 : f32 to vector<8x1xf32>
    %125 = arith.addf %124, %123 : vector<8x1xf32>
    %cst_81 = arith.constant 1.000000e+00 : f32
    %126 = vector.broadcast %cst_81 : f32 to vector<8x1xf32>
    %127 = arith.divf %126, %125 : vector<8x1xf32>
    %c0_82 = arith.constant 0 : index
    %c0_83 = arith.constant 0 : index
    %c0_84 = arith.constant 0 : index
    %128 = vector.load %arg7[%c0_82, %c0_83, %c0_84] : memref<1x8x1xf32, #tpu.memory_space<vmem>>, vector<1x8x1xf32>
    %129 = vector.shape_cast %128 : vector<1x8x1xf32> to vector<8x1xf32>
    %130 = vector.shape_cast %127 : vector<8x1xf32> to vector<1x8x1xf32>
    tpu.vector_store %arg7[%c0_82, %c0_83, %c0_84], %130 {strides = array<i32>} : memref<1x8x1xf32, #tpu.memory_space<vmem>>, vector<1x8x1xf32>,
    return
  }
  func.func @transform_0(%arg0: i32) -> (i32, i32, i32, i32) {
    %c0_i32 = arith.constant 0 : i32
    %c0_i32_0 = arith.constant 0 : i32
    %c0_i32_1 = arith.constant 0 : i32
    %c0_i32_2 = arith.constant 0 : i32
    return %arg0, %c0_i32, %c0_i32_0, %c0_i32_1 : i32, i32, i32, i32
  }
  func.func @transform_1(%arg0: i32) -> (i32, i32, i32) {
    %c0_i32 = arith.constant 0 : i32
    %c0_i32_0 = arith.constant 0 : i32
    %c0_i32_1 = arith.constant 0 : i32
    %c0_i32_2 = arith.constant 0 : i32
    return %c0_i32, %c0_i32_0, %c0_i32_1 : i32, i32, i32
  }
  func.func @transform_2(%arg0: i32) -> (i32, i32, i32) {
    %c0_i32 = arith.constant 0 : i32
    %c0_i32_0 = arith.constant 0 : i32
    %c0_i32_1 = arith.constant 0 : i32
    %c0_i32_2 = arith.constant 0 : i32
    return %c0_i32, %c0_i32_0, %c0_i32_1 : i32, i32, i32
  }
  func.func @transform_3(%arg0: i32) -> (i32, i32) {
    %c0_i32 = arith.constant 0 : i32
    %c0_i32_0 = arith.constant 0 : i32
    %c0_i32_1 = arith.constant 0 : i32
    return %c0_i32, %c0_i32_0 : i32, i32
  }
  func.func @transform_4(%arg0: i32) -> (i32, i32) {
    %c0_i32 = arith.constant 0 : i32
    %c0_i32_0 = arith.constant 0 : i32
    %c0_i32_1 = arith.constant 0 : i32
    return %c0_i32, %c0_i32_0 : i32, i32
  }
  func.func @transform_5(%arg0: i32) -> (i32, i32, i32, i32) {
    %c0_i32 = arith.constant 0 : i32
    %c0_i32_0 = arith.constant 0 : i32
    %c0_i32_1 = arith.constant 0 : i32
    %c0_i32_2 = arith.constant 0 : i32
    return %arg0, %c0_i32, %c0_i32_0, %c0_i32_1 : i32, i32, i32, i32
  }
  func.func @transform_6(%arg0: i32) -> (i32, i32, i32) {
    %c0_i32 = arith.constant 0 : i32
    %c0_i32_0 = arith.constant 0 : i32
    %c0_i32_1 = arith.constant 0 : i32
    return %arg0, %c0_i32, %c0_i32_0 : i32, i32, i32
  }
}

</mosaic_0001>

<llo_original>
// kernel: tpu_custom_call.1
$region0: #{tpu_custom_call.1}
  #allocation0 [shape = 'u32[]', space=smem, size = 0x4, offset = 0x4, fixed_abs, tag = 'smem constant byte address 0x4 - core index']
  #allocation1 [shape = 'u32[144,128]{1,0:T(1,128)}', space=vmem, size = 0x12000, scoped, tag = 'internal scratch']
  %s0 = inlined_call_operand.vmem [shape: f32[2,4,18,18], index: 0, kind: input, shape index: {}]
  %s1 = inlined_call_operand.vmem [shape: f32[9,8,4], index: 1, kind: input, shape index: {}]
  %s2 = inlined_call_operand.vmem [shape: f32[8,1,1], index: 2, kind: input, shape index: {}]
  %s3 = inlined_call_operand.vmem [shape: f32[8,8], index: 3, kind: input, shape index: {}]
  %s4 = inlined_call_operand.vmem [shape: f32[8,1], index: 4, kind: input, shape index: {}]
  %s5 = inlined_call_operand.hbm [shape: f32[2,8,16,16], index: 5, kind: output, shape index: {0}]
  %s6 = inlined_call_operand.vmem [shape: f32[2,8,1], index: 6, kind: output, shape index: {1}]
  %7 = xla_tuple %s5, %s6
  %s8 = sld [smem:[#allocation0]]
  $region61: #{tpu_custom_call.1} parent=0
    _
  %s10 = ssub.s32 1, %s8
  %s11 = scalar_select 0, %s10, %s8
  $region1: #{tpu_custom_call.1} parent=0
    #allocation2 [shape = 'u8[131072]{0}', space=vmem, size = 0x20000, scoped, tag = 'output window, operand 0']
    #allocation3 [shape = 's32[2]{0}', space=sflag, size = 0x8, scoped, tag = 'scoped memory for tpu_custom_call.1']
    %12 = vsyncpa [#allocation3], 0
    %s13 = scalar_lea.sflag [#allocation3], 1
    %14 = vsyncpa %s13, 0
    loop: start=0, step=1, limit=4
    $region2: #{tpu_custom_call.1} parent=1 // loop_pre_header
      _
    $region3: #{tpu_custom_call.1} parent=1 // loop_header
      %s16 = sphi 0, %s20
      %p17 = scmp.ge.s32.totalorder %s16, 4
      %s26 = sphi 0, %s28
      %s29 = sphi 0, %s26
      %s30 = sphi 0, %s29
      %s46 = sphi 0, %s30
      %s50 = sphi 0, %s50
      %s52 = sphi 0, %s50
      %s53 = sphi 0, %s52
      %s67 = sphi 0, %s53
      %s71 = sphi 0, %s71
      %s73 = sphi 0, %s71
      %s74 = sphi 0, %s73
      %s88 = sphi 0, %s74
      %s92 = sphi 0, %s92
      %s94 = sphi 0, %s92
      %s95 = sphi 0, %s94
      %s109 = sphi 0, %s95
      %s113 = sphi 0, %s113
      %s115 = sphi 0, %s113
      %s116 = sphi 0, %s115
      %s130 = sphi 0, %s116
      %s136 = sphi 0, %s138
      %s139 = sphi 0, %s136
      %s140 = sphi 0, %s139
      %s156 = sphi 0, %s140
      %s162 = sphi 0, %s164
      %s165 = sphi 0, %s162
      %s166 = sphi 0, %s165
      %s182 = sphi 0, %s166
    $region4: #{tpu_custom_call.1} parent=1 // loop_header_branch
      %19 = sbr.rel (%p17) target = $region8
    $region5: #{tpu_custom_call.1} parent=1 // loop_body
      %s21 = ssub.s32 %s16, 1
      %s22 = ssub.s32 %s16, 2
      %s23 = sadd.s32 %s16, 1
      %s24 = ssub.s32 %s16, %s23
      %p25 = scmp.eq.s32.totalorder %s24, 0
      %s27 = sadd.s32 %s26, 1
      %s28 = scalar_select %p25, %s26, %s27
      %p31 = pneg %p25
      %p32 = scmp.eq.s32.totalorder %s16, 1
      %p33 = por %p31, %p32
      %p34 = scmp.ne.s32.totalorder %s26, %s29
      %p35 = scmp.eq.s32.totalorder %s16, 0
      %p36 = por %p34, %p35
      %p37 = scmp.ne.s32.totalorder %s26, %s29
      %p38 = scmp.eq.s32.totalorder %s21, 1
      %p39 = por %p37, %p38
      %p40 = scmp.ne.s32.totalorder %s29, %s30
      %p41 = scmp.eq.s32.totalorder %s21, 0
      %p42 = por %p40, %p41
      %p43 = scmp.ne.s32.totalorder %s29, %s30
      %p44 = scmp.eq.s32.totalorder %s22, 1
      %p45 = por %p43, %p44
      %p47 = scmp.ne.s32.totalorder %s30, %s46
      %p48 = scmp.eq.s32.totalorder %s22, 0
      %p49 = por %p47, %p48
      %s51 = sadd.s32 %s50, 1
      %p54 = scmp.eq.s32.totalorder %s16, 1
      %p55 = scmp.ne.s32.totalorder %s50, %s52
      %p56 = scmp.eq.s32.totalorder %s16, 0
      %p57 = por %p55, %p56
      %p58 = scmp.ne.s32.totalorder %s50, %s52
      %p59 = scmp.eq.s32.totalorder %s21, 1
      %p60 = por %p58, %p59
      %p61 = scmp.ne.s32.totalorder %s52, %s53
      %p62 = scmp.eq.s32.totalorder %s21, 0
      %p63 = por %p61, %p62
      %p64 = scmp.ne.s32.totalorder %s52, %s53
      %p65 = scmp.eq.s32.totalorder %s22, 1
      %p66 = por %p64, %p65
      %p68 = scmp.ne.s32.totalorder %s53, %s67
      %p69 = scmp.eq.s32.totalorder %s22, 0
      %p70 = por %p68, %p69
      %s72 = sadd.s32 %s71, 1
      %p75 = scmp.eq.s32.totalorder %s16, 1
      %p76 = scmp.ne.s32.totalorder %s71, %s73
      %p77 = scmp.eq.s32.totalorder %s16, 0
      %p78 = por %p76, %p77
      %p79 = scmp.ne.s32.totalorder %s71, %s73
      %p80 = scmp.eq.s32.totalorder %s21, 1
      %p81 = por %p79, %p80
      %p82 = scmp.ne.s32.totalorder %s73, %s74
      %p83 = scmp.eq.s32.totalorder %s21, 0
      %p84 = por %p82, %p83
      %p85 = scmp.ne.s32.totalorder %s73, %s74
      %p86 = scmp.eq.s32.totalorder %s22, 1
      %p87 = por %p85, %p86
      %p89 = scmp.ne.s32.totalorder %s74, %s88
      %p90 = scmp.eq.s32.totalorder %s22, 0
      %p91 = por %p89, %p90
      %s93 = sadd.s32 %s92, 1
      %p96 = scmp.eq.s32.totalorder %s16, 1
      %p97 = scmp.ne.s32.totalorder %s92, %s94
      %p98 = scmp.eq.s32.totalorder %s16, 0
      %p99 = por %p97, %p98
      %p100 = scmp.ne.s32.totalorder %s92, %s94
      %p101 = scmp.eq.s32.totalorder %s21, 1
      %p102 = por %p100, %p101
      %p103 = scmp.ne.s32.totalorder %s94, %s95
      %p104 = scmp.eq.s32.totalorder %s21, 0
      %p105 = por %p103, %p104
      %p106 = scmp.ne.s32.totalorder %s94, %s95
      %p107 = scmp.eq.s32.totalorder %s22, 1
      %p108 = por %p106, %p107
      %p110 = scmp.ne.s32.totalorder %s95, %s109
      %p111 = scmp.eq.s32.totalorder %s22, 0
      %p112 = por %p110, %p111
      %s114 = sadd.s32 %s113, 1
      %p117 = scmp.eq.s32.totalorder %s16, 1
      %p118 = scmp.ne.s32.totalorder %s113, %s115
      %p119 = scmp.eq.s32.totalorder %s16, 0
      %p120 = por %p118, %p119
      %p121 = scmp.ne.s32.totalorder %s113, %s115
      %p122 = scmp.eq.s32.totalorder %s21, 1
      %p123 = por %p121, %p122
      %p124 = scmp.ne.s32.totalorder %s115, %s116
      %p125 = scmp.eq.s32.totalorder %s21, 0
      %p126 = por %p124, %p125
      %p127 = scmp.ne.s32.totalorder %s115, %s116
      %p128 = scmp.eq.s32.totalorder %s22, 1
      %p129 = por %p127, %p128
      %p131 = scmp.ne.s32.totalorder %s116, %s130
      %p132 = scmp.eq.s32.totalorder %s22, 0
      %p133 = por %p131, %p132
      %s134 = ssub.s32 %s16, %s23
      %p135 = scmp.eq.s32.totalorder %s134, 0
      %s137 = sadd.s32 %s136, 1
      %s138 = scalar_select %p135, %s136, %s137
      %p141 = pneg %p135
      %p142 = scmp.eq.s32.totalorder %s16, 1
      %p143 = por %p141, %p142
      %p144 = scmp.ne.s32.totalorder %s136, %s139
      %p145 = scmp.eq.s32.totalorder %s16, 0
      %p146 = por %p144, %p145
      %p147 = scmp.ne.s32.totalorder %s136, %s139
      %p148 = scmp.eq.s32.totalorder %s21, 1
      %p149 = por %p147, %p148
      %p150 = scmp.ne.s32.totalorder %s139, %s140
      %p151 = scmp.eq.s32.totalorder %s21, 0
      %p152 = por %p150, %p151
      %p153 = scmp.ne.s32.totalorder %s139, %s140
      %p154 = scmp.eq.s32.totalorder %s22, 1
      %p155 = por %p153, %p154
      %p157 = scmp.ne.s32.totalorder %s140, %s156
      %p158 = scmp.eq.s32.totalorder %s22, 0
      %p159 = por %p157, %p158
      %s160 = ssub.s32 %s16, %s23
      %p161 = scmp.eq.s32.totalorder %s160, 0
      %s163 = sadd.s32 %s162, 1
      %s164 = scalar_select %p161, %s162, %s163
      %p167 = pneg %p161
      %p168 = scmp.eq.s32.totalorder %s16, 1
      %p169 = por %p167, %p168
      %p170 = scmp.ne.s32.totalorder %s162, %s165
      %p171 = scmp.eq.s32.totalorder %s16, 0
      %p172 = por %p170, %p171
      %p173 = scmp.ne.s32.totalorder %s162, %s165
      %p174 = scmp.eq.s32.totalorder %s21, 1
      %p175 = por %p173, %p174
      %p176 = scmp.ne.s32.totalorder %s165, %s166
      %p177 = scmp.eq.s32.totalorder %s21, 0
      %p178 = por %p176, %p177
      %p179 = scmp.ne.s32.totalorder %s165, %s166
      %p180 = scmp.eq.s32.totalorder %s22, 1
      %p181 = por %p179, %p180
      %p183 = scmp.ne.s32.totalorder %s166, %s182
      %p184 = scmp.eq.s32.totalorder %s22, 0
      %p185 = por %p183, %p184
      %p186 = scmp.le.s32.totalorder 1, %s16
      %p187 = scmp.lt.s32.totalorder %s16, 3
      %p188 = pnand %p186, %p187
      %p189 = pneg %p188
      // Predicated region
      $region9: #{tpu_custom_call.1} parent=5 // pred_check
        _
      $region10: #{tpu_custom_call.1} parent=5 // pred_check_branch
        %191 = sbr.rel (%p188) target = $region12
      $region11: #{tpu_custom_call.1} parent=5 // pred_region
        %s192 = ssub.s32 %s16, 1
        // Predicated region
        $region13: #{tpu_custom_call.1} parent=11 // pred_check
          %p193 = pneg %p63
        $region14: #{tpu_custom_call.1} parent=11 // pred_check_branch
          %195 = sbr.rel (%p193) target = $region16
        $region15: #{tpu_custom_call.1} parent=11 // pred_region
          _
        $region16: #{tpu_custom_call.1} parent=11 // pred_fallthru
          _
        // Predicated region
        $region17: #{tpu_custom_call.1} parent=11 // pred_check
          %p196 = pneg %p84
        $region18: #{tpu_custom_call.1} parent=11 // pred_check_branch
          %198 = sbr.rel (%p196) target = $region20
        $region19: #{tpu_custom_call.1} parent=11 // pred_region
          _
        $region20: #{tpu_custom_call.1} parent=11 // pred_fallthru
          _
        // Predicated region
        $region21: #{tpu_custom_call.1} parent=11 // pred_check
          %p199 = pneg %p105
        $region22: #{tpu_custom_call.1} parent=11 // pred_check_branch
          %201 = sbr.rel (%p199) target = $region24
        $region23: #{tpu_custom_call.1} parent=11 // pred_region
          _
        $region24: #{tpu_custom_call.1} parent=11 // pred_fallthru
          _
        // Predicated region
        $region25: #{tpu_custom_call.1} parent=11 // pred_check
          %p202 = pneg %p126
        $region26: #{tpu_custom_call.1} parent=11 // pred_check_branch
          %204 = sbr.rel (%p202) target = $region28
        $region27: #{tpu_custom_call.1} parent=11 // pred_region
          _
        $region28: #{tpu_custom_call.1} parent=11 // pred_fallthru
          _
      $region12: #{tpu_custom_call.1} parent=5 // pred_fallthru
        _
      %p205 = scmp.lt.s32.totalorder %s16, 2
      // Predicated region
      $region29: #{tpu_custom_call.1} parent=5 // pred_check
        %p206 = pneg %p205
      $region30: #{tpu_custom_call.1} parent=5 // pred_check_branch
        %208 = sbr.rel (%p206) target = $region32
      $region31: #{tpu_custom_call.1} parent=5 // pred_region
        // Predicated region
        $region33: #{tpu_custom_call.1} parent=31 // pred_check
          %p209 = pneg %p36
        $region34: #{tpu_custom_call.1} parent=31 // pred_check_branch
          %211 = sbr.rel (%p209) target = $region36
        $region35: #{tpu_custom_call.1} parent=31 // pred_region
          %p212 = scmp.lt.s32.totalorder %s16, 1
          %s213 = scalar_select %p212, %s16, 1
          %s214 = smul.addr %s213, 12
          %s215 = smul.addr %s214, 8
          %s216 = scalar_lea.vmem %s0, %s215
        $region36: #{tpu_custom_call.1} parent=31 // pred_fallthru
          _
      $region32: #{tpu_custom_call.1} parent=5 // pred_fallthru
        _
      %p217 = scmp.le.s32.totalorder 1, %s16
      %p218 = scmp.lt.s32.totalorder %s16, 3
      %p219 = pnand %p217, %p218
      %p220 = pneg %p219
      // Predicated region
      $region37: #{tpu_custom_call.1} parent=5 // pred_check
        _
      $region38: #{tpu_custom_call.1} parent=5 // pred_check_branch
        %222 = sbr.rel (%p219) target = $region40
      $region39: #{tpu_custom_call.1} parent=5 // pred_region
        %s223 = ssub.s32 %s16, 1
        %p224 = scmp.lt.s32.totalorder %s21, 1
        %s225 = scalar_select %p224, %s21, 1
        %s226 = smul.addr %s225, 12
        %s227 = smul.addr %s226, 8
        %s228 = scalar_lea.vmem %s0, %s227
        %p229 = pneg %p42
        %p230 = pneg %p39
        %p231 = pneg %p63
        %p232 = pneg %p60
        %p233 = pneg %p84
        %p234 = pneg %p81
        %p235 = pneg %p105
        %p236 = pneg %p102
        %p237 = pneg %p126
        %p238 = pneg %p123
        %p239 = pneg %p152
        %p240 = pneg %p149
        %s241 = sand.u32 %s139, 1
        %s242 = scalar_lea.sflag [#allocation3], %s241
        %s243 = sand.u32 %s139, 1
        %s244 = smul.addr %s243, 128
        %s245 = scalar_lea.vmem [#allocation2], %s244
        %p246 = pneg %p178
        %p247 = pneg %p175
        %p248 = scmp.lt.s32.totalorder %s21, 1
        %s249 = scalar_select %p248, %s21, 1
        %s250 = smul.addr %s249, 8
        %s251 = scalar_lea.vmem %s6, %s250
        %p252 = scmp.lt.s32.totalorder %s21, 1
        %s253 = scalar_select %p252, %s21, 1
        %s254 = smul.addr %s253, 12
        %s255 = smul.addr %s254, 8
        %s256 = scalar_lea.vmem %s0, %s255
        %p257 = scmp.lt.s32.totalorder %s21, 1
        %s258 = scalar_select %p257, %s21, 1
        %s259 = smul.addr %s258, 8
        %s260 = scalar_lea.vmem %s6, %s259
        %v261 = vld [vmem:[%s256] sm:$0xff]
        %v262 = vld [vmem:[%s256 + $0x8] sm:$0xff]
        %v263 = vld [vmem:[%s256 + $0x18] sm:$0xff]
        %v264 = vld [vmem:[%s256 + $0x20] sm:$0xff]
        %v265 = vld [vmem:[%s256 + $0x30] sm:$0xff]
        %v266 = vld [vmem:[%s256 + $0x38] sm:$0xff]
        %v267 = vld [vmem:[%s256 + $0x48] sm:$0xff]
        %v268 = vld [vmem:[%s256 + $0x50] sm:$0xff]
        %v269 = vld [vmem:[%s1] sm:$0xff]
        %v270 = vlaneseq
        %v271 = vshrl.u32 %v270, 7
        %v272 = vsub.s32 0, %v271
        %v273 = vrot.slane %v269, %v272
        %275 = vbcast.lane.b32.xlu0 %v273, 256
        %v276 = vpop.permute.xlu0 %275
        %v277 = vlaneseq
        %v278 = vshrl.u32 %v277, 7
        %v279 = vsub.s32 1, %v278
        %v280 = vrot.slane %v269, %v279
        %282 = vbcast.lane.b32.xlu0 %v280, 256
        %v283 = vpop.permute.xlu0 %282
        %v284 = vlaneseq
        %v285 = vshrl.u32 %v284, 7
        %v286 = vsub.s32 2, %v285
        %v287 = vrot.slane %v269, %v286
        %289 = vbcast.lane.b32.xlu0 %v287, 256
        %v290 = vpop.permute.xlu0 %289
        %v291 = vlaneseq
        %v292 = vshrl.u32 %v291, 7
        %v293 = vsub.s32 3, %v292
        %v294 = vrot.slane %v269, %v293
        %296 = vbcast.lane.b32.xlu0 %v294, 256
        %v297 = vpop.permute.xlu0 %296
        %v298 = vlaneseq
        %v299 = vshrl.u32 %v298, 7
        %v300 = vsub.s32 4, %v299
        %v301 = vrot.slane %v269, %v300
        %303 = vbcast.lane.b32.xlu0 %v301, 256
        %v304 = vpop.permute.xlu0 %303
        %v305 = vlaneseq
        %v306 = vshrl.u32 %v305, 7
        %v307 = vsub.s32 5, %v306
        %v308 = vrot.slane %v269, %v307
        %310 = vbcast.lane.b32.xlu0 %v308, 256
        %v311 = vpop.permute.xlu0 %310
        %v312 = vlaneseq
        %v313 = vshrl.u32 %v312, 7
        %v314 = vsub.s32 6, %v313
        %v315 = vrot.slane %v269, %v314
        %317 = vbcast.lane.b32.xlu0 %v315, 256
        %v318 = vpop.permute.xlu0 %317
        %v319 = vlaneseq
        %v320 = vshrl.u32 %v319, 7
        %v321 = vsub.s32 7, %v320
        %v322 = vrot.slane %v269, %v321
        %324 = vbcast.lane.b32.xlu0 %v322, 256
        %v325 = vpop.permute.xlu0 %324
        %v326 = vlaneseq
        %v327 = vshrl.u32 %v326, 7
        %v328 = vsub.s32 0, %v327
        %v329 = vrot.slane %v276, %v328
        %v330 = vlaneseq
        %v331 = vshrl.u32 %v330, 7
        %v332 = vsub.s32 1, %v331
        %v333 = vrot.slane %v276, %v332
        %v334 = vlaneseq
        %v335 = vshrl.u32 %v334, 7
        %v336 = vsub.s32 2, %v335
        %v337 = vrot.slane %v276, %v336
        %v338 = vlaneseq
        %v339 = vshrl.u32 %v338, 7
        %v340 = vsub.s32 3, %v339
        %v341 = vrot.slane %v276, %v340
        %v342 = vlaneseq
        %v343 = vshrl.u32 %v342, 7
        %v344 = vsub.s32 0, %v343
        %v345 = vrot.slane %v283, %v344
        %v346 = vlaneseq
        %v347 = vshrl.u32 %v346, 7
        %v348 = vsub.s32 1, %v347
        %v349 = vrot.slane %v283, %v348
        %v350 = vlaneseq
        %v351 = vshrl.u32 %v350, 7
        %v352 = vsub.s32 2, %v351
        %v353 = vrot.slane %v283, %v352
        %v354 = vlaneseq
        %v355 = vshrl.u32 %v354, 7
        %v356 = vsub.s32 3, %v355
        %v357 = vrot.slane %v283, %v356
        %v358 = vlaneseq
        %v359 = vshrl.u32 %v358, 7
        %v360 = vsub.s32 0, %v359
        %v361 = vrot.slane %v290, %v360
        %v362 = vlaneseq
        %v363 = vshrl.u32 %v362, 7
        %v364 = vsub.s32 1, %v363
        %v365 = vrot.slane %v290, %v364
        %v366 = vlaneseq
        %v367 = vshrl.u32 %v366, 7
        %v368 = vsub.s32 2, %v367
        %v369 = vrot.slane %v290, %v368
        %v370 = vlaneseq
        %v371 = vshrl.u32 %v370, 7
        %v372 = vsub.s32 3, %v371
        %v373 = vrot.slane %v290, %v372
        %v374 = vlaneseq
        %v375 = vshrl.u32 %v374, 7
        %v376 = vsub.s32 0, %v375
        %v377 = vrot.slane %v297, %v376
        %v378 = vlaneseq
        %v379 = vshrl.u32 %v378, 7
        %v380 = vsub.s32 1, %v379
        %v381 = vrot.slane %v297, %v380
        %v382 = vlaneseq
        %v383 = vshrl.u32 %v382, 7
        %v384 = vsub.s32 2, %v383
        %v385 = vrot.slane %v297, %v384
        %v386 = vlaneseq
        %v387 = vshrl.u32 %v386, 7
        %v388 = vsub.s32 3, %v387
        %v389 = vrot.slane %v297, %v388
        %v390 = vlaneseq
        %v391 = vshrl.u32 %v390, 7
        %v392 = vsub.s32 0, %v391
        %v393 = vrot.slane %v304, %v392
        %v394 = vlaneseq
        %v395 = vshrl.u32 %v394, 7
        %v396 = vsub.s32 1, %v395
        %v397 = vrot.slane %v304, %v396
        %v398 = vlaneseq
        %v399 = vshrl.u32 %v398, 7
        %v400 = vsub.s32 2, %v399
        %v401 = vrot.slane %v304, %v400
        %v402 = vlaneseq
        %v403 = vshrl.u32 %v402, 7
        %v404 = vsub.s32 3, %v403
        %v405 = vrot.slane %v304, %v404
        %v406 = vlaneseq
        %v407 = vshrl.u32 %v406, 7
        %v408 = vsub.s32 0, %v407
        %v409 = vrot.slane %v311, %v408
        %v410 = vlaneseq
        %v411 = vshrl.u32 %v410, 7
        %v412 = vsub.s32 1, %v411
        %v413 = vrot.slane %v311, %v412
        %v414 = vlaneseq
        %v415 = vshrl.u32 %v414, 7
        %v416 = vsub.s32 2, %v415
        %v417 = vrot.slane %v311, %v416
        %v418 = vlaneseq
        %v419 = vshrl.u32 %v418, 7
        %v420 = vsub.s32 3, %v419
        %v421 = vrot.slane %v311, %v420
        %v422 = vlaneseq
        %v423 = vshrl.u32 %v422, 7
        %v424 = vsub.s32 0, %v423
        %v425 = vrot.slane %v318, %v424
        %v426 = vlaneseq
        %v427 = vshrl.u32 %v426, 7
        %v428 = vsub.s32 1, %v427
        %v429 = vrot.slane %v318, %v428
        %v430 = vlaneseq
        %v431 = vshrl.u32 %v430, 7
        %v432 = vsub.s32 2, %v431
        %v433 = vrot.slane %v318, %v432
        %v434 = vlaneseq
        %v435 = vshrl.u32 %v434, 7
        %v436 = vsub.s32 3, %v435
        %v437 = vrot.slane %v318, %v436
        %v438 = vlaneseq
        %v439 = vshrl.u32 %v438, 7
        %v440 = vsub.s32 0, %v439
        %v441 = vrot.slane %v325, %v440
        %v442 = vlaneseq
        %v443 = vshrl.u32 %v442, 7
        %v444 = vsub.s32 1, %v443
        %v445 = vrot.slane %v325, %v444
        %v446 = vlaneseq
        %v447 = vshrl.u32 %v446, 7
        %v448 = vsub.s32 2, %v447
        %v449 = vrot.slane %v325, %v448
        %v450 = vlaneseq
        %v451 = vshrl.u32 %v450, 7
        %v452 = vsub.s32 3, %v451
        %v453 = vrot.slane %v325, %v452
        %v454 = vmul.f32 %v329, %v261
        %v455 = vmul.f32 %v329, %v262
        %v456 = vmul.f32 %v333, %v263
        %v457 = vmul.f32 %v333, %v264
        %v458 = vmul.f32 %v337, %v265
        %v459 = vmul.f32 %v337, %v266
        %v460 = vmul.f32 %v341, %v267
        %v461 = vmul.f32 %v341, %v268
        %v462 = vmul.f32 %v345, %v261
        %v463 = vmul.f32 %v345, %v262
        %v464 = vmul.f32 %v349, %v263
        %v465 = vmul.f32 %v349, %v264
        %v466 = vmul.f32 %v353, %v265
        %v467 = vmul.f32 %v353, %v266
        %v468 = vmul.f32 %v357, %v267
        %v469 = vmul.f32 %v357, %v268
        %v470 = vmul.f32 %v361, %v261
        %v471 = vmul.f32 %v361, %v262
        %v472 = vmul.f32 %v365, %v263
        %v473 = vmul.f32 %v365, %v264
        %v474 = vmul.f32 %v369, %v265
        %v475 = vmul.f32 %v369, %v266
        %v476 = vmul.f32 %v373, %v267
        %v477 = vmul.f32 %v373, %v268
        %v478 = vmul.f32 %v377, %v261
        %v479 = vmul.f32 %v377, %v262
        %v480 = vmul.f32 %v381, %v263
        %v481 = vmul.f32 %v381, %v264
        %v482 = vmul.f32 %v385, %v265
        %v483 = vmul.f32 %v385, %v266
        %v484 = vmul.f32 %v389, %v267
        %v485 = vmul.f32 %v389, %v268
        %v486 = vmul.f32 %v393, %v261
        %v487 = vmul.f32 %v393, %v262
        %v488 = vmul.f32 %v397, %v263
        %v489 = vmul.f32 %v397, %v264
        %v490 = vmul.f32 %v401, %v265
        %v491 = vmul.f32 %v401, %v266
        %v492 = vmul.f32 %v405, %v267
        %v493 = vmul.f32 %v405, %v268
        %v494 = vmul.f32 %v409, %v261
        %v495 = vmul.f32 %v409, %v262
        %v496 = vmul.f32 %v413, %v263
        %v497 = vmul.f32 %v413, %v264
        %v498 = vmul.f32 %v417, %v265
        %v499 = vmul.f32 %v417, %v266
        %v500 = vmul.f32 %v421, %v267
        %v501 = vmul.f32 %v421, %v268
        %v502 = vmul.f32 %v425, %v261
        %v503 = vmul.f32 %v425, %v262
        %v504 = vmul.f32 %v429, %v263
        %v505 = vmul.f32 %v429, %v264
        %v506 = vmul.f32 %v433, %v265
        %v507 = vmul.f32 %v433, %v266
        %v508 = vmul.f32 %v437, %v267
        %v509 = vmul.f32 %v437, %v268
        %v510 = vmul.f32 %v441, %v261
        %v511 = vmul.f32 %v441, %v262
        %v512 = vmul.f32 %v445, %v263
        %v513 = vmul.f32 %v445, %v264
        %v514 = vmul.f32 %v449, %v265
        %v515 = vmul.f32 %v449, %v266
        %v516 = vmul.f32 %v453, %v267
        %v517 = vmul.f32 %v453, %v268
        %vm518 = vcmask 130048
        %v519 = vsel %vm518, %v454, 0.0
        %v520 = vsel %vm518, %v456, 0.0
        %v521 = vadd.f32 %v519, %v520
        %v522 = vsel %vm518, %v458, 0.0
        %v523 = vadd.f32 %v521, %v522
        %v524 = vsel %vm518, %v460, 0.0
        %v525 = vadd.f32 %v523, %v524
        %v526 = vsel %vm518, %v455, 0.0
        %v527 = vsel %vm518, %v457, 0.0
        %v528 = vadd.f32 %v526, %v527
        %v529 = vsel %vm518, %v459, 0.0
        %v530 = vadd.f32 %v528, %v529
        %v531 = vsel %vm518, %v461, 0.0
        %v532 = vadd.f32 %v530, %v531
        %v533 = vsel %vm518, %v462, 0.0
        %v534 = vsel %vm518, %v464, 0.0
        %v535 = vadd.f32 %v533, %v534
        %v536 = vsel %vm518, %v466, 0.0
        %v537 = vadd.f32 %v535, %v536
        %v538 = vsel %vm518, %v468, 0.0
        %v539 = vadd.f32 %v537, %v538
        %v540 = vsel %vm518, %v463, 0.0
        %v541 = vsel %vm518, %v465, 0.0
        %v542 = vadd.f32 %v540, %v541
        %v543 = vsel %vm518, %v467, 0.0
        %v544 = vadd.f32 %v542, %v543
        %v545 = vsel %vm518, %v469, 0.0
        %v546 = vadd.f32 %v544, %v545
        %v547 = vsel %vm518, %v470, 0.0
        %v548 = vsel %vm518, %v472, 0.0
        %v549 = vadd.f32 %v547, %v548
        %v550 = vsel %vm518, %v474, 0.0
        %v551 = vadd.f32 %v549, %v550
        %v552 = vsel %vm518, %v476, 0.0
        %v553 = vadd.f32 %v551, %v552
        %v554 = vsel %vm518, %v471, 0.0
        %v555 = vsel %vm518, %v473, 0.0
        %v556 = vadd.f32 %v554, %v555
        %v557 = vsel %vm518, %v475, 0.0
        %v558 = vadd.f32 %v556, %v557
        %v559 = vsel %vm518, %v477, 0.0
        %v560 = vadd.f32 %v558, %v559
        %v561 = vsel %vm518, %v478, 0.0
        %v562 = vsel %vm518, %v480, 0.0
        %v563 = vadd.f32 %v561, %v562
        %v564 = vsel %vm518, %v482, 0.0
        %v565 = vadd.f32 %v563, %v564
        %v566 = vsel %vm518, %v484, 0.0
        %v567 = vadd.f32 %v565, %v566
        %v568 = vsel %vm518, %v479, 0.0
        %v569 = vsel %vm518, %v481, 0.0
        %v570 = vadd.f32 %v568, %v569
        %v571 = vsel %vm518, %v483, 0.0
        %v572 = vadd.f32 %v570, %v571
        %v573 = vsel %vm518, %v485, 0.0
        %v574 = vadd.f32 %v572, %v573
        %v575 = vsel %vm518, %v486, 0.0
        %v576 = vsel %vm518, %v488, 0.0
        %v577 = vadd.f32 %v575, %v576
        %v578 = vsel %vm518, %v490, 0.0
        %v579 = vadd.f32 %v577, %v578
        %v580 = vsel %vm518, %v492, 0.0
        %v581 = vadd.f32 %v579, %v580
        %v582 = vsel %vm518, %v487, 0.0
        %v583 = vsel %vm518, %v489, 0.0
        %v584 = vadd.f32 %v582, %v583
        %v585 = vsel %vm518, %v491, 0.0
        %v586 = vadd.f32 %v584, %v585
        %v587 = vsel %vm518, %v493, 0.0
        %v588 = vadd.f32 %v586, %v587
        %v589 = vsel %vm518, %v494, 0.0
        %v590 = vsel %vm518, %v496, 0.0
        %v591 = vadd.f32 %v589, %v590
        %v592 = vsel %vm518, %v498, 0.0
        %v593 = vadd.f32 %v591, %v592
        %v594 = vsel %vm518, %v500, 0.0
        %v595 = vadd.f32 %v593, %v594
        %v596 = vsel %vm518, %v495, 0.0
        %v597 = vsel %vm518, %v497, 0.0
        %v598 = vadd.f32 %v596, %v597
        %v599 = vsel %vm518, %v499, 0.0
        %v600 = vadd.f32 %v598, %v599
        %v601 = vsel %vm518, %v501, 0.0
        %v602 = vadd.f32 %v600, %v601
        %v603 = vsel %vm518, %v502, 0.0
        %v604 = vsel %vm518, %v504, 0.0
        %v605 = vadd.f32 %v603, %v604
        %v606 = vsel %vm518, %v506, 0.0
        %v607 = vadd.f32 %v605, %v606
        %v608 = vsel %vm518, %v508, 0.0
        %v609 = vadd.f32 %v607, %v608
        %v610 = vsel %vm518, %v503, 0.0
        %v611 = vsel %vm518, %v505, 0.0
        %v612 = vadd.f32 %v610, %v611
        %v613 = vsel %vm518, %v507, 0.0
        %v614 = vadd.f32 %v612, %v613
        %v615 = vsel %vm518, %v509, 0.0
        %v616 = vadd.f32 %v614, %v615
        %v617 = vsel %vm518, %v510, 0.0
        %v618 = vsel %vm518, %v512, 0.0
        %v619 = vadd.f32 %v617, %v618
        %v620 = vsel %vm518, %v514, 0.0
        %v621 = vadd.f32 %v619, %v620
        %v622 = vsel %vm518, %v516, 0.0
        %v623 = vadd.f32 %v621, %v622
        %v624 = vsel %vm518, %v511, 0.0
        %v625 = vsel %vm518, %v513, 0.0
        %v626 = vadd.f32 %v624, %v625
        %v627 = vsel %vm518, %v515, 0.0
        %v628 = vadd.f32 %v626, %v627
        %v629 = vsel %vm518, %v517, 0.0
        %v630 = vadd.f32 %v628, %v629
        %v631 = vadd.f32 %v525, 0.0
        %v632 = vadd.f32 %v532, 0.0
        %v633 = vadd.f32 %v539, 0.0
        %v634 = vadd.f32 %v546, 0.0
        %v635 = vadd.f32 %v553, 0.0
        %v636 = vadd.f32 %v560, 0.0
        %v637 = vadd.f32 %v567, 0.0
        %v638 = vadd.f32 %v574, 0.0
        %v639 = vadd.f32 %v581, 0.0
        %v640 = vadd.f32 %v588, 0.0
        %v641 = vadd.f32 %v595, 0.0
        %v642 = vadd.f32 %v602, 0.0
        %v643 = vadd.f32 %v609, 0.0
        %v644 = vadd.f32 %v616, 0.0
        %v645 = vadd.f32 %v623, 0.0
        %v646 = vadd.f32 %v630, 0.0
        %s647 = scalar_lea.vmem %s1, 8
        %v648 = vld [vmem:[%s647] sm:$0xff]
        %v649 = vlaneseq
        %v650 = vshrl.u32 %v649, 7
        %v651 = vsub.s32 0, %v650
        %v652 = vrot.slane %v648, %v651
        %654 = vbcast.lane.b32.xlu0 %v652, 256
        %v655 = vpop.permute.xlu0 %654
        %v656 = vlaneseq
        %v657 = vshrl.u32 %v656, 7
        %v658 = vsub.s32 1, %v657
        %v659 = vrot.slane %v648, %v658
        %661 = vbcast.lane.b32.xlu0 %v659, 256
        %v662 = vpop.permute.xlu0 %661
        %v663 = vlaneseq
        %v664 = vshrl.u32 %v663, 7
        %v665 = vsub.s32 2, %v664
        %v666 = vrot.slane %v648, %v665
        %668 = vbcast.lane.b32.xlu0 %v666, 256
        %v669 = vpop.permute.xlu0 %668
        %v670 = vlaneseq
        %v671 = vshrl.u32 %v670, 7
        %v672 = vsub.s32 3, %v671
        %v673 = vrot.slane %v648, %v672
        %675 = vbcast.lane.b32.xlu0 %v673, 256
        %v676 = vpop.permute.xlu0 %675
        %v677 = vlaneseq
        %v678 = vshrl.u32 %v677, 7
        %v679 = vsub.s32 4, %v678
        %v680 = vrot.slane %v648, %v679
        %682 = vbcast.lane.b32.xlu0 %v680, 256
        %v683 = vpop.permute.xlu0 %682
        %v684 = vlaneseq
        %v685 = vshrl.u32 %v684, 7
        %v686 = vsub.s32 5, %v685
        %v687 = vrot.slane %v648, %v686
        %689 = vbcast.lane.b32.xlu0 %v687, 256
        %v690 = vpop.permute.xlu0 %689
        %v691 = vlaneseq
        %v692 = vshrl.u32 %v691, 7
        %v693 = vsub.s32 6, %v692
        %v694 = vrot.slane %v648, %v693
        %696 = vbcast.lane.b32.xlu0 %v694, 256
        %v697 = vpop.permute.xlu0 %696
        %v698 = vlaneseq
        %v699 = vshrl.u32 %v698, 7
        %v700 = vsub.s32 7, %v699
        %v701 = vrot.slane %v648, %v700
        %703 = vbcast.lane.b32.xlu0 %v701, 256
        %v704 = vpop.permute.xlu0 %703
        %v705 = vlaneseq
        %v706 = vshrl.u32 %v705, 7
        %v707 = vsub.s32 0, %v706
        %v708 = vrot.slane %v655, %v707
        %v709 = vlaneseq
        %v710 = vshrl.u32 %v709, 7
        %v711 = vsub.s32 1, %v710
        %v712 = vrot.slane %v655, %v711
        %v713 = vlaneseq
        %v714 = vshrl.u32 %v713, 7
        %v715 = vsub.s32 2, %v714
        %v716 = vrot.slane %v655, %v715
        %v717 = vlaneseq
        %v718 = vshrl.u32 %v717, 7
        %v719 = vsub.s32 3, %v718
        %v720 = vrot.slane %v655, %v719
        %v721 = vlaneseq
        %v722 = vshrl.u32 %v721, 7
        %v723 = vsub.s32 0, %v722
        %v724 = vrot.slane %v662, %v723
        %v725 = vlaneseq
        %v726 = vshrl.u32 %v725, 7
        %v727 = vsub.s32 1, %v726
        %v728 = vrot.slane %v662, %v727
        %v729 = vlaneseq
        %v730 = vshrl.u32 %v729, 7
        %v731 = vsub.s32 2, %v730
        %v732 = vrot.slane %v662, %v731
        %v733 = vlaneseq
        %v734 = vshrl.u32 %v733, 7
        %v735 = vsub.s32 3, %v734
        %v736 = vrot.slane %v662, %v735
        %v737 = vlaneseq
        %v738 = vshrl.u32 %v737, 7
        %v739 = vsub.s32 0, %v738
        %v740 = vrot.slane %v669, %v739
        %v741 = vlaneseq
        %v742 = vshrl.u32 %v741, 7
        %v743 = vsub.s32 1, %v742
        %v744 = vrot.slane %v669, %v743
        %v745 = vlaneseq
        %v746 = vshrl.u32 %v745, 7
        %v747 = vsub.s32 2, %v746
        %v748 = vrot.slane %v669, %v747
        %v749 = vlaneseq
        %v750 = vshrl.u32 %v749, 7
        %v751 = vsub.s32 3, %v750
        %v752 = vrot.slane %v669, %v751
        %v753 = vlaneseq
        %v754 = vshrl.u32 %v753, 7
        %v755 = vsub.s32 0, %v754
        %v756 = vrot.slane %v676, %v755
        %v757 = vlaneseq
        %v758 = vshrl.u32 %v757, 7
        %v759 = vsub.s32 1, %v758
        %v760 = vrot.slane %v676, %v759
        %v761 = vlaneseq
        %v762 = vshrl.u32 %v761, 7
        %v763 = vsub.s32 2, %v762
        %v764 = vrot.slane %v676, %v763
        %v765 = vlaneseq
        %v766 = vshrl.u32 %v765, 7
        %v767 = vsub.s32 3, %v766
        %v768 = vrot.slane %v676, %v767
        %v769 = vlaneseq
        %v770 = vshrl.u32 %v769, 7
        %v771 = vsub.s32 0, %v770
        %v772 = vrot.slane %v683, %v771
        %v773 = vlaneseq
        %v774 = vshrl.u32 %v773, 7
        %v775 = vsub.s32 1, %v774
        %v776 = vrot.slane %v683, %v775
        %v777 = vlaneseq
        %v778 = vshrl.u32 %v777, 7
        %v779 = vsub.s32 2, %v778
        %v780 = vrot.slane %v683, %v779
        %v781 = vlaneseq
        %v782 = vshrl.u32 %v781, 7
        %v783 = vsub.s32 3, %v782
        %v784 = vrot.slane %v683, %v783
        %v785 = vlaneseq
        %v786 = vshrl.u32 %v785, 7
        %v787 = vsub.s32 0, %v786
        %v788 = vrot.slane %v690, %v787
        %v789 = vlaneseq
        %v790 = vshrl.u32 %v789, 7
        %v791 = vsub.s32 1, %v790
        %v792 = vrot.slane %v690, %v791
        %v793 = vlaneseq
        %v794 = vshrl.u32 %v793, 7
        %v795 = vsub.s32 2, %v794
        %v796 = vrot.slane %v690, %v795
        %v797 = vlaneseq
        %v798 = vshrl.u32 %v797, 7
        %v799 = vsub.s32 3, %v798
        %v800 = vrot.slane %v690, %v799
        %v801 = vlaneseq
        %v802 = vshrl.u32 %v801, 7
        %v803 = vsub.s32 0, %v802
        %v804 = vrot.slane %v697, %v803
        %v805 = vlaneseq
        %v806 = vshrl.u32 %v805, 7
        %v807 = vsub.s32 1, %v806
        %v808 = vrot.slane %v697, %v807
        %v809 = vlaneseq
        %v810 = vshrl.u32 %v809, 7
        %v811 = vsub.s32 2, %v810
        %v812 = vrot.slane %v697, %v811
        %v813 = vlaneseq
        %v814 = vshrl.u32 %v813, 7
        %v815 = vsub.s32 3, %v814
        %v816 = vrot.slane %v697, %v815
        %v817 = vlaneseq
        %v818 = vshrl.u32 %v817, 7
        %v819 = vsub.s32 0, %v818
        %v820 = vrot.slane %v704, %v819
        %v821 = vlaneseq
        %v822 = vshrl.u32 %v821, 7
        %v823 = vsub.s32 1, %v822
        %v824 = vrot.slane %v704, %v823
        %v825 = vlaneseq
        %v826 = vshrl.u32 %v825, 7
        %v827 = vsub.s32 2, %v826
        %v828 = vrot.slane %v704, %v827
        %v829 = vlaneseq
        %v830 = vshrl.u32 %v829, 7
        %v831 = vsub.s32 3, %v830
        %v832 = vrot.slane %v704, %v831
        %v833 = vmul.f32 %v708, %v261
        %v834 = vmul.f32 %v708, %v262
        %v835 = vmul.f32 %v712, %v263
        %v836 = vmul.f32 %v712, %v264
        %v837 = vmul.f32 %v716, %v265
        %v838 = vmul.f32 %v716, %v266
        %v839 = vmul.f32 %v720, %v267
        %v840 = vmul.f32 %v720, %v268
        %v841 = vmul.f32 %v724, %v261
        %v842 = vmul.f32 %v724, %v262
        %v843 = vmul.f32 %v728, %v263
        %v844 = vmul.f32 %v728, %v264
        %v845 = vmul.f32 %v732, %v265
        %v846 = vmul.f32 %v732, %v266
        %v847 = vmul.f32 %v736, %v267
        %v848 = vmul.f32 %v736, %v268
        %v849 = vmul.f32 %v740, %v261
        %v850 = vmul.f32 %v740, %v262
        %v851 = vmul.f32 %v744, %v263
        %v852 = vmul.f32 %v744, %v264
        %v853 = vmul.f32 %v748, %v265
        %v854 = vmul.f32 %v748, %v266
        %v855 = vmul.f32 %v752, %v267
        %v856 = vmul.f32 %v752, %v268
        %v857 = vmul.f32 %v756, %v261
        %v858 = vmul.f32 %v756, %v262
        %v859 = vmul.f32 %v760, %v263
        %v860 = vmul.f32 %v760, %v264
        %v861 = vmul.f32 %v764, %v265
        %v862 = vmul.f32 %v764, %v266
        %v863 = vmul.f32 %v768, %v267
        %v864 = vmul.f32 %v768, %v268
        %v865 = vmul.f32 %v772, %v261
        %v866 = vmul.f32 %v772, %v262
        %v867 = vmul.f32 %v776, %v263
        %v868 = vmul.f32 %v776, %v264
        %v869 = vmul.f32 %v780, %v265
        %v870 = vmul.f32 %v780, %v266
        %v871 = vmul.f32 %v784, %v267
        %v872 = vmul.f32 %v784, %v268
        %v873 = vmul.f32 %v788, %v261
        %v874 = vmul.f32 %v788, %v262
        %v875 = vmul.f32 %v792, %v263
        %v876 = vmul.f32 %v792, %v264
        %v877 = vmul.f32 %v796, %v265
        %v878 = vmul.f32 %v796, %v266
        %v879 = vmul.f32 %v800, %v267
        %v880 = vmul.f32 %v800, %v268
        %v881 = vmul.f32 %v804, %v261
        %v882 = vmul.f32 %v804, %v262
        %v883 = vmul.f32 %v808, %v263
        %v884 = vmul.f32 %v808, %v264
        %v885 = vmul.f32 %v812, %v265
        %v886 = vmul.f32 %v812, %v266
        %v887 = vmul.f32 %v816, %v267
        %v888 = vmul.f32 %v816, %v268
        %v889 = vmul.f32 %v820, %v261
        %v890 = vmul.f32 %v820, %v262
        %v891 = vmul.f32 %v824, %v263
        %v892 = vmul.f32 %v824, %v264
        %v893 = vmul.f32 %v828, %v265
        %v894 = vmul.f32 %v828, %v266
        %v895 = vmul.f32 %v832, %v267
        %v896 = vmul.f32 %v832, %v268
        %vm897 = vcmask 138248
        %v898 = vsel %vm897, %v833, 0.0
        %v899 = vsel %vm897, %v835, 0.0
        %v900 = vadd.f32 %v898, %v899
        %v901 = vsel %vm897, %v837, 0.0
        %v902 = vadd.f32 %v900, %v901
        %v903 = vsel %vm897, %v839, 0.0
        %v904 = vadd.f32 %v902, %v903
        %v905 = vsel %vm897, %v834, 0.0
        %v906 = vsel %vm897, %v836, 0.0
        %v907 = vadd.f32 %v905, %v906
        %v908 = vsel %vm897, %v838, 0.0
        %v909 = vadd.f32 %v907, %v908
        %v910 = vsel %vm897, %v840, 0.0
        %v911 = vadd.f32 %v909, %v910
        %v912 = vsel %vm897, %v841, 0.0
        %v913 = vsel %vm897, %v843, 0.0
        %v914 = vadd.f32 %v912, %v913
        %v915 = vsel %vm897, %v845, 0.0
        %v916 = vadd.f32 %v914, %v915
        %v917 = vsel %vm897, %v847, 0.0
        %v918 = vadd.f32 %v916, %v917
        %v919 = vsel %vm897, %v842, 0.0
        %v920 = vsel %vm897, %v844, 0.0
        %v921 = vadd.f32 %v919, %v920
        %v922 = vsel %vm897, %v846, 0.0
        %v923 = vadd.f32 %v921, %v922
        %v924 = vsel %vm897, %v848, 0.0
        %v925 = vadd.f32 %v923, %v924
        %v926 = vsel %vm897, %v849, 0.0
        %v927 = vsel %vm897, %v851, 0.0
        %v928 = vadd.f32 %v926, %v927
        %v929 = vsel %vm897, %v853, 0.0
        %v930 = vadd.f32 %v928, %v929
        %v931 = vsel %vm897, %v855, 0.0
        %v932 = vadd.f32 %v930, %v931
        %v933 = vsel %vm897, %v850, 0.0
        %v934 = vsel %vm897, %v852, 0.0
        %v935 = vadd.f32 %v933, %v934
        %v936 = vsel %vm897, %v854, 0.0
        %v937 = vadd.f32 %v935, %v936
        %v938 = vsel %vm897, %v856, 0.0
        %v939 = vadd.f32 %v937, %v938
        %v940 = vsel %vm897, %v857, 0.0
        %v941 = vsel %vm897, %v859, 0.0
        %v942 = vadd.f32 %v940, %v941
        %v943 = vsel %vm897, %v861, 0.0
        %v944 = vadd.f32 %v942, %v943
        %v945 = vsel %vm897, %v863, 0.0
        %v946 = vadd.f32 %v944, %v945
        %v947 = vsel %vm897, %v858, 0.0
        %v948 = vsel %vm897, %v860, 0.0
        %v949 = vadd.f32 %v947, %v948
        %v950 = vsel %vm897, %v862, 0.0
        %v951 = vadd.f32 %v949, %v950
        %v952 = vsel %vm897, %v864, 0.0
        %v953 = vadd.f32 %v951, %v952
        %v954 = vsel %vm897, %v865, 0.0
        %v955 = vsel %vm897, %v867, 0.0
        %v956 = vadd.f32 %v954, %v955
        %v957 = vsel %vm897, %v869, 0.0
        %v958 = vadd.f32 %v956, %v957
        %v959 = vsel %vm897, %v871, 0.0
        %v960 = vadd.f32 %v958, %v959
        %v961 = vsel %vm897, %v866, 0.0
        %v962 = vsel %vm897, %v868, 0.0
        %v963 = vadd.f32 %v961, %v962
        %v964 = vsel %vm897, %v870, 0.0
        %v965 = vadd.f32 %v963, %v964
        %v966 = vsel %vm897, %v872, 0.0
        %v967 = vadd.f32 %v965, %v966
        %v968 = vsel %vm897, %v873, 0.0
        %v969 = vsel %vm897, %v875, 0.0
        %v970 = vadd.f32 %v968, %v969
        %v971 = vsel %vm897, %v877, 0.0
        %v972 = vadd.f32 %v970, %v971
        %v973 = vsel %vm897, %v879, 0.0
        %v974 = vadd.f32 %v972, %v973
        %v975 = vsel %vm897, %v874, 0.0
        %v976 = vsel %vm897, %v876, 0.0
        %v977 = vadd.f32 %v975, %v976
        %v978 = vsel %vm897, %v878, 0.0
        %v979 = vadd.f32 %v977, %v978
        %v980 = vsel %vm897, %v880, 0.0
        %v981 = vadd.f32 %v979, %v980
        %v982 = vsel %vm897, %v881, 0.0
        %v983 = vsel %vm897, %v883, 0.0
        %v984 = vadd.f32 %v982, %v983
        %v985 = vsel %vm897, %v885, 0.0
        %v986 = vadd.f32 %v984, %v985
        %v987 = vsel %vm897, %v887, 0.0
        %v988 = vadd.f32 %v986, %v987
        %v989 = vsel %vm897, %v882, 0.0
        %v990 = vsel %vm897, %v884, 0.0
        %v991 = vadd.f32 %v989, %v990
        %v992 = vsel %vm897, %v886, 0.0
        %v993 = vadd.f32 %v991, %v992
        %v994 = vsel %vm897, %v888, 0.0
        %v995 = vadd.f32 %v993, %v994
        %v996 = vsel %vm897, %v889, 0.0
        %v997 = vsel %vm897, %v891, 0.0
        %v998 = vadd.f32 %v996, %v997
        %v999 = vsel %vm897, %v893, 0.0
        %v1000 = vadd.f32 %v998, %v999
        %v1001 = vsel %vm897, %v895, 0.0
        %v1002 = vadd.f32 %v1000, %v1001
        %v1003 = vsel %vm897, %v890, 0.0
        %v1004 = vsel %vm897, %v892, 0.0
        %v1005 = vadd.f32 %v1003, %v1004
        %v1006 = vsel %vm897, %v894, 0.0
        %v1007 = vadd.f32 %v1005, %v1006
        %v1008 = vsel %vm897, %v896, 0.0
        %v1009 = vadd.f32 %v1007, %v1008
        %1026 = vrot.lane.b32.xlu0 %v904, 127
        %v1027 = vpop.permute.xlu0 %1026
        %1028 = vrot.lane.b32.xlu0 %v911, 127
        %v1029 = vpop.permute.xlu0 %1028
        %1030 = vrot.lane.b32.xlu0 %v918, 127
        %v1031 = vpop.permute.xlu0 %1030
        %1032 = vrot.lane.b32.xlu0 %v925, 127
        %v1033 = vpop.permute.xlu0 %1032
        %1034 = vrot.lane.b32.xlu0 %v932, 127
        %v1035 = vpop.permute.xlu0 %1034
        %1036 = vrot.lane.b32.xlu0 %v939, 127
        %v1037 = vpop.permute.xlu0 %1036
        %1038 = vrot.lane.b32.xlu0 %v946, 127
        %v1039 = vpop.permute.xlu0 %1038
        %1040 = vrot.lane.b32.xlu0 %v953, 127
        %v1041 = vpop.permute.xlu0 %1040
        %1042 = vrot.lane.b32.xlu0 %v960, 127
        %v1043 = vpop.permute.xlu0 %1042
        %1044 = vrot.lane.b32.xlu0 %v967, 127
        %v1045 = vpop.permute.xlu0 %1044
        %1046 = vrot.lane.b32.xlu0 %v974, 127
        %v1047 = vpop.permute.xlu0 %1046
        %1048 = vrot.lane.b32.xlu0 %v981, 127
        %v1049 = vpop.permute.xlu0 %1048
        %1050 = vrot.lane.b32.xlu0 %v988, 127
        %v1051 = vpop.permute.xlu0 %1050
        %1052 = vrot.lane.b32.xlu0 %v995, 127
        %v1053 = vpop.permute.xlu0 %1052
        %1054 = vrot.lane.b32.xlu0 %v1002, 127
        %v1055 = vpop.permute.xlu0 %1054
        %1056 = vrot.lane.b32.xlu0 %v1009, 127
        %v1057 = vpop.permute.xlu0 %1056
        %v1074 = vadd.f32 %v631, %v1027
        %v1075 = vadd.f32 %v632, %v1029
        %v1076 = vadd.f32 %v633, %v1031
        %v1077 = vadd.f32 %v634, %v1033
        %v1078 = vadd.f32 %v635, %v1035
        %v1079 = vadd.f32 %v636, %v1037
        %v1080 = vadd.f32 %v637, %v1039
        %v1081 = vadd.f32 %v638, %v1041
        %v1082 = vadd.f32 %v639, %v1043
        %v1083 = vadd.f32 %v640, %v1045
        %v1084 = vadd.f32 %v641, %v1047
        %v1085 = vadd.f32 %v642, %v1049
        %v1086 = vadd.f32 %v643, %v1051
        %v1087 = vadd.f32 %v644, %v1053
        %v1088 = vadd.f32 %v645, %v1055
        %v1089 = vadd.f32 %v646, %v1057
        %s1090 = scalar_lea.vmem %s1, 16
        %v1091 = vld [vmem:[%s1090] sm:$0xff]
        %v1092 = vlaneseq
        %v1093 = vshrl.u32 %v1092, 7
        %v1094 = vsub.s32 0, %v1093
        %v1095 = vrot.slane %v1091, %v1094
        %1097 = vbcast.lane.b32.xlu0 %v1095, 256
        %v1098 = vpop.permute.xlu0 %1097
        %v1099 = vlaneseq
        %v1100 = vshrl.u32 %v1099, 7
        %v1101 = vsub.s32 1, %v1100
        %v1102 = vrot.slane %v1091, %v1101
        %1104 = vbcast.lane.b32.xlu0 %v1102, 256
        %v1105 = vpop.permute.xlu0 %1104
        %v1106 = vlaneseq
        %v1107 = vshrl.u32 %v1106, 7
        %v1108 = vsub.s32 2, %v1107
        %v1109 = vrot.slane %v1091, %v1108
        %1111 = vbcast.lane.b32.xlu0 %v1109, 256
        %v1112 = vpop.permute.xlu0 %1111
        %v1113 = vlaneseq
        %v1114 = vshrl.u32 %v1113, 7
        %v1115 = vsub.s32 3, %v1114
        %v1116 = vrot.slane %v1091, %v1115
        %1118 = vbcast.lane.b32.xlu0 %v1116, 256
        %v1119 = vpop.permute.xlu0 %1118
        %v1120 = vlaneseq
        %v1121 = vshrl.u32 %v1120, 7
        %v1122 = vsub.s32 4, %v1121
        %v1123 = vrot.slane %v1091, %v1122
        %1125 = vbcast.lane.b32.xlu0 %v1123, 256
        %v1126 = vpop.permute.xlu0 %1125
        %v1127 = vlaneseq
        %v1128 = vshrl.u32 %v1127, 7
        %v1129 = vsub.s32 5, %v1128
        %v1130 = vrot.slane %v1091, %v1129
        %1132 = vbcast.lane.b32.xlu0 %v1130, 256
        %v1133 = vpop.permute.xlu0 %1132
        %v1134 = vlaneseq
        %v1135 = vshrl.u32 %v1134, 7
        %v1136 = vsub.s32 6, %v1135
        %v1137 = vrot.slane %v1091, %v1136
        %1139 = vbcast.lane.b32.xlu0 %v1137, 256
        %v1140 = vpop.permute.xlu0 %1139
        %v1141 = vlaneseq
        %v1142 = vshrl.u32 %v1141, 7
        %v1143 = vsub.s32 7, %v1142
        %v1144 = vrot.slane %v1091, %v1143
        %1146 = vbcast.lane.b32.xlu0 %v1144, 256
        %v1147 = vpop.permute.xlu0 %1146
        %v1148 = vlaneseq
        %v1149 = vshrl.u32 %v1148, 7
        %v1150 = vsub.s32 0, %v1149
        %v1151 = vrot.slane %v1098, %v1150
        %v1152 = vlaneseq
        %v1153 = vshrl.u32 %v1152, 7
        %v1154 = vsub.s32 1, %v1153
        %v1155 = vrot.slane %v1098, %v1154
        %v1156 = vlaneseq
        %v1157 = vshrl.u32 %v1156, 7
        %v1158 = vsub.s32 2, %v1157
        %v1159 = vrot.slane %v1098, %v1158
        %v1160 = vlaneseq
        %v1161 = vshrl.u32 %v1160, 7
        %v1162 = vsub.s32 3, %v1161
        %v1163 = vrot.slane %v1098, %v1162
        %v1164 = vlaneseq
        %v1165 = vshrl.u32 %v1164, 7
        %v1166 = vsub.s32 0, %v1165
        %v1167 = vrot.slane %v1105, %v1166
        %v1168 = vlaneseq
        %v1169 = vshrl.u32 %v1168, 7
        %v1170 = vsub.s32 1, %v1169
        %v1171 = vrot.slane %v1105, %v1170
        %v1172 = vlaneseq
        %v1173 = vshrl.u32 %v1172, 7
        %v1174 = vsub.s32 2, %v1173
        %v1175 = vrot.slane %v1105, %v1174
        %v1176 = vlaneseq
        %v1177 = vshrl.u32 %v1176, 7
        %v1178 = vsub.s32 3, %v1177
        %v1179 = vrot.slane %v1105, %v1178
        %v1180 = vlaneseq
        %v1181 = vshrl.u32 %v1180, 7
        %v1182 = vsub.s32 0, %v1181
        %v1183 = vrot.slane %v1112, %v1182
        %v1184 = vlaneseq
        %v1185 = vshrl.u32 %v1184, 7
        %v1186 = vsub.s32 1, %v1185
        %v1187 = vrot.slane %v1112, %v1186
        %v1188 = vlaneseq
        %v1189 = vshrl.u32 %v1188, 7
        %v1190 = vsub.s32 2, %v1189
        %v1191 = vrot.slane %v1112, %v1190
        %v1192 = vlaneseq
        %v1193 = vshrl.u32 %v1192, 7
        %v1194 = vsub.s32 3, %v1193
        %v1195 = vrot.slane %v1112, %v1194
        %v1196 = vlaneseq
        %v1197 = vshrl.u32 %v1196, 7
        %v1198 = vsub.s32 0, %v1197
        %v1199 = vrot.slane %v1119, %v1198
        %v1200 = vlaneseq
        %v1201 = vshrl.u32 %v1200, 7
        %v1202 = vsub.s32 1, %v1201
        %v1203 = vrot.slane %v1119, %v1202
        %v1204 = vlaneseq
        %v1205 = vshrl.u32 %v1204, 7
        %v1206 = vsub.s32 2, %v1205
        %v1207 = vrot.slane %v1119, %v1206
        %v1208 = vlaneseq
        %v1209 = vshrl.u32 %v1208, 7
        %v1210 = vsub.s32 3, %v1209
        %v1211 = vrot.slane %v1119, %v1210
        %v1212 = vlaneseq
        %v1213 = vshrl.u32 %v1212, 7
        %v1214 = vsub.s32 0, %v1213
        %v1215 = vrot.slane %v1126, %v1214
        %v1216 = vlaneseq
        %v1217 = vshrl.u32 %v1216, 7
        %v1218 = vsub.s32 1, %v1217
        %v1219 = vrot.slane %v1126, %v1218
        %v1220 = vlaneseq
        %v1221 = vshrl.u32 %v1220, 7
        %v1222 = vsub.s32 2, %v1221
        %v1223 = vrot.slane %v1126, %v1222
        %v1224 = vlaneseq
        %v1225 = vshrl.u32 %v1224, 7
        %v1226 = vsub.s32 3, %v1225
        %v1227 = vrot.slane %v1126, %v1226
        %v1228 = vlaneseq
        %v1229 = vshrl.u32 %v1228, 7
        %v1230 = vsub.s32 0, %v1229
        %v1231 = vrot.slane %v1133, %v1230
        %v1232 = vlaneseq
        %v1233 = vshrl.u32 %v1232, 7
        %v1234 = vsub.s32 1, %v1233
        %v1235 = vrot.slane %v1133, %v1234
        %v1236 = vlaneseq
        %v1237 = vshrl.u32 %v1236, 7
        %v1238 = vsub.s32 2, %v1237
        %v1239 = vrot.slane %v1133, %v1238
        %v1240 = vlaneseq
        %v1241 = vshrl.u32 %v1240, 7
        %v1242 = vsub.s32 3, %v1241
        %v1243 = vrot.slane %v1133, %v1242
        %v1244 = vlaneseq
        %v1245 = vshrl.u32 %v1244, 7
        %v1246 = vsub.s32 0, %v1245
        %v1247 = vrot.slane %v1140, %v1246
        %v1248 = vlaneseq
        %v1249 = vshrl.u32 %v1248, 7
        %v1250 = vsub.s32 1, %v1249
        %v1251 = vrot.slane %v1140, %v1250
        %v1252 = vlaneseq
        %v1253 = vshrl.u32 %v1252, 7
        %v1254 = vsub.s32 2, %v1253
        %v1255 = vrot.slane %v1140, %v1254
        %v1256 = vlaneseq
        %v1257 = vshrl.u32 %v1256, 7
        %v1258 = vsub.s32 3, %v1257
        %v1259 = vrot.slane %v1140, %v1258
        %v1260 = vlaneseq
        %v1261 = vshrl.u32 %v1260, 7
        %v1262 = vsub.s32 0, %v1261
        %v1263 = vrot.slane %v1147, %v1262
        %v1264 = vlaneseq
        %v1265 = vshrl.u32 %v1264, 7
        %v1266 = vsub.s32 1, %v1265
        %v1267 = vrot.slane %v1147, %v1266
        %v1268 = vlaneseq
        %v1269 = vshrl.u32 %v1268, 7
        %v1270 = vsub.s32 2, %v1269
        %v1271 = vrot.slane %v1147, %v1270
        %v1272 = vlaneseq
        %v1273 = vshrl.u32 %v1272, 7
        %v1274 = vsub.s32 3, %v1273
        %v1275 = vrot.slane %v1147, %v1274
        %v1276 = vmul.f32 %v1151, %v261
        %v1277 = vmul.f32 %v1151, %v262
        %v1278 = vmul.f32 %v1155, %v263
        %v1279 = vmul.f32 %v1155, %v264
        %v1280 = vmul.f32 %v1159, %v265
        %v1281 = vmul.f32 %v1159, %v266
        %v1282 = vmul.f32 %v1163, %v267
        %v1283 = vmul.f32 %v1163, %v268
        %v1284 = vmul.f32 %v1167, %v261
        %v1285 = vmul.f32 %v1167, %v262
        %v1286 = vmul.f32 %v1171, %v263
        %v1287 = vmul.f32 %v1171, %v264
        %v1288 = vmul.f32 %v1175, %v265
        %v1289 = vmul.f32 %v1175, %v266
        %v1290 = vmul.f32 %v1179, %v267
        %v1291 = vmul.f32 %v1179, %v268
        %v1292 = vmul.f32 %v1183, %v261
        %v1293 = vmul.f32 %v1183, %v262
        %v1294 = vmul.f32 %v1187, %v263
        %v1295 = vmul.f32 %v1187, %v264
        %v1296 = vmul.f32 %v1191, %v265
        %v1297 = vmul.f32 %v1191, %v266
        %v1298 = vmul.f32 %v1195, %v267
        %v1299 = vmul.f32 %v1195, %v268
        %v1300 = vmul.f32 %v1199, %v261
        %v1301 = vmul.f32 %v1199, %v262
        %v1302 = vmul.f32 %v1203, %v263
        %v1303 = vmul.f32 %v1203, %v264
        %v1304 = vmul.f32 %v1207, %v265
        %v1305 = vmul.f32 %v1207, %v266
        %v1306 = vmul.f32 %v1211, %v267
        %v1307 = vmul.f32 %v1211, %v268
        %v1308 = vmul.f32 %v1215, %v261
        %v1309 = vmul.f32 %v1215, %v262
        %v1310 = vmul.f32 %v1219, %v263
        %v1311 = vmul.f32 %v1219, %v264
        %v1312 = vmul.f32 %v1223, %v265
        %v1313 = vmul.f32 %v1223, %v266
        %v1314 = vmul.f32 %v1227, %v267
        %v1315 = vmul.f32 %v1227, %v268
        %v1316 = vmul.f32 %v1231, %v261
        %v1317 = vmul.f32 %v1231, %v262
        %v1318 = vmul.f32 %v1235, %v263
        %v1319 = vmul.f32 %v1235, %v264
        %v1320 = vmul.f32 %v1239, %v265
        %v1321 = vmul.f32 %v1239, %v266
        %v1322 = vmul.f32 %v1243, %v267
        %v1323 = vmul.f32 %v1243, %v268
        %v1324 = vmul.f32 %v1247, %v261
        %v1325 = vmul.f32 %v1247, %v262
        %v1326 = vmul.f32 %v1251, %v263
        %v1327 = vmul.f32 %v1251, %v264
        %v1328 = vmul.f32 %v1255, %v265
        %v1329 = vmul.f32 %v1255, %v266
        %v1330 = vmul.f32 %v1259, %v267
        %v1331 = vmul.f32 %v1259, %v268
        %v1332 = vmul.f32 %v1263, %v261
        %v1333 = vmul.f32 %v1263, %v262
        %v1334 = vmul.f32 %v1267, %v263
        %v1335 = vmul.f32 %v1267, %v264
        %v1336 = vmul.f32 %v1271, %v265
        %v1337 = vmul.f32 %v1271, %v266
        %v1338 = vmul.f32 %v1275, %v267
        %v1339 = vmul.f32 %v1275, %v268
        %vm1340 = vcmask 146448
        %v1341 = vsel %vm1340, %v1276, 0.0
        %v1342 = vsel %vm1340, %v1278, 0.0
        %v1343 = vadd.f32 %v1341, %v1342
        %v1344 = vsel %vm1340, %v1280, 0.0
        %v1345 = vadd.f32 %v1343, %v1344
        %v1346 = vsel %vm1340, %v1282, 0.0
        %v1347 = vadd.f32 %v1345, %v1346
        %v1348 = vsel %vm1340, %v1277, 0.0
        %v1349 = vsel %vm1340, %v1279, 0.0
        %v1350 = vadd.f32 %v1348, %v1349
        %v1351 = vsel %vm1340, %v1281, 0.0
        %v1352 = vadd.f32 %v1350, %v1351
        %v1353 = vsel %vm1340, %v1283, 0.0
        %v1354 = vadd.f32 %v1352, %v1353
        %v1355 = vsel %vm1340, %v1284, 0.0
        %v1356 = vsel %vm1340, %v1286, 0.0
        %v1357 = vadd.f32 %v1355, %v1356
        %v1358 = vsel %vm1340, %v1288, 0.0
        %v1359 = vadd.f32 %v1357, %v1358
        %v1360 = vsel %vm1340, %v1290, 0.0
        %v1361 = vadd.f32 %v1359, %v1360
        %v1362 = vsel %vm1340, %v1285, 0.0
        %v1363 = vsel %vm1340, %v1287, 0.0
        %v1364 = vadd.f32 %v1362, %v1363
        %v1365 = vsel %vm1340, %v1289, 0.0
        %v1366 = vadd.f32 %v1364, %v1365
        %v1367 = vsel %vm1340, %v1291, 0.0
        %v1368 = vadd.f32 %v1366, %v1367
        %v1369 = vsel %vm1340, %v1292, 0.0
        %v1370 = vsel %vm1340, %v1294, 0.0
        %v1371 = vadd.f32 %v1369, %v1370
        %v1372 = vsel %vm1340, %v1296, 0.0
        %v1373 = vadd.f32 %v1371, %v1372
        %v1374 = vsel %vm1340, %v1298, 0.0
        %v1375 = vadd.f32 %v1373, %v1374
        %v1376 = vsel %vm1340, %v1293, 0.0
        %v1377 = vsel %vm1340, %v1295, 0.0
        %v1378 = vadd.f32 %v1376, %v1377
        %v1379 = vsel %vm1340, %v1297, 0.0
        %v1380 = vadd.f32 %v1378, %v1379
        %v1381 = vsel %vm1340, %v1299, 0.0
        %v1382 = vadd.f32 %v1380, %v1381
        %v1383 = vsel %vm1340, %v1300, 0.0
        %v1384 = vsel %vm1340, %v1302, 0.0
        %v1385 = vadd.f32 %v1383, %v1384
        %v1386 = vsel %vm1340, %v1304, 0.0
        %v1387 = vadd.f32 %v1385, %v1386
        %v1388 = vsel %vm1340, %v1306, 0.0
        %v1389 = vadd.f32 %v1387, %v1388
        %v1390 = vsel %vm1340, %v1301, 0.0
        %v1391 = vsel %vm1340, %v1303, 0.0
        %v1392 = vadd.f32 %v1390, %v1391
        %v1393 = vsel %vm1340, %v1305, 0.0
        %v1394 = vadd.f32 %v1392, %v1393
        %v1395 = vsel %vm1340, %v1307, 0.0
        %v1396 = vadd.f32 %v1394, %v1395
        %v1397 = vsel %vm1340, %v1308, 0.0
        %v1398 = vsel %vm1340, %v1310, 0.0
        %v1399 = vadd.f32 %v1397, %v1398
        %v1400 = vsel %vm1340, %v1312, 0.0
        %v1401 = vadd.f32 %v1399, %v1400
        %v1402 = vsel %vm1340, %v1314, 0.0
        %v1403 = vadd.f32 %v1401, %v1402
        %v1404 = vsel %vm1340, %v1309, 0.0
        %v1405 = vsel %vm1340, %v1311, 0.0
        %v1406 = vadd.f32 %v1404, %v1405
        %v1407 = vsel %vm1340, %v1313, 0.0
        %v1408 = vadd.f32 %v1406, %v1407
        %v1409 = vsel %vm1340, %v1315, 0.0
        %v1410 = vadd.f32 %v1408, %v1409
        %v1411 = vsel %vm1340, %v1316, 0.0
        %v1412 = vsel %vm1340, %v1318, 0.0
        %v1413 = vadd.f32 %v1411, %v1412
        %v1414 = vsel %vm1340, %v1320, 0.0
        %v1415 = vadd.f32 %v1413, %v1414
        %v1416 = vsel %vm1340, %v1322, 0.0
        %v1417 = vadd.f32 %v1415, %v1416
        %v1418 = vsel %vm1340, %v1317, 0.0
        %v1419 = vsel %vm1340, %v1319, 0.0
        %v1420 = vadd.f32 %v1418, %v1419
        %v1421 = vsel %vm1340, %v1321, 0.0
        %v1422 = vadd.f32 %v1420, %v1421
        %v1423 = vsel %vm1340, %v1323, 0.0
        %v1424 = vadd.f32 %v1422, %v1423
        %v1425 = vsel %vm1340, %v1324, 0.0
        %v1426 = vsel %vm1340, %v1326, 0.0
        %v1427 = vadd.f32 %v1425, %v1426
        %v1428 = vsel %vm1340, %v1328, 0.0
        %v1429 = vadd.f32 %v1427, %v1428
        %v1430 = vsel %vm1340, %v1330, 0.0
        %v1431 = vadd.f32 %v1429, %v1430
        %v1432 = vsel %vm1340, %v1325, 0.0
        %v1433 = vsel %vm1340, %v1327, 0.0
        %v1434 = vadd.f32 %v1432, %v1433
        %v1435 = vsel %vm1340, %v1329, 0.0
        %v1436 = vadd.f32 %v1434, %v1435
        %v1437 = vsel %vm1340, %v1331, 0.0
        %v1438 = vadd.f32 %v1436, %v1437
        %v1439 = vsel %vm1340, %v1332, 0.0
        %v1440 = vsel %vm1340, %v1334, 0.0
        %v1441 = vadd.f32 %v1439, %v1440
        %v1442 = vsel %vm1340, %v1336, 0.0
        %v1443 = vadd.f32 %v1441, %v1442
        %v1444 = vsel %vm1340, %v1338, 0.0
        %v1445 = vadd.f32 %v1443, %v1444
        %v1446 = vsel %vm1340, %v1333, 0.0
        %v1447 = vsel %vm1340, %v1335, 0.0
        %v1448 = vadd.f32 %v1446, %v1447
        %v1449 = vsel %vm1340, %v1337, 0.0
        %v1450 = vadd.f32 %v1448, %v1449
        %v1451 = vsel %vm1340, %v1339, 0.0
        %v1452 = vadd.f32 %v1450, %v1451
        %1469 = vrot.lane.b32.xlu0 %v1347, 126
        %v1470 = vpop.permute.xlu0 %1469
        %1471 = vrot.lane.b32.xlu0 %v1354, 126
        %v1472 = vpop.permute.xlu0 %1471
        %1473 = vrot.lane.b32.xlu0 %v1361, 126
        %v1474 = vpop.permute.xlu0 %1473
        %1475 = vrot.lane.b32.xlu0 %v1368, 126
        %v1476 = vpop.permute.xlu0 %1475
        %1477 = vrot.lane.b32.xlu0 %v1375, 126
        %v1478 = vpop.permute.xlu0 %1477
        %1479 = vrot.lane.b32.xlu0 %v1382, 126
        %v1480 = vpop.permute.xlu0 %1479
        %1481 = vrot.lane.b32.xlu0 %v1389, 126
        %v1482 = vpop.permute.xlu0 %1481
        %1483 = vrot.lane.b32.xlu0 %v1396, 126
        %v1484 = vpop.permute.xlu0 %1483
        %1485 = vrot.lane.b32.xlu0 %v1403, 126
        %v1486 = vpop.permute.xlu0 %1485
        %1487 = vrot.lane.b32.xlu0 %v1410, 126
        %v1488 = vpop.permute.xlu0 %1487
        %1489 = vrot.lane.b32.xlu0 %v1417, 126
        %v1490 = vpop.permute.xlu0 %1489
        %1491 = vrot.lane.b32.xlu0 %v1424, 126
        %v1492 = vpop.permute.xlu0 %1491
        %1493 = vrot.lane.b32.xlu0 %v1431, 126
        %v1494 = vpop.permute.xlu0 %1493
        %1495 = vrot.lane.b32.xlu0 %v1438, 126
        %v1496 = vpop.permute.xlu0 %1495
        %1497 = vrot.lane.b32.xlu0 %v1445, 126
        %v1498 = vpop.permute.xlu0 %1497
        %1499 = vrot.lane.b32.xlu0 %v1452, 126
        %v1500 = vpop.permute.xlu0 %1499
        %v1517 = vadd.f32 %v1074, %v1470
        %v1518 = vadd.f32 %v1075, %v1472
        %v1519 = vadd.f32 %v1076, %v1474
        %v1520 = vadd.f32 %v1077, %v1476
        %v1521 = vadd.f32 %v1078, %v1478
        %v1522 = vadd.f32 %v1079, %v1480
        %v1523 = vadd.f32 %v1080, %v1482
        %v1524 = vadd.f32 %v1081, %v1484
        %v1525 = vadd.f32 %v1082, %v1486
        %v1526 = vadd.f32 %v1083, %v1488
        %v1527 = vadd.f32 %v1084, %v1490
        %v1528 = vadd.f32 %v1085, %v1492
        %v1529 = vadd.f32 %v1086, %v1494
        %v1530 = vadd.f32 %v1087, %v1496
        %v1531 = vadd.f32 %v1088, %v1498
        %v1532 = vadd.f32 %v1089, %v1500
        %v1533 = vld [vmem:[%s256 + $0x1] sm:$0xff]
        %v1534 = vld [vmem:[%s256 + $0x9] sm:$0xff]
        %v1535 = vld [vmem:[%s256 + $0x19] sm:$0xff]
        %v1536 = vld [vmem:[%s256 + $0x21] sm:$0xff]
        %v1537 = vld [vmem:[%s256 + $0x31] sm:$0xff]
        %v1538 = vld [vmem:[%s256 + $0x39] sm:$0xff]
        %v1539 = vld [vmem:[%s256 + $0x49] sm:$0xff]
        %v1540 = vld [vmem:[%s256 + $0x51] sm:$0xff]
        %s1541 = scalar_lea.vmem %s1, 24
        %v1542 = vld [vmem:[%s1541] sm:$0xff]
        %v1543 = vlaneseq
        %v1544 = vshrl.u32 %v1543, 7
        %v1545 = vsub.s32 0, %v1544
        %v1546 = vrot.slane %v1542, %v1545
        %1548 = vbcast.lane.b32.xlu0 %v1546, 256
        %v1549 = vpop.permute.xlu0 %1548
        %v1550 = vlaneseq
        %v1551 = vshrl.u32 %v1550, 7
        %v1552 = vsub.s32 1, %v1551
        %v1553 = vrot.slane %v1542, %v1552
        %1555 = vbcast.lane.b32.xlu0 %v1553, 256
        %v1556 = vpop.permute.xlu0 %1555
        %v1557 = vlaneseq
        %v1558 = vshrl.u32 %v1557, 7
        %v1559 = vsub.s32 2, %v1558
        %v1560 = vrot.slane %v1542, %v1559
        %1562 = vbcast.lane.b32.xlu0 %v1560, 256
        %v1563 = vpop.permute.xlu0 %1562
        %v1564 = vlaneseq
        %v1565 = vshrl.u32 %v1564, 7
        %v1566 = vsub.s32 3, %v1565
        %v1567 = vrot.slane %v1542, %v1566
        %1569 = vbcast.lane.b32.xlu0 %v1567, 256
        %v1570 = vpop.permute.xlu0 %1569
        %v1571 = vlaneseq
        %v1572 = vshrl.u32 %v1571, 7
        %v1573 = vsub.s32 4, %v1572
        %v1574 = vrot.slane %v1542, %v1573
        %1576 = vbcast.lane.b32.xlu0 %v1574, 256
        %v1577 = vpop.permute.xlu0 %1576
        %v1578 = vlaneseq
        %v1579 = vshrl.u32 %v1578, 7
        %v1580 = vsub.s32 5, %v1579
        %v1581 = vrot.slane %v1542, %v1580
        %1583 = vbcast.lane.b32.xlu0 %v1581, 256
        %v1584 = vpop.permute.xlu0 %1583
        %v1585 = vlaneseq
        %v1586 = vshrl.u32 %v1585, 7
        %v1587 = vsub.s32 6, %v1586
        %v1588 = vrot.slane %v1542, %v1587
        %1590 = vbcast.lane.b32.xlu0 %v1588, 256
        %v1591 = vpop.permute.xlu0 %1590
        %v1592 = vlaneseq
        %v1593 = vshrl.u32 %v1592, 7
        %v1594 = vsub.s32 7, %v1593
        %v1595 = vrot.slane %v1542, %v1594
        %1597 = vbcast.lane.b32.xlu0 %v1595, 256
        %v1598 = vpop.permute.xlu0 %1597
        %v1599 = vlaneseq
        %v1600 = vshrl.u32 %v1599, 7
        %v1601 = vsub.s32 0, %v1600
        %v1602 = vrot.slane %v1549, %v1601
        %v1603 = vlaneseq
        %v1604 = vshrl.u32 %v1603, 7
        %v1605 = vsub.s32 1, %v1604
        %v1606 = vrot.slane %v1549, %v1605
        %v1607 = vlaneseq
        %v1608 = vshrl.u32 %v1607, 7
        %v1609 = vsub.s32 2, %v1608
        %v1610 = vrot.slane %v1549, %v1609
        %v1611 = vlaneseq
        %v1612 = vshrl.u32 %v1611, 7
        %v1613 = vsub.s32 3, %v1612
        %v1614 = vrot.slane %v1549, %v1613
        %v1615 = vlaneseq
        %v1616 = vshrl.u32 %v1615, 7
        %v1617 = vsub.s32 0, %v1616
        %v1618 = vrot.slane %v1556, %v1617
        %v1619 = vlaneseq
        %v1620 = vshrl.u32 %v1619, 7
        %v1621 = vsub.s32 1, %v1620
        %v1622 = vrot.slane %v1556, %v1621
        %v1623 = vlaneseq
        %v1624 = vshrl.u32 %v1623, 7
        %v1625 = vsub.s32 2, %v1624
        %v1626 = vrot.slane %v1556, %v1625
        %v1627 = vlaneseq
        %v1628 = vshrl.u32 %v1627, 7
        %v1629 = vsub.s32 3, %v1628
        %v1630 = vrot.slane %v1556, %v1629
        %v1631 = vlaneseq
        %v1632 = vshrl.u32 %v1631, 7
        %v1633 = vsub.s32 0, %v1632
        %v1634 = vrot.slane %v1563, %v1633
        %v1635 = vlaneseq
        %v1636 = vshrl.u32 %v1635, 7
        %v1637 = vsub.s32 1, %v1636
        %v1638 = vrot.slane %v1563, %v1637
        %v1639 = vlaneseq
        %v1640 = vshrl.u32 %v1639, 7
        %v1641 = vsub.s32 2, %v1640
        %v1642 = vrot.slane %v1563, %v1641
        %v1643 = vlaneseq
        %v1644 = vshrl.u32 %v1643, 7
        %v1645 = vsub.s32 3, %v1644
        %v1646 = vrot.slane %v1563, %v1645
        %v1647 = vlaneseq
        %v1648 = vshrl.u32 %v1647, 7
        %v1649 = vsub.s32 0, %v1648
        %v1650 = vrot.slane %v1570, %v1649
        %v1651 = vlaneseq
        %v1652 = vshrl.u32 %v1651, 7
        %v1653 = vsub.s32 1, %v1652
        %v1654 = vrot.slane %v1570, %v1653
        %v1655 = vlaneseq
        %v1656 = vshrl.u32 %v1655, 7
        %v1657 = vsub.s32 2, %v1656
        %v1658 = vrot.slane %v1570, %v1657
        %v1659 = vlaneseq
        %v1660 = vshrl.u32 %v1659, 7
        %v1661 = vsub.s32 3, %v1660
        %v1662 = vrot.slane %v1570, %v1661
        %v1663 = vlaneseq
        %v1664 = vshrl.u32 %v1663, 7
        %v1665 = vsub.s32 0, %v1664
        %v1666 = vrot.slane %v1577, %v1665
        %v1667 = vlaneseq
        %v1668 = vshrl.u32 %v1667, 7
        %v1669 = vsub.s32 1, %v1668
        %v1670 = vrot.slane %v1577, %v1669
        %v1671 = vlaneseq
        %v1672 = vshrl.u32 %v1671, 7
        %v1673 = vsub.s32 2, %v1672
        %v1674 = vrot.slane %v1577, %v1673
        %v1675 = vlaneseq
        %v1676 = vshrl.u32 %v1675, 7
        %v1677 = vsub.s32 3, %v1676
        %v1678 = vrot.slane %v1577, %v1677
        %v1679 = vlaneseq
        %v1680 = vshrl.u32 %v1679, 7
        %v1681 = vsub.s32 0, %v1680
        %v1682 = vrot.slane %v1584, %v1681
        %v1683 = vlaneseq
        %v1684 = vshrl.u32 %v1683, 7
        %v1685 = vsub.s32 1, %v1684
        %v1686 = vrot.slane %v1584, %v1685
        %v1687 = vlaneseq
        %v1688 = vshrl.u32 %v1687, 7
        %v1689 = vsub.s32 2, %v1688
        %v1690 = vrot.slane %v1584, %v1689
        %v1691 = vlaneseq
        %v1692 = vshrl.u32 %v1691, 7
        %v1693 = vsub.s32 3, %v1692
        %v1694 = vrot.slane %v1584, %v1693
        %v1695 = vlaneseq
        %v1696 = vshrl.u32 %v1695, 7
        %v1697 = vsub.s32 0, %v1696
        %v1698 = vrot.slane %v1591, %v1697
        %v1699 = vlaneseq
        %v1700 = vshrl.u32 %v1699, 7
        %v1701 = vsub.s32 1, %v1700
        %v1702 = vrot.slane %v1591, %v1701
        %v1703 = vlaneseq
        %v1704 = vshrl.u32 %v1703, 7
        %v1705 = vsub.s32 2, %v1704
        %v1706 = vrot.slane %v1591, %v1705
        %v1707 = vlaneseq
        %v1708 = vshrl.u32 %v1707, 7
        %v1709 = vsub.s32 3, %v1708
        %v1710 = vrot.slane %v1591, %v1709
        %v1711 = vlaneseq
        %v1712 = vshrl.u32 %v1711, 7
        %v1713 = vsub.s32 0, %v1712
        %v1714 = vrot.slane %v1598, %v1713
        %v1715 = vlaneseq
        %v1716 = vshrl.u32 %v1715, 7
        %v1717 = vsub.s32 1, %v1716
        %v1718 = vrot.slane %v1598, %v1717
        %v1719 = vlaneseq
        %v1720 = vshrl.u32 %v1719, 7
        %v1721 = vsub.s32 2, %v1720
        %v1722 = vrot.slane %v1598, %v1721
        %v1723 = vlaneseq
        %v1724 = vshrl.u32 %v1723, 7
        %v1725 = vsub.s32 3, %v1724
        %v1726 = vrot.slane %v1598, %v1725
        %v1727 = vmul.f32 %v1602, %v1533
        %v1728 = vmul.f32 %v1602, %v1534
        %v1729 = vmul.f32 %v1606, %v1535
        %v1730 = vmul.f32 %v1606, %v1536
        %v1731 = vmul.f32 %v1610, %v1537
        %v1732 = vmul.f32 %v1610, %v1538
        %v1733 = vmul.f32 %v1614, %v1539
        %v1734 = vmul.f32 %v1614, %v1540
        %v1735 = vmul.f32 %v1618, %v1533
        %v1736 = vmul.f32 %v1618, %v1534
        %v1737 = vmul.f32 %v1622, %v1535
        %v1738 = vmul.f32 %v1622, %v1536
        %v1739 = vmul.f32 %v1626, %v1537
        %v1740 = vmul.f32 %v1626, %v1538
        %v1741 = vmul.f32 %v1630, %v1539
        %v1742 = vmul.f32 %v1630, %v1540
        %v1743 = vmul.f32 %v1634, %v1533
        %v1744 = vmul.f32 %v1634, %v1534
        %v1745 = vmul.f32 %v1638, %v1535
        %v1746 = vmul.f32 %v1638, %v1536
        %v1747 = vmul.f32 %v1642, %v1537
        %v1748 = vmul.f32 %v1642, %v1538
        %v1749 = vmul.f32 %v1646, %v1539
        %v1750 = vmul.f32 %v1646, %v1540
        %v1751 = vmul.f32 %v1650, %v1533
        %v1752 = vmul.f32 %v1650, %v1534
        %v1753 = vmul.f32 %v1654, %v1535
        %v1754 = vmul.f32 %v1654, %v1536
        %v1755 = vmul.f32 %v1658, %v1537
        %v1756 = vmul.f32 %v1658, %v1538
        %v1757 = vmul.f32 %v1662, %v1539
        %v1758 = vmul.f32 %v1662, %v1540
        %v1759 = vmul.f32 %v1666, %v1533
        %v1760 = vmul.f32 %v1666, %v1534
        %v1761 = vmul.f32 %v1670, %v1535
        %v1762 = vmul.f32 %v1670, %v1536
        %v1763 = vmul.f32 %v1674, %v1537
        %v1764 = vmul.f32 %v1674, %v1538
        %v1765 = vmul.f32 %v1678, %v1539
        %v1766 = vmul.f32 %v1678, %v1540
        %v1767 = vmul.f32 %v1682, %v1533
        %v1768 = vmul.f32 %v1682, %v1534
        %v1769 = vmul.f32 %v1686, %v1535
        %v1770 = vmul.f32 %v1686, %v1536
        %v1771 = vmul.f32 %v1690, %v1537
        %v1772 = vmul.f32 %v1690, %v1538
        %v1773 = vmul.f32 %v1694, %v1539
        %v1774 = vmul.f32 %v1694, %v1540
        %v1775 = vmul.f32 %v1698, %v1533
        %v1776 = vmul.f32 %v1698, %v1534
        %v1777 = vmul.f32 %v1702, %v1535
        %v1778 = vmul.f32 %v1702, %v1536
        %v1779 = vmul.f32 %v1706, %v1537
        %v1780 = vmul.f32 %v1706, %v1538
        %v1781 = vmul.f32 %v1710, %v1539
        %v1782 = vmul.f32 %v1710, %v1540
        %v1783 = vmul.f32 %v1714, %v1533
        %v1784 = vmul.f32 %v1714, %v1534
        %v1785 = vmul.f32 %v1718, %v1535
        %v1786 = vmul.f32 %v1718, %v1536
        %v1787 = vmul.f32 %v1722, %v1537
        %v1788 = vmul.f32 %v1722, %v1538
        %v1789 = vmul.f32 %v1726, %v1539
        %v1790 = vmul.f32 %v1726, %v1540
        %v1791 = vsel %vm518, %v1727, 0.0
        %v1792 = vsel %vm518, %v1729, 0.0
        %v1793 = vadd.f32 %v1791, %v1792
        %v1794 = vsel %vm518, %v1731, 0.0
        %v1795 = vadd.f32 %v1793, %v1794
        %v1796 = vsel %vm518, %v1733, 0.0
        %v1797 = vadd.f32 %v1795, %v1796
        %v1798 = vsel %vm518, %v1728, 0.0
        %v1799 = vsel %vm518, %v1730, 0.0
        %v1800 = vadd.f32 %v1798, %v1799
        %v1801 = vsel %vm518, %v1732, 0.0
        %v1802 = vadd.f32 %v1800, %v1801
        %v1803 = vsel %vm518, %v1734, 0.0
        %v1804 = vadd.f32 %v1802, %v1803
        %v1805 = vsel %vm518, %v1735, 0.0
        %v1806 = vsel %vm518, %v1737, 0.0
        %v1807 = vadd.f32 %v1805, %v1806
        %v1808 = vsel %vm518, %v1739, 0.0
        %v1809 = vadd.f32 %v1807, %v1808
        %v1810 = vsel %vm518, %v1741, 0.0
        %v1811 = vadd.f32 %v1809, %v1810
        %v1812 = vsel %vm518, %v1736, 0.0
        %v1813 = vsel %vm518, %v1738, 0.0
        %v1814 = vadd.f32 %v1812, %v1813
        %v1815 = vsel %vm518, %v1740, 0.0
        %v1816 = vadd.f32 %v1814, %v1815
        %v1817 = vsel %vm518, %v1742, 0.0
        %v1818 = vadd.f32 %v1816, %v1817
        %v1819 = vsel %vm518, %v1743, 0.0
        %v1820 = vsel %vm518, %v1745, 0.0
        %v1821 = vadd.f32 %v1819, %v1820
        %v1822 = vsel %vm518, %v1747, 0.0
        %v1823 = vadd.f32 %v1821, %v1822
        %v1824 = vsel %vm518, %v1749, 0.0
        %v1825 = vadd.f32 %v1823, %v1824
        %v1826 = vsel %vm518, %v1744, 0.0
        %v1827 = vsel %vm518, %v1746, 0.0
        %v1828 = vadd.f32 %v1826, %v1827
        %v1829 = vsel %vm518, %v1748, 0.0
        %v1830 = vadd.f32 %v1828, %v1829
        %v1831 = vsel %vm518, %v1750, 0.0
        %v1832 = vadd.f32 %v1830, %v1831
        %v1833 = vsel %vm518, %v1751, 0.0
        %v1834 = vsel %vm518, %v1753, 0.0
        %v1835 = vadd.f32 %v1833, %v1834
        %v1836 = vsel %vm518, %v1755, 0.0
        %v1837 = vadd.f32 %v1835, %v1836
        %v1838 = vsel %vm518, %v1757, 0.0
        %v1839 = vadd.f32 %v1837, %v1838
        %v1840 = vsel %vm518, %v1752, 0.0
        %v1841 = vsel %vm518, %v1754, 0.0
        %v1842 = vadd.f32 %v1840, %v1841
        %v1843 = vsel %vm518, %v1756, 0.0
        %v1844 = vadd.f32 %v1842, %v1843
        %v1845 = vsel %vm518, %v1758, 0.0
        %v1846 = vadd.f32 %v1844, %v1845
        %v1847 = vsel %vm518, %v1759, 0.0
        %v1848 = vsel %vm518, %v1761, 0.0
        %v1849 = vadd.f32 %v1847, %v1848
        %v1850 = vsel %vm518, %v1763, 0.0
        %v1851 = vadd.f32 %v1849, %v1850
        %v1852 = vsel %vm518, %v1765, 0.0
        %v1853 = vadd.f32 %v1851, %v1852
        %v1854 = vsel %vm518, %v1760, 0.0
        %v1855 = vsel %vm518, %v1762, 0.0
        %v1856 = vadd.f32 %v1854, %v1855
        %v1857 = vsel %vm518, %v1764, 0.0
        %v1858 = vadd.f32 %v1856, %v1857
        %v1859 = vsel %vm518, %v1766, 0.0
        %v1860 = vadd.f32 %v1858, %v1859
        %v1861 = vsel %vm518, %v1767, 0.0
        %v1862 = vsel %vm518, %v1769, 0.0
        %v1863 = vadd.f32 %v1861, %v1862
        %v1864 = vsel %vm518, %v1771, 0.0
        %v1865 = vadd.f32 %v1863, %v1864
        %v1866 = vsel %vm518, %v1773, 0.0
        %v1867 = vadd.f32 %v1865, %v1866
        %v1868 = vsel %vm518, %v1768, 0.0
        %v1869 = vsel %vm518, %v1770, 0.0
        %v1870 = vadd.f32 %v1868, %v1869
        %v1871 = vsel %vm518, %v1772, 0.0
        %v1872 = vadd.f32 %v1870, %v1871
        %v1873 = vsel %vm518, %v1774, 0.0
        %v1874 = vadd.f32 %v1872, %v1873
        %v1875 = vsel %vm518, %v1775, 0.0
        %v1876 = vsel %vm518, %v1777, 0.0
        %v1877 = vadd.f32 %v1875, %v1876
        %v1878 = vsel %vm518, %v1779, 0.0
        %v1879 = vadd.f32 %v1877, %v1878
        %v1880 = vsel %vm518, %v1781, 0.0
        %v1881 = vadd.f32 %v1879, %v1880
        %v1882 = vsel %vm518, %v1776, 0.0
        %v1883 = vsel %vm518, %v1778, 0.0
        %v1884 = vadd.f32 %v1882, %v1883
        %v1885 = vsel %vm518, %v1780, 0.0
        %v1886 = vadd.f32 %v1884, %v1885
        %v1887 = vsel %vm518, %v1782, 0.0
        %v1888 = vadd.f32 %v1886, %v1887
        %v1889 = vsel %vm518, %v1783, 0.0
        %v1890 = vsel %vm518, %v1785, 0.0
        %v1891 = vadd.f32 %v1889, %v1890
        %v1892 = vsel %vm518, %v1787, 0.0
        %v1893 = vadd.f32 %v1891, %v1892
        %v1894 = vsel %vm518, %v1789, 0.0
        %v1895 = vadd.f32 %v1893, %v1894
        %v1896 = vsel %vm518, %v1784, 0.0
        %v1897 = vsel %vm518, %v1786, 0.0
        %v1898 = vadd.f32 %v1896, %v1897
        %v1899 = vsel %vm518, %v1788, 0.0
        %v1900 = vadd.f32 %v1898, %v1899
        %v1901 = vsel %vm518, %v1790, 0.0
        %v1902 = vadd.f32 %v1900, %v1901
        %v1903 = vadd.f32 %v1517, %v1797
        %v1904 = vadd.f32 %v1518, %v1804
        %v1905 = vadd.f32 %v1519, %v1811
        %v1906 = vadd.f32 %v1520, %v1818
        %v1907 = vadd.f32 %v1521, %v1825
        %v1908 = vadd.f32 %v1522, %v1832
        %v1909 = vadd.f32 %v1523, %v1839
        %v1910 = vadd.f32 %v1524, %v1846
        %v1911 = vadd.f32 %v1525, %v1853
        %v1912 = vadd.f32 %v1526, %v1860
        %v1913 = vadd.f32 %v1527, %v1867
        %v1914 = vadd.f32 %v1528, %v1874
        %v1915 = vadd.f32 %v1529, %v1881
        %v1916 = vadd.f32 %v1530, %v1888
        %v1917 = vadd.f32 %v1531, %v1895
        %v1918 = vadd.f32 %v1532, %v1902
        %s1919 = scalar_lea.vmem %s1, 32
        %v1920 = vld [vmem:[%s1919] sm:$0xff]
        %v1921 = vlaneseq
        %v1922 = vshrl.u32 %v1921, 7
        %v1923 = vsub.s32 0, %v1922
        %v1924 = vrot.slane %v1920, %v1923
        %1926 = vbcast.lane.b32.xlu0 %v1924, 256
        %v1927 = vpop.permute.xlu0 %1926
        %v1928 = vlaneseq
        %v1929 = vshrl.u32 %v1928, 7
        %v1930 = vsub.s32 1, %v1929
        %v1931 = vrot.slane %v1920, %v1930
        %1933 = vbcast.lane.b32.xlu0 %v1931, 256
        %v1934 = vpop.permute.xlu0 %1933
        %v1935 = vlaneseq
        %v1936 = vshrl.u32 %v1935, 7
        %v1937 = vsub.s32 2, %v1936
        %v1938 = vrot.slane %v1920, %v1937
        %1940 = vbcast.lane.b32.xlu0 %v1938, 256
        %v1941 = vpop.permute.xlu0 %1940
        %v1942 = vlaneseq
        %v1943 = vshrl.u32 %v1942, 7
        %v1944 = vsub.s32 3, %v1943
        %v1945 = vrot.slane %v1920, %v1944
        %1947 = vbcast.lane.b32.xlu0 %v1945, 256
        %v1948 = vpop.permute.xlu0 %1947
        %v1949 = vlaneseq
        %v1950 = vshrl.u32 %v1949, 7
        %v1951 = vsub.s32 4, %v1950
        %v1952 = vrot.slane %v1920, %v1951
        %1954 = vbcast.lane.b32.xlu0 %v1952, 256
        %v1955 = vpop.permute.xlu0 %1954
        %v1956 = vlaneseq
        %v1957 = vshrl.u32 %v1956, 7
        %v1958 = vsub.s32 5, %v1957
        %v1959 = vrot.slane %v1920, %v1958
        %1961 = vbcast.lane.b32.xlu0 %v1959, 256
        %v1962 = vpop.permute.xlu0 %1961
        %v1963 = vlaneseq
        %v1964 = vshrl.u32 %v1963, 7
        %v1965 = vsub.s32 6, %v1964
        %v1966 = vrot.slane %v1920, %v1965
        %1968 = vbcast.lane.b32.xlu0 %v1966, 256
        %v1969 = vpop.permute.xlu0 %1968
        %v1970 = vlaneseq
        %v1971 = vshrl.u32 %v1970, 7
        %v1972 = vsub.s32 7, %v1971
        %v1973 = vrot.slane %v1920, %v1972
        %1975 = vbcast.lane.b32.xlu0 %v1973, 256
        %v1976 = vpop.permute.xlu0 %1975
        %v1977 = vlaneseq
        %v1978 = vshrl.u32 %v1977, 7
        %v1979 = vsub.s32 0, %v1978
        %v1980 = vrot.slane %v1927, %v1979
        %v1981 = vlaneseq
        %v1982 = vshrl.u32 %v1981, 7
        %v1983 = vsub.s32 1, %v1982
        %v1984 = vrot.slane %v1927, %v1983
        %v1985 = vlaneseq
        %v1986 = vshrl.u32 %v1985, 7
        %v1987 = vsub.s32 2, %v1986
        %v1988 = vrot.slane %v1927, %v1987
        %v1989 = vlaneseq
        %v1990 = vshrl.u32 %v1989, 7
        %v1991 = vsub.s32 3, %v1990
        %v1992 = vrot.slane %v1927, %v1991
        %v1993 = vlaneseq
        %v1994 = vshrl.u32 %v1993, 7
        %v1995 = vsub.s32 0, %v1994
        %v1996 = vrot.slane %v1934, %v1995
        %v1997 = vlaneseq
        %v1998 = vshrl.u32 %v1997, 7
        %v1999 = vsub.s32 1, %v1998
        %v2000 = vrot.slane %v1934, %v1999
        %v2001 = vlaneseq
        %v2002 = vshrl.u32 %v2001, 7
        %v2003 = vsub.s32 2, %v2002
        %v2004 = vrot.slane %v1934, %v2003
        %v2005 = vlaneseq
        %v2006 = vshrl.u32 %v2005, 7
        %v2007 = vsub.s32 3, %v2006
        %v2008 = vrot.slane %v1934, %v2007
        %v2009 = vlaneseq
        %v2010 = vshrl.u32 %v2009, 7
        %v2011 = vsub.s32 0, %v2010
        %v2012 = vrot.slane %v1941, %v2011
        %v2013 = vlaneseq
        %v2014 = vshrl.u32 %v2013, 7
        %v2015 = vsub.s32 1, %v2014
        %v2016 = vrot.slane %v1941, %v2015
        %v2017 = vlaneseq
        %v2018 = vshrl.u32 %v2017, 7
        %v2019 = vsub.s32 2, %v2018
        %v2020 = vrot.slane %v1941, %v2019
        %v2021 = vlaneseq
        %v2022 = vshrl.u32 %v2021, 7
        %v2023 = vsub.s32 3, %v2022
        %v2024 = vrot.slane %v1941, %v2023
        %v2025 = vlaneseq
        %v2026 = vshrl.u32 %v2025, 7
        %v2027 = vsub.s32 0, %v2026
        %v2028 = vrot.slane %v1948, %v2027
        %v2029 = vlaneseq
        %v2030 = vshrl.u32 %v2029, 7
        %v2031 = vsub.s32 1, %v2030
        %v2032 = vrot.slane %v1948, %v2031
        %v2033 = vlaneseq
        %v2034 = vshrl.u32 %v2033, 7
        %v2035 = vsub.s32 2, %v2034
        %v2036 = vrot.slane %v1948, %v2035
        %v2037 = vlaneseq
        %v2038 = vshrl.u32 %v2037, 7
        %v2039 = vsub.s32 3, %v2038
        %v2040 = vrot.slane %v1948, %v2039
        %v2041 = vlaneseq
        %v2042 = vshrl.u32 %v2041, 7
        %v2043 = vsub.s32 0, %v2042
        %v2044 = vrot.slane %v1955, %v2043
        %v2045 = vlaneseq
        %v2046 = vshrl.u32 %v2045, 7
        %v2047 = vsub.s32 1, %v2046
        %v2048 = vrot.slane %v1955, %v2047
        %v2049 = vlaneseq
        %v2050 = vshrl.u32 %v2049, 7
        %v2051 = vsub.s32 2, %v2050
        %v2052 = vrot.slane %v1955, %v2051
        %v2053 = vlaneseq
        %v2054 = vshrl.u32 %v2053, 7
        %v2055 = vsub.s32 3, %v2054
        %v2056 = vrot.slane %v1955, %v2055
        %v2057 = vlaneseq
        %v2058 = vshrl.u32 %v2057, 7
        %v2059 = vsub.s32 0, %v2058
        %v2060 = vrot.slane %v1962, %v2059
        %v2061 = vlaneseq
        %v2062 = vshrl.u32 %v2061, 7
        %v2063 = vsub.s32 1, %v2062
        %v2064 = vrot.slane %v1962, %v2063
        %v2065 = vlaneseq
        %v2066 = vshrl.u32 %v2065, 7
        %v2067 = vsub.s32 2, %v2066
        %v2068 = vrot.slane %v1962, %v2067
        %v2069 = vlaneseq
        %v2070 = vshrl.u32 %v2069, 7
        %v2071 = vsub.s32 3, %v2070
        %v2072 = vrot.slane %v1962, %v2071
        %v2073 = vlaneseq
        %v2074 = vshrl.u32 %v2073, 7
        %v2075 = vsub.s32 0, %v2074
        %v2076 = vrot.slane %v1969, %v2075
        %v2077 = vlaneseq
        %v2078 = vshrl.u32 %v2077, 7
        %v2079 = vsub.s32 1, %v2078
        %v2080 = vrot.slane %v1969, %v2079
        %v2081 = vlaneseq
        %v2082 = vshrl.u32 %v2081, 7
        %v2083 = vsub.s32 2, %v2082
        %v2084 = vrot.slane %v1969, %v2083
        %v2085 = vlaneseq
        %v2086 = vshrl.u32 %v2085, 7
        %v2087 = vsub.s32 3, %v2086
        %v2088 = vrot.slane %v1969, %v2087
        %v2089 = vlaneseq
        %v2090 = vshrl.u32 %v2089, 7
        %v2091 = vsub.s32 0, %v2090
        %v2092 = vrot.slane %v1976, %v2091
        %v2093 = vlaneseq
        %v2094 = vshrl.u32 %v2093, 7
        %v2095 = vsub.s32 1, %v2094
        %v2096 = vrot.slane %v1976, %v2095
        %v2097 = vlaneseq
        %v2098 = vshrl.u32 %v2097, 7
        %v2099 = vsub.s32 2, %v2098
        %v2100 = vrot.slane %v1976, %v2099
        %v2101 = vlaneseq
        %v2102 = vshrl.u32 %v2101, 7
        %v2103 = vsub.s32 3, %v2102
        %v2104 = vrot.slane %v1976, %v2103
        %v2105 = vmul.f32 %v1980, %v1533
        %v2106 = vmul.f32 %v1980, %v1534
        %v2107 = vmul.f32 %v1984, %v1535
        %v2108 = vmul.f32 %v1984, %v1536
        %v2109 = vmul.f32 %v1988, %v1537
        %v2110 = vmul.f32 %v1988, %v1538
        %v2111 = vmul.f32 %v1992, %v1539
        %v2112 = vmul.f32 %v1992, %v1540
        %v2113 = vmul.f32 %v1996, %v1533
        %v2114 = vmul.f32 %v1996, %v1534
        %v2115 = vmul.f32 %v2000, %v1535
        %v2116 = vmul.f32 %v2000, %v1536
        %v2117 = vmul.f32 %v2004, %v1537
        %v2118 = vmul.f32 %v2004, %v1538
        %v2119 = vmul.f32 %v2008, %v1539
        %v2120 = vmul.f32 %v2008, %v1540
        %v2121 = vmul.f32 %v2012, %v1533
        %v2122 = vmul.f32 %v2012, %v1534
        %v2123 = vmul.f32 %v2016, %v1535
        %v2124 = vmul.f32 %v2016, %v1536
        %v2125 = vmul.f32 %v2020, %v1537
        %v2126 = vmul.f32 %v2020, %v1538
        %v2127 = vmul.f32 %v2024, %v1539
        %v2128 = vmul.f32 %v2024, %v1540
        %v2129 = vmul.f32 %v2028, %v1533
        %v2130 = vmul.f32 %v2028, %v1534
        %v2131 = vmul.f32 %v2032, %v1535
        %v2132 = vmul.f32 %v2032, %v1536
        %v2133 = vmul.f32 %v2036, %v1537
        %v2134 = vmul.f32 %v2036, %v1538
        %v2135 = vmul.f32 %v2040, %v1539
        %v2136 = vmul.f32 %v2040, %v1540
        %v2137 = vmul.f32 %v2044, %v1533
        %v2138 = vmul.f32 %v2044, %v1534
        %v2139 = vmul.f32 %v2048, %v1535
        %v2140 = vmul.f32 %v2048, %v1536
        %v2141 = vmul.f32 %v2052, %v1537
        %v2142 = vmul.f32 %v2052, %v1538
        %v2143 = vmul.f32 %v2056, %v1539
        %v2144 = vmul.f32 %v2056, %v1540
        %v2145 = vmul.f32 %v2060, %v1533
        %v2146 = vmul.f32 %v2060, %v1534
        %v2147 = vmul.f32 %v2064, %v1535
        %v2148 = vmul.f32 %v2064, %v1536
        %v2149 = vmul.f32 %v2068, %v1537
        %v2150 = vmul.f32 %v2068, %v1538
        %v2151 = vmul.f32 %v2072, %v1539
        %v2152 = vmul.f32 %v2072, %v1540
        %v2153 = vmul.f32 %v2076, %v1533
        %v2154 = vmul.f32 %v2076, %v1534
        %v2155 = vmul.f32 %v2080, %v1535
        %v2156 = vmul.f32 %v2080, %v1536
        %v2157 = vmul.f32 %v2084, %v1537
        %v2158 = vmul.f32 %v2084, %v1538
        %v2159 = vmul.f32 %v2088, %v1539
        %v2160 = vmul.f32 %v2088, %v1540
        %v2161 = vmul.f32 %v2092, %v1533
        %v2162 = vmul.f32 %v2092, %v1534
        %v2163 = vmul.f32 %v2096, %v1535
        %v2164 = vmul.f32 %v2096, %v1536
        %v2165 = vmul.f32 %v2100, %v1537
        %v2166 = vmul.f32 %v2100, %v1538
        %v2167 = vmul.f32 %v2104, %v1539
        %v2168 = vmul.f32 %v2104, %v1540
        %v2169 = vsel %vm897, %v2105, 0.0
        %v2170 = vsel %vm897, %v2107, 0.0
        %v2171 = vadd.f32 %v2169, %v2170
        %v2172 = vsel %vm897, %v2109, 0.0
        %v2173 = vadd.f32 %v2171, %v2172
        %v2174 = vsel %vm897, %v2111, 0.0
        %v2175 = vadd.f32 %v2173, %v2174
        %v2176 = vsel %vm897, %v2106, 0.0
        %v2177 = vsel %vm897, %v2108, 0.0
        %v2178 = vadd.f32 %v2176, %v2177
        %v2179 = vsel %vm897, %v2110, 0.0
        %v2180 = vadd.f32 %v2178, %v2179
        %v2181 = vsel %vm897, %v2112, 0.0
        %v2182 = vadd.f32 %v2180, %v2181
        %v2183 = vsel %vm897, %v2113, 0.0
        %v2184 = vsel %vm897, %v2115, 0.0
        %v2185 = vadd.f32 %v2183, %v2184
        %v2186 = vsel %vm897, %v2117, 0.0
        %v2187 = vadd.f32 %v2185, %v2186
        %v2188 = vsel %vm897, %v2119, 0.0
        %v2189 = vadd.f32 %v2187, %v2188
        %v2190 = vsel %vm897, %v2114, 0.0
        %v2191 = vsel %vm897, %v2116, 0.0
        %v2192 = vadd.f32 %v2190, %v2191
        %v2193 = vsel %vm897, %v2118, 0.0
        %v2194 = vadd.f32 %v2192, %v2193
        %v2195 = vsel %vm897, %v2120, 0.0
        %v2196 = vadd.f32 %v2194, %v2195
        %v2197 = vsel %vm897, %v2121, 0.0
        %v2198 = vsel %vm897, %v2123, 0.0
        %v2199 = vadd.f32 %v2197, %v2198
        %v2200 = vsel %vm897, %v2125, 0.0
        %v2201 = vadd.f32 %v2199, %v2200
        %v2202 = vsel %vm897, %v2127, 0.0
        %v2203 = vadd.f32 %v2201, %v2202
        %v2204 = vsel %vm897, %v2122, 0.0
        %v2205 = vsel %vm897, %v2124, 0.0
        %v2206 = vadd.f32 %v2204, %v2205
        %v2207 = vsel %vm897, %v2126, 0.0
        %v2208 = vadd.f32 %v2206, %v2207
        %v2209 = vsel %vm897, %v2128, 0.0
        %v2210 = vadd.f32 %v2208, %v2209
        %v2211 = vsel %vm897, %v2129, 0.0
        %v2212 = vsel %vm897, %v2131, 0.0
        %v2213 = vadd.f32 %v2211, %v2212
        %v2214 = vsel %vm897, %v2133, 0.0
        %v2215 = vadd.f32 %v2213, %v2214
        %v2216 = vsel %vm897, %v2135, 0.0
        %v2217 = vadd.f32 %v2215, %v2216
        %v2218 = vsel %vm897, %v2130, 0.0
        %v2219 = vsel %vm897, %v2132, 0.0
        %v2220 = vadd.f32 %v2218, %v2219
        %v2221 = vsel %vm897, %v2134, 0.0
        %v2222 = vadd.f32 %v2220, %v2221
        %v2223 = vsel %vm897, %v2136, 0.0
        %v2224 = vadd.f32 %v2222, %v2223
        %v2225 = vsel %vm897, %v2137, 0.0
        %v2226 = vsel %vm897, %v2139, 0.0
        %v2227 = vadd.f32 %v2225, %v2226
        %v2228 = vsel %vm897, %v2141, 0.0
        %v2229 = vadd.f32 %v2227, %v2228
        %v2230 = vsel %vm897, %v2143, 0.0
        %v2231 = vadd.f32 %v2229, %v2230
        %v2232 = vsel %vm897, %v2138, 0.0
        %v2233 = vsel %vm897, %v2140, 0.0
        %v2234 = vadd.f32 %v2232, %v2233
        %v2235 = vsel %vm897, %v2142, 0.0
        %v2236 = vadd.f32 %v2234, %v2235
        %v2237 = vsel %vm897, %v2144, 0.0
        %v2238 = vadd.f32 %v2236, %v2237
        %v2239 = vsel %vm897, %v2145, 0.0
        %v2240 = vsel %vm897, %v2147, 0.0
        %v2241 = vadd.f32 %v2239, %v2240
        %v2242 = vsel %vm897, %v2149, 0.0
        %v2243 = vadd.f32 %v2241, %v2242
        %v2244 = vsel %vm897, %v2151, 0.0
        %v2245 = vadd.f32 %v2243, %v2244
        %v2246 = vsel %vm897, %v2146, 0.0
        %v2247 = vsel %vm897, %v2148, 0.0
        %v2248 = vadd.f32 %v2246, %v2247
        %v2249 = vsel %vm897, %v2150, 0.0
        %v2250 = vadd.f32 %v2248, %v2249
        %v2251 = vsel %vm897, %v2152, 0.0
        %v2252 = vadd.f32 %v2250, %v2251
        %v2253 = vsel %vm897, %v2153, 0.0
        %v2254 = vsel %vm897, %v2155, 0.0
        %v2255 = vadd.f32 %v2253, %v2254
        %v2256 = vsel %vm897, %v2157, 0.0
        %v2257 = vadd.f32 %v2255, %v2256
        %v2258 = vsel %vm897, %v2159, 0.0
        %v2259 = vadd.f32 %v2257, %v2258
        %v2260 = vsel %vm897, %v2154, 0.0
        %v2261 = vsel %vm897, %v2156, 0.0
        %v2262 = vadd.f32 %v2260, %v2261
        %v2263 = vsel %vm897, %v2158, 0.0
        %v2264 = vadd.f32 %v2262, %v2263
        %v2265 = vsel %vm897, %v2160, 0.0
        %v2266 = vadd.f32 %v2264, %v2265
        %v2267 = vsel %vm897, %v2161, 0.0
        %v2268 = vsel %vm897, %v2163, 0.0
        %v2269 = vadd.f32 %v2267, %v2268
        %v2270 = vsel %vm897, %v2165, 0.0
        %v2271 = vadd.f32 %v2269, %v2270
        %v2272 = vsel %vm897, %v2167, 0.0
        %v2273 = vadd.f32 %v2271, %v2272
        %v2274 = vsel %vm897, %v2162, 0.0
        %v2275 = vsel %vm897, %v2164, 0.0
        %v2276 = vadd.f32 %v2274, %v2275
        %v2277 = vsel %vm897, %v2166, 0.0
        %v2278 = vadd.f32 %v2276, %v2277
        %v2279 = vsel %vm897, %v2168, 0.0
        %v2280 = vadd.f32 %v2278, %v2279
        %2297 = vrot.lane.b32.xlu0 %v2175, 127
        %v2298 = vpop.permute.xlu0 %2297
        %2299 = vrot.lane.b32.xlu0 %v2182, 127
        %v2300 = vpop.permute.xlu0 %2299
        %2301 = vrot.lane.b32.xlu0 %v2189, 127
        %v2302 = vpop.permute.xlu0 %2301
        %2303 = vrot.lane.b32.xlu0 %v2196, 127
        %v2304 = vpop.permute.xlu0 %2303
        %2305 = vrot.lane.b32.xlu0 %v2203, 127
        %v2306 = vpop.permute.xlu0 %2305
        %2307 = vrot.lane.b32.xlu0 %v2210, 127
        %v2308 = vpop.permute.xlu0 %2307
        %2309 = vrot.lane.b32.xlu0 %v2217, 127
        %v2310 = vpop.permute.xlu0 %2309
        %2311 = vrot.lane.b32.xlu0 %v2224, 127
        %v2312 = vpop.permute.xlu0 %2311
        %2313 = vrot.lane.b32.xlu0 %v2231, 127
        %v2314 = vpop.permute.xlu0 %2313
        %2315 = vrot.lane.b32.xlu0 %v2238, 127
        %v2316 = vpop.permute.xlu0 %2315
        %2317 = vrot.lane.b32.xlu0 %v2245, 127
        %v2318 = vpop.permute.xlu0 %2317
        %2319 = vrot.lane.b32.xlu0 %v2252, 127
        %v2320 = vpop.permute.xlu0 %2319
        %2321 = vrot.lane.b32.xlu0 %v2259, 127
        %v2322 = vpop.permute.xlu0 %2321
        %2323 = vrot.lane.b32.xlu0 %v2266, 127
        %v2324 = vpop.permute.xlu0 %2323
        %2325 = vrot.lane.b32.xlu0 %v2273, 127
        %v2326 = vpop.permute.xlu0 %2325
        %2327 = vrot.lane.b32.xlu0 %v2280, 127
        %v2328 = vpop.permute.xlu0 %2327
        %v2345 = vadd.f32 %v1903, %v2298
        %v2346 = vadd.f32 %v1904, %v2300
        %v2347 = vadd.f32 %v1905, %v2302
        %v2348 = vadd.f32 %v1906, %v2304
        %v2349 = vadd.f32 %v1907, %v2306
        %v2350 = vadd.f32 %v1908, %v2308
        %v2351 = vadd.f32 %v1909, %v2310
        %v2352 = vadd.f32 %v1910, %v2312
        %v2353 = vadd.f32 %v1911, %v2314
        %v2354 = vadd.f32 %v1912, %v2316
        %v2355 = vadd.f32 %v1913, %v2318
        %v2356 = vadd.f32 %v1914, %v2320
        %v2357 = vadd.f32 %v1915, %v2322
        %v2358 = vadd.f32 %v1916, %v2324
        %v2359 = vadd.f32 %v1917, %v2326
        %v2360 = vadd.f32 %v1918, %v2328
        %s2361 = scalar_lea.vmem %s1, 40
        %v2362 = vld [vmem:[%s2361] sm:$0xff]
        %v2363 = vlaneseq
        %v2364 = vshrl.u32 %v2363, 7
        %v2365 = vsub.s32 0, %v2364
        %v2366 = vrot.slane %v2362, %v2365
        %2368 = vbcast.lane.b32.xlu0 %v2366, 256
        %v2369 = vpop.permute.xlu0 %2368
        %v2370 = vlaneseq
        %v2371 = vshrl.u32 %v2370, 7
        %v2372 = vsub.s32 1, %v2371
        %v2373 = vrot.slane %v2362, %v2372
        %2375 = vbcast.lane.b32.xlu0 %v2373, 256
        %v2376 = vpop.permute.xlu0 %2375
        %v2377 = vlaneseq
        %v2378 = vshrl.u32 %v2377, 7
        %v2379 = vsub.s32 2, %v2378
        %v2380 = vrot.slane %v2362, %v2379
        %2382 = vbcast.lane.b32.xlu0 %v2380, 256
        %v2383 = vpop.permute.xlu0 %2382
        %v2384 = vlaneseq
        %v2385 = vshrl.u32 %v2384, 7
        %v2386 = vsub.s32 3, %v2385
        %v2387 = vrot.slane %v2362, %v2386
        %2389 = vbcast.lane.b32.xlu0 %v2387, 256
        %v2390 = vpop.permute.xlu0 %2389
        %v2391 = vlaneseq
        %v2392 = vshrl.u32 %v2391, 7
        %v2393 = vsub.s32 4, %v2392
        %v2394 = vrot.slane %v2362, %v2393
        %2396 = vbcast.lane.b32.xlu0 %v2394, 256
        %v2397 = vpop.permute.xlu0 %2396
        %v2398 = vlaneseq
        %v2399 = vshrl.u32 %v2398, 7
        %v2400 = vsub.s32 5, %v2399
        %v2401 = vrot.slane %v2362, %v2400
        %2403 = vbcast.lane.b32.xlu0 %v2401, 256
        %v2404 = vpop.permute.xlu0 %2403
        %v2405 = vlaneseq
        %v2406 = vshrl.u32 %v2405, 7
        %v2407 = vsub.s32 6, %v2406
        %v2408 = vrot.slane %v2362, %v2407
        %2410 = vbcast.lane.b32.xlu0 %v2408, 256
        %v2411 = vpop.permute.xlu0 %2410
        %v2412 = vlaneseq
        %v2413 = vshrl.u32 %v2412, 7
        %v2414 = vsub.s32 7, %v2413
        %v2415 = vrot.slane %v2362, %v2414
        %2417 = vbcast.lane.b32.xlu0 %v2415, 256
        %v2418 = vpop.permute.xlu0 %2417
        %v2419 = vlaneseq
        %v2420 = vshrl.u32 %v2419, 7
        %v2421 = vsub.s32 0, %v2420
        %v2422 = vrot.slane %v2369, %v2421
        %v2423 = vlaneseq
        %v2424 = vshrl.u32 %v2423, 7
        %v2425 = vsub.s32 1, %v2424
        %v2426 = vrot.slane %v2369, %v2425
        %v2427 = vlaneseq
        %v2428 = vshrl.u32 %v2427, 7
        %v2429 = vsub.s32 2, %v2428
        %v2430 = vrot.slane %v2369, %v2429
        %v2431 = vlaneseq
        %v2432 = vshrl.u32 %v2431, 7
        %v2433 = vsub.s32 3, %v2432
        %v2434 = vrot.slane %v2369, %v2433
        %v2435 = vlaneseq
        %v2436 = vshrl.u32 %v2435, 7
        %v2437 = vsub.s32 0, %v2436
        %v2438 = vrot.slane %v2376, %v2437
        %v2439 = vlaneseq
        %v2440 = vshrl.u32 %v2439, 7
        %v2441 = vsub.s32 1, %v2440
        %v2442 = vrot.slane %v2376, %v2441
        %v2443 = vlaneseq
        %v2444 = vshrl.u32 %v2443, 7
        %v2445 = vsub.s32 2, %v2444
        %v2446 = vrot.slane %v2376, %v2445
        %v2447 = vlaneseq
        %v2448 = vshrl.u32 %v2447, 7
        %v2449 = vsub.s32 3, %v2448
        %v2450 = vrot.slane %v2376, %v2449
        %v2451 = vlaneseq
        %v2452 = vshrl.u32 %v2451, 7
        %v2453 = vsub.s32 0, %v2452
        %v2454 = vrot.slane %v2383, %v2453
        %v2455 = vlaneseq
        %v2456 = vshrl.u32 %v2455, 7
        %v2457 = vsub.s32 1, %v2456
        %v2458 = vrot.slane %v2383, %v2457
        %v2459 = vlaneseq
        %v2460 = vshrl.u32 %v2459, 7
        %v2461 = vsub.s32 2, %v2460
        %v2462 = vrot.slane %v2383, %v2461
        %v2463 = vlaneseq
        %v2464 = vshrl.u32 %v2463, 7
        %v2465 = vsub.s32 3, %v2464
        %v2466 = vrot.slane %v2383, %v2465
        %v2467 = vlaneseq
        %v2468 = vshrl.u32 %v2467, 7
        %v2469 = vsub.s32 0, %v2468
        %v2470 = vrot.slane %v2390, %v2469
        %v2471 = vlaneseq
        %v2472 = vshrl.u32 %v2471, 7
        %v2473 = vsub.s32 1, %v2472
        %v2474 = vrot.slane %v2390, %v2473
        %v2475 = vlaneseq
        %v2476 = vshrl.u32 %v2475, 7
        %v2477 = vsub.s32 2, %v2476
        %v2478 = vrot.slane %v2390, %v2477
        %v2479 = vlaneseq
        %v2480 = vshrl.u32 %v2479, 7
        %v2481 = vsub.s32 3, %v2480
        %v2482 = vrot.slane %v2390, %v2481
        %v2483 = vlaneseq
        %v2484 = vshrl.u32 %v2483, 7
        %v2485 = vsub.s32 0, %v2484
        %v2486 = vrot.slane %v2397, %v2485
        %v2487 = vlaneseq
        %v2488 = vshrl.u32 %v2487, 7
        %v2489 = vsub.s32 1, %v2488
        %v2490 = vrot.slane %v2397, %v2489
        %v2491 = vlaneseq
        %v2492 = vshrl.u32 %v2491, 7
        %v2493 = vsub.s32 2, %v2492
        %v2494 = vrot.slane %v2397, %v2493
        %v2495 = vlaneseq
        %v2496 = vshrl.u32 %v2495, 7
        %v2497 = vsub.s32 3, %v2496
        %v2498 = vrot.slane %v2397, %v2497
        %v2499 = vlaneseq
        %v2500 = vshrl.u32 %v2499, 7
        %v2501 = vsub.s32 0, %v2500
        %v2502 = vrot.slane %v2404, %v2501
        %v2503 = vlaneseq
        %v2504 = vshrl.u32 %v2503, 7
        %v2505 = vsub.s32 1, %v2504
        %v2506 = vrot.slane %v2404, %v2505
        %v2507 = vlaneseq
        %v2508 = vshrl.u32 %v2507, 7
        %v2509 = vsub.s32 2, %v2508
        %v2510 = vrot.slane %v2404, %v2509
        %v2511 = vlaneseq
        %v2512 = vshrl.u32 %v2511, 7
        %v2513 = vsub.s32 3, %v2512
        %v2514 = vrot.slane %v2404, %v2513
        %v2515 = vlaneseq
        %v2516 = vshrl.u32 %v2515, 7
        %v2517 = vsub.s32 0, %v2516
        %v2518 = vrot.slane %v2411, %v2517
        %v2519 = vlaneseq
        %v2520 = vshrl.u32 %v2519, 7
        %v2521 = vsub.s32 1, %v2520
        %v2522 = vrot.slane %v2411, %v2521
        %v2523 = vlaneseq
        %v2524 = vshrl.u32 %v2523, 7
        %v2525 = vsub.s32 2, %v2524
        %v2526 = vrot.slane %v2411, %v2525
        %v2527 = vlaneseq
        %v2528 = vshrl.u32 %v2527, 7
        %v2529 = vsub.s32 3, %v2528
        %v2530 = vrot.slane %v2411, %v2529
        %v2531 = vlaneseq
        %v2532 = vshrl.u32 %v2531, 7
        %v2533 = vsub.s32 0, %v2532
        %v2534 = vrot.slane %v2418, %v2533
        %v2535 = vlaneseq
        %v2536 = vshrl.u32 %v2535, 7
        %v2537 = vsub.s32 1, %v2536
        %v2538 = vrot.slane %v2418, %v2537
        %v2539 = vlaneseq
        %v2540 = vshrl.u32 %v2539, 7
        %v2541 = vsub.s32 2, %v2540
        %v2542 = vrot.slane %v2418, %v2541
        %v2543 = vlaneseq
        %v2544 = vshrl.u32 %v2543, 7
        %v2545 = vsub.s32 3, %v2544
        %v2546 = vrot.slane %v2418, %v2545
        %v2547 = vmul.f32 %v2422, %v1533
        %v2548 = vmul.f32 %v2422, %v1534
        %v2549 = vmul.f32 %v2426, %v1535
        %v2550 = vmul.f32 %v2426, %v1536
        %v2551 = vmul.f32 %v2430, %v1537
        %v2552 = vmul.f32 %v2430, %v1538
        %v2553 = vmul.f32 %v2434, %v1539
        %v2554 = vmul.f32 %v2434, %v1540
        %v2555 = vmul.f32 %v2438, %v1533
        %v2556 = vmul.f32 %v2438, %v1534
        %v2557 = vmul.f32 %v2442, %v1535
        %v2558 = vmul.f32 %v2442, %v1536
        %v2559 = vmul.f32 %v2446, %v1537
        %v2560 = vmul.f32 %v2446, %v1538
        %v2561 = vmul.f32 %v2450, %v1539
        %v2562 = vmul.f32 %v2450, %v1540
        %v2563 = vmul.f32 %v2454, %v1533
        %v2564 = vmul.f32 %v2454, %v1534
        %v2565 = vmul.f32 %v2458, %v1535
        %v2566 = vmul.f32 %v2458, %v1536
        %v2567 = vmul.f32 %v2462, %v1537
        %v2568 = vmul.f32 %v2462, %v1538
        %v2569 = vmul.f32 %v2466, %v1539
        %v2570 = vmul.f32 %v2466, %v1540
        %v2571 = vmul.f32 %v2470, %v1533
        %v2572 = vmul.f32 %v2470, %v1534
        %v2573 = vmul.f32 %v2474, %v1535
        %v2574 = vmul.f32 %v2474, %v1536
        %v2575 = vmul.f32 %v2478, %v1537
        %v2576 = vmul.f32 %v2478, %v1538
        %v2577 = vmul.f32 %v2482, %v1539
        %v2578 = vmul.f32 %v2482, %v1540
        %v2579 = vmul.f32 %v2486, %v1533
        %v2580 = vmul.f32 %v2486, %v1534
        %v2581 = vmul.f32 %v2490, %v1535
        %v2582 = vmul.f32 %v2490, %v1536
        %v2583 = vmul.f32 %v2494, %v1537
        %v2584 = vmul.f32 %v2494, %v1538
        %v2585 = vmul.f32 %v2498, %v1539
        %v2586 = vmul.f32 %v2498, %v1540
        %v2587 = vmul.f32 %v2502, %v1533
        %v2588 = vmul.f32 %v2502, %v1534
        %v2589 = vmul.f32 %v2506, %v1535
        %v2590 = vmul.f32 %v2506, %v1536
        %v2591 = vmul.f32 %v2510, %v1537
        %v2592 = vmul.f32 %v2510, %v1538
        %v2593 = vmul.f32 %v2514, %v1539
        %v2594 = vmul.f32 %v2514, %v1540
        %v2595 = vmul.f32 %v2518, %v1533
        %v2596 = vmul.f32 %v2518, %v1534
        %v2597 = vmul.f32 %v2522, %v1535
        %v2598 = vmul.f32 %v2522, %v1536
        %v2599 = vmul.f32 %v2526, %v1537
        %v2600 = vmul.f32 %v2526, %v1538
        %v2601 = vmul.f32 %v2530, %v1539
        %v2602 = vmul.f32 %v2530, %v1540
        %v2603 = vmul.f32 %v2534, %v1533
        %v2604 = vmul.f32 %v2534, %v1534
        %v2605 = vmul.f32 %v2538, %v1535
        %v2606 = vmul.f32 %v2538, %v1536
        %v2607 = vmul.f32 %v2542, %v1537
        %v2608 = vmul.f32 %v2542, %v1538
        %v2609 = vmul.f32 %v2546, %v1539
        %v2610 = vmul.f32 %v2546, %v1540
        %v2611 = vsel %vm1340, %v2547, 0.0
        %v2612 = vsel %vm1340, %v2549, 0.0
        %v2613 = vadd.f32 %v2611, %v2612
        %v2614 = vsel %vm1340, %v2551, 0.0
        %v2615 = vadd.f32 %v2613, %v2614
        %v2616 = vsel %vm1340, %v2553, 0.0
        %v2617 = vadd.f32 %v2615, %v2616
        %v2618 = vsel %vm1340, %v2548, 0.0
        %v2619 = vsel %vm1340, %v2550, 0.0
        %v2620 = vadd.f32 %v2618, %v2619
        %v2621 = vsel %vm1340, %v2552, 0.0
        %v2622 = vadd.f32 %v2620, %v2621
        %v2623 = vsel %vm1340, %v2554, 0.0
        %v2624 = vadd.f32 %v2622, %v2623
        %v2625 = vsel %vm1340, %v2555, 0.0
        %v2626 = vsel %vm1340, %v2557, 0.0
        %v2627 = vadd.f32 %v2625, %v2626
        %v2628 = vsel %vm1340, %v2559, 0.0
        %v2629 = vadd.f32 %v2627, %v2628
        %v2630 = vsel %vm1340, %v2561, 0.0
        %v2631 = vadd.f32 %v2629, %v2630
        %v2632 = vsel %vm1340, %v2556, 0.0
        %v2633 = vsel %vm1340, %v2558, 0.0
        %v2634 = vadd.f32 %v2632, %v2633
        %v2635 = vsel %vm1340, %v2560, 0.0
        %v2636 = vadd.f32 %v2634, %v2635
        %v2637 = vsel %vm1340, %v2562, 0.0
        %v2638 = vadd.f32 %v2636, %v2637
        %v2639 = vsel %vm1340, %v2563, 0.0
        %v2640 = vsel %vm1340, %v2565, 0.0
        %v2641 = vadd.f32 %v2639, %v2640
        %v2642 = vsel %vm1340, %v2567, 0.0
        %v2643 = vadd.f32 %v2641, %v2642
        %v2644 = vsel %vm1340, %v2569, 0.0
        %v2645 = vadd.f32 %v2643, %v2644
        %v2646 = vsel %vm1340, %v2564, 0.0
        %v2647 = vsel %vm1340, %v2566, 0.0
        %v2648 = vadd.f32 %v2646, %v2647
        %v2649 = vsel %vm1340, %v2568, 0.0
        %v2650 = vadd.f32 %v2648, %v2649
        %v2651 = vsel %vm1340, %v2570, 0.0
        %v2652 = vadd.f32 %v2650, %v2651
        %v2653 = vsel %vm1340, %v2571, 0.0
        %v2654 = vsel %vm1340, %v2573, 0.0
        %v2655 = vadd.f32 %v2653, %v2654
        %v2656 = vsel %vm1340, %v2575, 0.0
        %v2657 = vadd.f32 %v2655, %v2656
        %v2658 = vsel %vm1340, %v2577, 0.0
        %v2659 = vadd.f32 %v2657, %v2658
        %v2660 = vsel %vm1340, %v2572, 0.0
        %v2661 = vsel %vm1340, %v2574, 0.0
        %v2662 = vadd.f32 %v2660, %v2661
        %v2663 = vsel %vm1340, %v2576, 0.0
        %v2664 = vadd.f32 %v2662, %v2663
        %v2665 = vsel %vm1340, %v2578, 0.0
        %v2666 = vadd.f32 %v2664, %v2665
        %v2667 = vsel %vm1340, %v2579, 0.0
        %v2668 = vsel %vm1340, %v2581, 0.0
        %v2669 = vadd.f32 %v2667, %v2668
        %v2670 = vsel %vm1340, %v2583, 0.0
        %v2671 = vadd.f32 %v2669, %v2670
        %v2672 = vsel %vm1340, %v2585, 0.0
        %v2673 = vadd.f32 %v2671, %v2672
        %v2674 = vsel %vm1340, %v2580, 0.0
        %v2675 = vsel %vm1340, %v2582, 0.0
        %v2676 = vadd.f32 %v2674, %v2675
        %v2677 = vsel %vm1340, %v2584, 0.0
        %v2678 = vadd.f32 %v2676, %v2677
        %v2679 = vsel %vm1340, %v2586, 0.0
        %v2680 = vadd.f32 %v2678, %v2679
        %v2681 = vsel %vm1340, %v2587, 0.0
        %v2682 = vsel %vm1340, %v2589, 0.0
        %v2683 = vadd.f32 %v2681, %v2682
        %v2684 = vsel %vm1340, %v2591, 0.0
        %v2685 = vadd.f32 %v2683, %v2684
        %v2686 = vsel %vm1340, %v2593, 0.0
        %v2687 = vadd.f32 %v2685, %v2686
        %v2688 = vsel %vm1340, %v2588, 0.0
        %v2689 = vsel %vm1340, %v2590, 0.0
        %v2690 = vadd.f32 %v2688, %v2689
        %v2691 = vsel %vm1340, %v2592, 0.0
        %v2692 = vadd.f32 %v2690, %v2691
        %v2693 = vsel %vm1340, %v2594, 0.0
        %v2694 = vadd.f32 %v2692, %v2693
        %v2695 = vsel %vm1340, %v2595, 0.0
        %v2696 = vsel %vm1340, %v2597, 0.0
        %v2697 = vadd.f32 %v2695, %v2696
        %v2698 = vsel %vm1340, %v2599, 0.0
        %v2699 = vadd.f32 %v2697, %v2698
        %v2700 = vsel %vm1340, %v2601, 0.0
        %v2701 = vadd.f32 %v2699, %v2700
        %v2702 = vsel %vm1340, %v2596, 0.0
        %v2703 = vsel %vm1340, %v2598, 0.0
        %v2704 = vadd.f32 %v2702, %v2703
        %v2705 = vsel %vm1340, %v2600, 0.0
        %v2706 = vadd.f32 %v2704, %v2705
        %v2707 = vsel %vm1340, %v2602, 0.0
        %v2708 = vadd.f32 %v2706, %v2707
        %v2709 = vsel %vm1340, %v2603, 0.0
        %v2710 = vsel %vm1340, %v2605, 0.0
        %v2711 = vadd.f32 %v2709, %v2710
        %v2712 = vsel %vm1340, %v2607, 0.0
        %v2713 = vadd.f32 %v2711, %v2712
        %v2714 = vsel %vm1340, %v2609, 0.0
        %v2715 = vadd.f32 %v2713, %v2714
        %v2716 = vsel %vm1340, %v2604, 0.0
        %v2717 = vsel %vm1340, %v2606, 0.0
        %v2718 = vadd.f32 %v2716, %v2717
        %v2719 = vsel %vm1340, %v2608, 0.0
        %v2720 = vadd.f32 %v2718, %v2719
        %v2721 = vsel %vm1340, %v2610, 0.0
        %v2722 = vadd.f32 %v2720, %v2721
        %2739 = vrot.lane.b32.xlu0 %v2617, 126
        %v2740 = vpop.permute.xlu0 %2739
        %2741 = vrot.lane.b32.xlu0 %v2624, 126
        %v2742 = vpop.permute.xlu0 %2741
        %2743 = vrot.lane.b32.xlu0 %v2631, 126
        %v2744 = vpop.permute.xlu0 %2743
        %2745 = vrot.lane.b32.xlu0 %v2638, 126
        %v2746 = vpop.permute.xlu0 %2745
        %2747 = vrot.lane.b32.xlu0 %v2645, 126
        %v2748 = vpop.permute.xlu0 %2747
        %2749 = vrot.lane.b32.xlu0 %v2652, 126
        %v2750 = vpop.permute.xlu0 %2749
        %2751 = vrot.lane.b32.xlu0 %v2659, 126
        %v2752 = vpop.permute.xlu0 %2751
        %2753 = vrot.lane.b32.xlu0 %v2666, 126
        %v2754 = vpop.permute.xlu0 %2753
        %2755 = vrot.lane.b32.xlu0 %v2673, 126
        %v2756 = vpop.permute.xlu0 %2755
        %2757 = vrot.lane.b32.xlu0 %v2680, 126
        %v2758 = vpop.permute.xlu0 %2757
        %2759 = vrot.lane.b32.xlu0 %v2687, 126
        %v2760 = vpop.permute.xlu0 %2759
        %2761 = vrot.lane.b32.xlu0 %v2694, 126
        %v2762 = vpop.permute.xlu0 %2761
        %2763 = vrot.lane.b32.xlu0 %v2701, 126
        %v2764 = vpop.permute.xlu0 %2763
        %2765 = vrot.lane.b32.xlu0 %v2708, 126
        %v2766 = vpop.permute.xlu0 %2765
        %2767 = vrot.lane.b32.xlu0 %v2715, 126
        %v2768 = vpop.permute.xlu0 %2767
        %2769 = vrot.lane.b32.xlu0 %v2722, 126
        %v2770 = vpop.permute.xlu0 %2769
        %v2787 = vadd.f32 %v2345, %v2740
        %v2788 = vadd.f32 %v2346, %v2742
        %v2789 = vadd.f32 %v2347, %v2744
        %v2790 = vadd.f32 %v2348, %v2746
        %v2791 = vadd.f32 %v2349, %v2748
        %v2792 = vadd.f32 %v2350, %v2750
        %v2793 = vadd.f32 %v2351, %v2752
        %v2794 = vadd.f32 %v2352, %v2754
        %v2795 = vadd.f32 %v2353, %v2756
        %v2796 = vadd.f32 %v2354, %v2758
        %v2797 = vadd.f32 %v2355, %v2760
        %v2798 = vadd.f32 %v2356, %v2762
        %v2799 = vadd.f32 %v2357, %v2764
        %v2800 = vadd.f32 %v2358, %v2766
        %v2801 = vadd.f32 %v2359, %v2768
        %v2802 = vadd.f32 %v2360, %v2770
        %v2803 = vld [vmem:[%s256 + $0x2] sm:$0xff]
        %v2804 = vld [vmem:[%s256 + $0xa] sm:$0xff]
        %v2805 = vld [vmem:[%s256 + $0x1a] sm:$0xff]
        %v2806 = vld [vmem:[%s256 + $0x22] sm:$0xff]
        %v2807 = vld [vmem:[%s256 + $0x32] sm:$0xff]
        %v2808 = vld [vmem:[%s256 + $0x3a] sm:$0xff]
        %v2809 = vld [vmem:[%s256 + $0x4a] sm:$0xff]
        %v2810 = vld [vmem:[%s256 + $0x52] sm:$0xff]
        %s2811 = scalar_lea.vmem %s1, 48
        %v2812 = vld [vmem:[%s2811] sm:$0xff]
        %v2813 = vlaneseq
        %v2814 = vshrl.u32 %v2813, 7
        %v2815 = vsub.s32 0, %v2814
        %v2816 = vrot.slane %v2812, %v2815
        %2818 = vbcast.lane.b32.xlu0 %v2816, 256
        %v2819 = vpop.permute.xlu0 %2818
        %v2820 = vlaneseq
        %v2821 = vshrl.u32 %v2820, 7
        %v2822 = vsub.s32 1, %v2821
        %v2823 = vrot.slane %v2812, %v2822
        %2825 = vbcast.lane.b32.xlu0 %v2823, 256
        %v2826 = vpop.permute.xlu0 %2825
        %v2827 = vlaneseq
        %v2828 = vshrl.u32 %v2827, 7
        %v2829 = vsub.s32 2, %v2828
        %v2830 = vrot.slane %v2812, %v2829
        %2832 = vbcast.lane.b32.xlu0 %v2830, 256
        %v2833 = vpop.permute.xlu0 %2832
        %v2834 = vlaneseq
        %v2835 = vshrl.u32 %v2834, 7
        %v2836 = vsub.s32 3, %v2835
        %v2837 = vrot.slane %v2812, %v2836
        %2839 = vbcast.lane.b32.xlu0 %v2837, 256
        %v2840 = vpop.permute.xlu0 %2839
        %v2841 = vlaneseq
        %v2842 = vshrl.u32 %v2841, 7
        %v2843 = vsub.s32 4, %v2842
        %v2844 = vrot.slane %v2812, %v2843
        %2846 = vbcast.lane.b32.xlu0 %v2844, 256
        %v2847 = vpop.permute.xlu0 %2846
        %v2848 = vlaneseq
        %v2849 = vshrl.u32 %v2848, 7
        %v2850 = vsub.s32 5, %v2849
        %v2851 = vrot.slane %v2812, %v2850
        %2853 = vbcast.lane.b32.xlu0 %v2851, 256
        %v2854 = vpop.permute.xlu0 %2853
        %v2855 = vlaneseq
        %v2856 = vshrl.u32 %v2855, 7
        %v2857 = vsub.s32 6, %v2856
        %v2858 = vrot.slane %v2812, %v2857
        %2860 = vbcast.lane.b32.xlu0 %v2858, 256
        %v2861 = vpop.permute.xlu0 %2860
        %v2862 = vlaneseq
        %v2863 = vshrl.u32 %v2862, 7
        %v2864 = vsub.s32 7, %v2863
        %v2865 = vrot.slane %v2812, %v2864
        %2867 = vbcast.lane.b32.xlu0 %v2865, 256
        %v2868 = vpop.permute.xlu0 %2867
        %v2869 = vlaneseq
        %v2870 = vshrl.u32 %v2869, 7
        %v2871 = vsub.s32 0, %v2870
        %v2872 = vrot.slane %v2819, %v2871
        %v2873 = vlaneseq
        %v2874 = vshrl.u32 %v2873, 7
        %v2875 = vsub.s32 1, %v2874
        %v2876 = vrot.slane %v2819, %v2875
        %v2877 = vlaneseq
        %v2878 = vshrl.u32 %v2877, 7
        %v2879 = vsub.s32 2, %v2878
        %v2880 = vrot.slane %v2819, %v2879
        %v2881 = vlaneseq
        %v2882 = vshrl.u32 %v2881, 7
        %v2883 = vsub.s32 3, %v2882
        %v2884 = vrot.slane %v2819, %v2883
        %v2885 = vlaneseq
        %v2886 = vshrl.u32 %v2885, 7
        %v2887 = vsub.s32 0, %v2886
        %v2888 = vrot.slane %v2826, %v2887
        %v2889 = vlaneseq
        %v2890 = vshrl.u32 %v2889, 7
        %v2891 = vsub.s32 1, %v2890
        %v2892 = vrot.slane %v2826, %v2891
        %v2893 = vlaneseq
        %v2894 = vshrl.u32 %v2893, 7
        %v2895 = vsub.s32 2, %v2894
        %v2896 = vrot.slane %v2826, %v2895
        %v2897 = vlaneseq
        %v2898 = vshrl.u32 %v2897, 7
        %v2899 = vsub.s32 3, %v2898
        %v2900 = vrot.slane %v2826, %v2899
        %v2901 = vlaneseq
        %v2902 = vshrl.u32 %v2901, 7
        %v2903 = vsub.s32 0, %v2902
        %v2904 = vrot.slane %v2833, %v2903
        %v2905 = vlaneseq
        %v2906 = vshrl.u32 %v2905, 7
        %v2907 = vsub.s32 1, %v2906
        %v2908 = vrot.slane %v2833, %v2907
        %v2909 = vlaneseq
        %v2910 = vshrl.u32 %v2909, 7
        %v2911 = vsub.s32 2, %v2910
        %v2912 = vrot.slane %v2833, %v2911
        %v2913 = vlaneseq
        %v2914 = vshrl.u32 %v2913, 7
        %v2915 = vsub.s32 3, %v2914
        %v2916 = vrot.slane %v2833, %v2915
        %v2917 = vlaneseq
        %v2918 = vshrl.u32 %v2917, 7
        %v2919 = vsub.s32 0, %v2918
        %v2920 = vrot.slane %v2840, %v2919
        %v2921 = vlaneseq
        %v2922 = vshrl.u32 %v2921, 7
        %v2923 = vsub.s32 1, %v2922
        %v2924 = vrot.slane %v2840, %v2923
        %v2925 = vlaneseq
        %v2926 = vshrl.u32 %v2925, 7
        %v2927 = vsub.s32 2, %v2926
        %v2928 = vrot.slane %v2840, %v2927
        %v2929 = vlaneseq
        %v2930 = vshrl.u32 %v2929, 7
        %v2931 = vsub.s32 3, %v2930
        %v2932 = vrot.slane %v2840, %v2931
        %v2933 = vlaneseq
        %v2934 = vshrl.u32 %v2933, 7
        %v2935 = vsub.s32 0, %v2934
        %v2936 = vrot.slane %v2847, %v2935
        %v2937 = vlaneseq
        %v2938 = vshrl.u32 %v2937, 7
        %v2939 = vsub.s32 1, %v2938
        %v2940 = vrot.slane %v2847, %v2939
        %v2941 = vlaneseq
        %v2942 = vshrl.u32 %v2941, 7
        %v2943 = vsub.s32 2, %v2942
        %v2944 = vrot.slane %v2847, %v2943
        %v2945 = vlaneseq
        %v2946 = vshrl.u32 %v2945, 7
        %v2947 = vsub.s32 3, %v2946
        %v2948 = vrot.slane %v2847, %v2947
        %v2949 = vlaneseq
        %v2950 = vshrl.u32 %v2949, 7
        %v2951 = vsub.s32 0, %v2950
        %v2952 = vrot.slane %v2854, %v2951
        %v2953 = vlaneseq
        %v2954 = vshrl.u32 %v2953, 7
        %v2955 = vsub.s32 1, %v2954
        %v2956 = vrot.slane %v2854, %v2955
        %v2957 = vlaneseq
        %v2958 = vshrl.u32 %v2957, 7
        %v2959 = vsub.s32 2, %v2958
        %v2960 = vrot.slane %v2854, %v2959
        %v2961 = vlaneseq
        %v2962 = vshrl.u32 %v2961, 7
        %v2963 = vsub.s32 3, %v2962
        %v2964 = vrot.slane %v2854, %v2963
        %v2965 = vlaneseq
        %v2966 = vshrl.u32 %v2965, 7
        %v2967 = vsub.s32 0, %v2966
        %v2968 = vrot.slane %v2861, %v2967
        %v2969 = vlaneseq
        %v2970 = vshrl.u32 %v2969, 7
        %v2971 = vsub.s32 1, %v2970
        %v2972 = vrot.slane %v2861, %v2971
        %v2973 = vlaneseq
        %v2974 = vshrl.u32 %v2973, 7
        %v2975 = vsub.s32 2, %v2974
        %v2976 = vrot.slane %v2861, %v2975
        %v2977 = vlaneseq
        %v2978 = vshrl.u32 %v2977, 7
        %v2979 = vsub.s32 3, %v2978
        %v2980 = vrot.slane %v2861, %v2979
        %v2981 = vlaneseq
        %v2982 = vshrl.u32 %v2981, 7
        %v2983 = vsub.s32 0, %v2982
        %v2984 = vrot.slane %v2868, %v2983
        %v2985 = vlaneseq
        %v2986 = vshrl.u32 %v2985, 7
        %v2987 = vsub.s32 1, %v2986
        %v2988 = vrot.slane %v2868, %v2987
        %v2989 = vlaneseq
        %v2990 = vshrl.u32 %v2989, 7
        %v2991 = vsub.s32 2, %v2990
        %v2992 = vrot.slane %v2868, %v2991
        %v2993 = vlaneseq
        %v2994 = vshrl.u32 %v2993, 7
        %v2995 = vsub.s32 3, %v2994
        %v2996 = vrot.slane %v2868, %v2995
        %v2997 = vmul.f32 %v2872, %v2803
        %v2998 = vmul.f32 %v2872, %v2804
        %v2999 = vmul.f32 %v2876, %v2805
        %v3000 = vmul.f32 %v2876, %v2806
        %v3001 = vmul.f32 %v2880, %v2807
        %v3002 = vmul.f32 %v2880, %v2808
        %v3003 = vmul.f32 %v2884, %v2809
        %v3004 = vmul.f32 %v2884, %v2810
        %v3005 = vmul.f32 %v2888, %v2803
        %v3006 = vmul.f32 %v2888, %v2804
        %v3007 = vmul.f32 %v2892, %v2805
        %v3008 = vmul.f32 %v2892, %v2806
        %v3009 = vmul.f32 %v2896, %v2807
        %v3010 = vmul.f32 %v2896, %v2808
        %v3011 = vmul.f32 %v2900, %v2809
        %v3012 = vmul.f32 %v2900, %v2810
        %v3013 = vmul.f32 %v2904, %v2803
        %v3014 = vmul.f32 %v2904, %v2804
        %v3015 = vmul.f32 %v2908, %v2805
        %v3016 = vmul.f32 %v2908, %v2806
        %v3017 = vmul.f32 %v2912, %v2807
        %v3018 = vmul.f32 %v2912, %v2808
        %v3019 = vmul.f32 %v2916, %v2809
        %v3020 = vmul.f32 %v2916, %v2810
        %v3021 = vmul.f32 %v2920, %v2803
        %v3022 = vmul.f32 %v2920, %v2804
        %v3023 = vmul.f32 %v2924, %v2805
        %v3024 = vmul.f32 %v2924, %v2806
        %v3025 = vmul.f32 %v2928, %v2807
        %v3026 = vmul.f32 %v2928, %v2808
        %v3027 = vmul.f32 %v2932, %v2809
        %v3028 = vmul.f32 %v2932, %v2810
        %v3029 = vmul.f32 %v2936, %v2803
        %v3030 = vmul.f32 %v2936, %v2804
        %v3031 = vmul.f32 %v2940, %v2805
        %v3032 = vmul.f32 %v2940, %v2806
        %v3033 = vmul.f32 %v2944, %v2807
        %v3034 = vmul.f32 %v2944, %v2808
        %v3035 = vmul.f32 %v2948, %v2809
        %v3036 = vmul.f32 %v2948, %v2810
        %v3037 = vmul.f32 %v2952, %v2803
        %v3038 = vmul.f32 %v2952, %v2804
        %v3039 = vmul.f32 %v2956, %v2805
        %v3040 = vmul.f32 %v2956, %v2806
        %v3041 = vmul.f32 %v2960, %v2807
        %v3042 = vmul.f32 %v2960, %v2808
        %v3043 = vmul.f32 %v2964, %v2809
        %v3044 = vmul.f32 %v2964, %v2810
        %v3045 = vmul.f32 %v2968, %v2803
        %v3046 = vmul.f32 %v2968, %v2804
        %v3047 = vmul.f32 %v2972, %v2805
        %v3048 = vmul.f32 %v2972, %v2806
        %v3049 = vmul.f32 %v2976, %v2807
        %v3050 = vmul.f32 %v2976, %v2808
        %v3051 = vmul.f32 %v2980, %v2809
        %v3052 = vmul.f32 %v2980, %v2810
        %v3053 = vmul.f32 %v2984, %v2803
        %v3054 = vmul.f32 %v2984, %v2804
        %v3055 = vmul.f32 %v2988, %v2805
        %v3056 = vmul.f32 %v2988, %v2806
        %v3057 = vmul.f32 %v2992, %v2807
        %v3058 = vmul.f32 %v2992, %v2808
        %v3059 = vmul.f32 %v2996, %v2809
        %v3060 = vmul.f32 %v2996, %v2810
        %v3061 = vsel %vm518, %v2997, 0.0
        %v3062 = vsel %vm518, %v2999, 0.0
        %v3063 = vadd.f32 %v3061, %v3062
        %v3064 = vsel %vm518, %v3001, 0.0
        %v3065 = vadd.f32 %v3063, %v3064
        %v3066 = vsel %vm518, %v3003, 0.0
        %v3067 = vadd.f32 %v3065, %v3066
        %v3068 = vsel %vm518, %v2998, 0.0
        %v3069 = vsel %vm518, %v3000, 0.0
        %v3070 = vadd.f32 %v3068, %v3069
        %v3071 = vsel %vm518, %v3002, 0.0
        %v3072 = vadd.f32 %v3070, %v3071
        %v3073 = vsel %vm518, %v3004, 0.0
        %v3074 = vadd.f32 %v3072, %v3073
        %v3075 = vsel %vm518, %v3005, 0.0
        %v3076 = vsel %vm518, %v3007, 0.0
        %v3077 = vadd.f32 %v3075, %v3076
        %v3078 = vsel %vm518, %v3009, 0.0
        %v3079 = vadd.f32 %v3077, %v3078
        %v3080 = vsel %vm518, %v3011, 0.0
        %v3081 = vadd.f32 %v3079, %v3080
        %v3082 = vsel %vm518, %v3006, 0.0
        %v3083 = vsel %vm518, %v3008, 0.0
        %v3084 = vadd.f32 %v3082, %v3083
        %v3085 = vsel %vm518, %v3010, 0.0
        %v3086 = vadd.f32 %v3084, %v3085
        %v3087 = vsel %vm518, %v3012, 0.0
        %v3088 = vadd.f32 %v3086, %v3087
        %v3089 = vsel %vm518, %v3013, 0.0
        %v3090 = vsel %vm518, %v3015, 0.0
        %v3091 = vadd.f32 %v3089, %v3090
        %v3092 = vsel %vm518, %v3017, 0.0
        %v3093 = vadd.f32 %v3091, %v3092
        %v3094 = vsel %vm518, %v3019, 0.0
        %v3095 = vadd.f32 %v3093, %v3094
        %v3096 = vsel %vm518, %v3014, 0.0
        %v3097 = vsel %vm518, %v3016, 0.0
        %v3098 = vadd.f32 %v3096, %v3097
        %v3099 = vsel %vm518, %v3018, 0.0
        %v3100 = vadd.f32 %v3098, %v3099
        %v3101 = vsel %vm518, %v3020, 0.0
        %v3102 = vadd.f32 %v3100, %v3101
        %v3103 = vsel %vm518, %v3021, 0.0
        %v3104 = vsel %vm518, %v3023, 0.0
        %v3105 = vadd.f32 %v3103, %v3104
        %v3106 = vsel %vm518, %v3025, 0.0
        %v3107 = vadd.f32 %v3105, %v3106
        %v3108 = vsel %vm518, %v3027, 0.0
        %v3109 = vadd.f32 %v3107, %v3108
        %v3110 = vsel %vm518, %v3022, 0.0
        %v3111 = vsel %vm518, %v3024, 0.0
        %v3112 = vadd.f32 %v3110, %v3111
        %v3113 = vsel %vm518, %v3026, 0.0
        %v3114 = vadd.f32 %v3112, %v3113
        %v3115 = vsel %vm518, %v3028, 0.0
        %v3116 = vadd.f32 %v3114, %v3115
        %v3117 = vsel %vm518, %v3029, 0.0
        %v3118 = vsel %vm518, %v3031, 0.0
        %v3119 = vadd.f32 %v3117, %v3118
        %v3120 = vsel %vm518, %v3033, 0.0
        %v3121 = vadd.f32 %v3119, %v3120
        %v3122 = vsel %vm518, %v3035, 0.0
        %v3123 = vadd.f32 %v3121, %v3122
        %v3124 = vsel %vm518, %v3030, 0.0
        %v3125 = vsel %vm518, %v3032, 0.0
        %v3126 = vadd.f32 %v3124, %v3125
        %v3127 = vsel %vm518, %v3034, 0.0
        %v3128 = vadd.f32 %v3126, %v3127
        %v3129 = vsel %vm518, %v3036, 0.0
        %v3130 = vadd.f32 %v3128, %v3129
        %v3131 = vsel %vm518, %v3037, 0.0
        %v3132 = vsel %vm518, %v3039, 0.0
        %v3133 = vadd.f32 %v3131, %v3132
        %v3134 = vsel %vm518, %v3041, 0.0
        %v3135 = vadd.f32 %v3133, %v3134
        %v3136 = vsel %vm518, %v3043, 0.0
        %v3137 = vadd.f32 %v3135, %v3136
        %v3138 = vsel %vm518, %v3038, 0.0
        %v3139 = vsel %vm518, %v3040, 0.0
        %v3140 = vadd.f32 %v3138, %v3139
        %v3141 = vsel %vm518, %v3042, 0.0
        %v3142 = vadd.f32 %v3140, %v3141
        %v3143 = vsel %vm518, %v3044, 0.0
        %v3144 = vadd.f32 %v3142, %v3143
        %v3145 = vsel %vm518, %v3045, 0.0
        %v3146 = vsel %vm518, %v3047, 0.0
        %v3147 = vadd.f32 %v3145, %v3146
        %v3148 = vsel %vm518, %v3049, 0.0
        %v3149 = vadd.f32 %v3147, %v3148
        %v3150 = vsel %vm518, %v3051, 0.0
        %v3151 = vadd.f32 %v3149, %v3150
        %v3152 = vsel %vm518, %v3046, 0.0
        %v3153 = vsel %vm518, %v3048, 0.0
        %v3154 = vadd.f32 %v3152, %v3153
        %v3155 = vsel %vm518, %v3050, 0.0
        %v3156 = vadd.f32 %v3154, %v3155
        %v3157 = vsel %vm518, %v3052, 0.0
        %v3158 = vadd.f32 %v3156, %v3157
        %v3159 = vsel %vm518, %v3053, 0.0
        %v3160 = vsel %vm518, %v3055, 0.0
        %v3161 = vadd.f32 %v3159, %v3160
        %v3162 = vsel %vm518, %v3057, 0.0
        %v3163 = vadd.f32 %v3161, %v3162
        %v3164 = vsel %vm518, %v3059, 0.0
        %v3165 = vadd.f32 %v3163, %v3164
        %v3166 = vsel %vm518, %v3054, 0.0
        %v3167 = vsel %vm518, %v3056, 0.0
        %v3168 = vadd.f32 %v3166, %v3167
        %v3169 = vsel %vm518, %v3058, 0.0
        %v3170 = vadd.f32 %v3168, %v3169
        %v3171 = vsel %vm518, %v3060, 0.0
        %v3172 = vadd.f32 %v3170, %v3171
        %v3173 = vadd.f32 %v2787, %v3067
        %v3174 = vadd.f32 %v2788, %v3074
        %v3175 = vadd.f32 %v2789, %v3081
        %v3176 = vadd.f32 %v2790, %v3088
        %v3177 = vadd.f32 %v2791, %v3095
        %v3178 = vadd.f32 %v2792, %v3102
        %v3179 = vadd.f32 %v2793, %v3109
        %v3180 = vadd.f32 %v2794, %v3116
        %v3181 = vadd.f32 %v2795, %v3123
        %v3182 = vadd.f32 %v2796, %v3130
        %v3183 = vadd.f32 %v2797, %v3137
        %v3184 = vadd.f32 %v2798, %v3144
        %v3185 = vadd.f32 %v2799, %v3151
        %v3186 = vadd.f32 %v2800, %v3158
        %v3187 = vadd.f32 %v2801, %v3165
        %v3188 = vadd.f32 %v2802, %v3172
        %s3189 = scalar_lea.vmem %s1, 56
        %v3190 = vld [vmem:[%s3189] sm:$0xff]
        %v3191 = vlaneseq
        %v3192 = vshrl.u32 %v3191, 7
        %v3193 = vsub.s32 0, %v3192
        %v3194 = vrot.slane %v3190, %v3193
        %3196 = vbcast.lane.b32.xlu0 %v3194, 256
        %v3197 = vpop.permute.xlu0 %3196
        %v3198 = vlaneseq
        %v3199 = vshrl.u32 %v3198, 7
        %v3200 = vsub.s32 1, %v3199
        %v3201 = vrot.slane %v3190, %v3200
        %3203 = vbcast.lane.b32.xlu0 %v3201, 256
        %v3204 = vpop.permute.xlu0 %3203
        %v3205 = vlaneseq
        %v3206 = vshrl.u32 %v3205, 7
        %v3207 = vsub.s32 2, %v3206
        %v3208 = vrot.slane %v3190, %v3207
        %3210 = vbcast.lane.b32.xlu0 %v3208, 256
        %v3211 = vpop.permute.xlu0 %3210
        %v3212 = vlaneseq
        %v3213 = vshrl.u32 %v3212, 7
        %v3214 = vsub.s32 3, %v3213
        %v3215 = vrot.slane %v3190, %v3214
        %3217 = vbcast.lane.b32.xlu0 %v3215, 256
        %v3218 = vpop.permute.xlu0 %3217
        %v3219 = vlaneseq
        %v3220 = vshrl.u32 %v3219, 7
        %v3221 = vsub.s32 4, %v3220
        %v3222 = vrot.slane %v3190, %v3221
        %3224 = vbcast.lane.b32.xlu0 %v3222, 256
        %v3225 = vpop.permute.xlu0 %3224
        %v3226 = vlaneseq
        %v3227 = vshrl.u32 %v3226, 7
        %v3228 = vsub.s32 5, %v3227
        %v3229 = vrot.slane %v3190, %v3228
        %3231 = vbcast.lane.b32.xlu0 %v3229, 256
        %v3232 = vpop.permute.xlu0 %3231
        %v3233 = vlaneseq
        %v3234 = vshrl.u32 %v3233, 7
        %v3235 = vsub.s32 6, %v3234
        %v3236 = vrot.slane %v3190, %v3235
        %3238 = vbcast.lane.b32.xlu0 %v3236, 256
        %v3239 = vpop.permute.xlu0 %3238
        %v3240 = vlaneseq
        %v3241 = vshrl.u32 %v3240, 7
        %v3242 = vsub.s32 7, %v3241
        %v3243 = vrot.slane %v3190, %v3242
        %3245 = vbcast.lane.b32.xlu0 %v3243, 256
        %v3246 = vpop.permute.xlu0 %3245
        %v3247 = vlaneseq
        %v3248 = vshrl.u32 %v3247, 7
        %v3249 = vsub.s32 0, %v3248
        %v3250 = vrot.slane %v3197, %v3249
        %v3251 = vlaneseq
        %v3252 = vshrl.u32 %v3251, 7
        %v3253 = vsub.s32 1, %v3252
        %v3254 = vrot.slane %v3197, %v3253
        %v3255 = vlaneseq
        %v3256 = vshrl.u32 %v3255, 7
        %v3257 = vsub.s32 2, %v3256
        %v3258 = vrot.slane %v3197, %v3257
        %v3259 = vlaneseq
        %v3260 = vshrl.u32 %v3259, 7
        %v3261 = vsub.s32 3, %v3260
        %v3262 = vrot.slane %v3197, %v3261
        %v3263 = vlaneseq
        %v3264 = vshrl.u32 %v3263, 7
        %v3265 = vsub.s32 0, %v3264
        %v3266 = vrot.slane %v3204, %v3265
        %v3267 = vlaneseq
        %v3268 = vshrl.u32 %v3267, 7
        %v3269 = vsub.s32 1, %v3268
        %v3270 = vrot.slane %v3204, %v3269
        %v3271 = vlaneseq
        %v3272 = vshrl.u32 %v3271, 7
        %v3273 = vsub.s32 2, %v3272
        %v3274 = vrot.slane %v3204, %v3273
        %v3275 = vlaneseq
        %v3276 = vshrl.u32 %v3275, 7
        %v3277 = vsub.s32 3, %v3276
        %v3278 = vrot.slane %v3204, %v3277
        %v3279 = vlaneseq
        %v3280 = vshrl.u32 %v3279, 7
        %v3281 = vsub.s32 0, %v3280
        %v3282 = vrot.slane %v3211, %v3281
        %v3283 = vlaneseq
        %v3284 = vshrl.u32 %v3283, 7
        %v3285 = vsub.s32 1, %v3284
        %v3286 = vrot.slane %v3211, %v3285
        %v3287 = vlaneseq
        %v3288 = vshrl.u32 %v3287, 7
        %v3289 = vsub.s32 2, %v3288
        %v3290 = vrot.slane %v3211, %v3289
        %v3291 = vlaneseq
        %v3292 = vshrl.u32 %v3291, 7
        %v3293 = vsub.s32 3, %v3292
        %v3294 = vrot.slane %v3211, %v3293
        %v3295 = vlaneseq
        %v3296 = vshrl.u32 %v3295, 7
        %v3297 = vsub.s32 0, %v3296
        %v3298 = vrot.slane %v3218, %v3297
        %v3299 = vlaneseq
        %v3300 = vshrl.u32 %v3299, 7
        %v3301 = vsub.s32 1, %v3300
        %v3302 = vrot.slane %v3218, %v3301
        %v3303 = vlaneseq
        %v3304 = vshrl.u32 %v3303, 7
        %v3305 = vsub.s32 2, %v3304
        %v3306 = vrot.slane %v3218, %v3305
        %v3307 = vlaneseq
        %v3308 = vshrl.u32 %v3307, 7
        %v3309 = vsub.s32 3, %v3308
        %v3310 = vrot.slane %v3218, %v3309
        %v3311 = vlaneseq
        %v3312 = vshrl.u32 %v3311, 7
        %v3313 = vsub.s32 0, %v3312
        %v3314 = vrot.slane %v3225, %v3313
        %v3315 = vlaneseq
        %v3316 = vshrl.u32 %v3315, 7
        %v3317 = vsub.s32 1, %v3316
        %v3318 = vrot.slane %v3225, %v3317
        %v3319 = vlaneseq
        %v3320 = vshrl.u32 %v3319, 7
        %v3321 = vsub.s32 2, %v3320
        %v3322 = vrot.slane %v3225, %v3321
        %v3323 = vlaneseq
        %v3324 = vshrl.u32 %v3323, 7
        %v3325 = vsub.s32 3, %v3324
        %v3326 = vrot.slane %v3225, %v3325
        %v3327 = vlaneseq
        %v3328 = vshrl.u32 %v3327, 7
        %v3329 = vsub.s32 0, %v3328
        %v3330 = vrot.slane %v3232, %v3329
        %v3331 = vlaneseq
        %v3332 = vshrl.u32 %v3331, 7
        %v3333 = vsub.s32 1, %v3332
        %v3334 = vrot.slane %v3232, %v3333
        %v3335 = vlaneseq
        %v3336 = vshrl.u32 %v3335, 7
        %v3337 = vsub.s32 2, %v3336
        %v3338 = vrot.slane %v3232, %v3337
        %v3339 = vlaneseq
        %v3340 = vshrl.u32 %v3339, 7
        %v3341 = vsub.s32 3, %v3340
        %v3342 = vrot.slane %v3232, %v3341
        %v3343 = vlaneseq
        %v3344 = vshrl.u32 %v3343, 7
        %v3345 = vsub.s32 0, %v3344
        %v3346 = vrot.slane %v3239, %v3345
        %v3347 = vlaneseq
        %v3348 = vshrl.u32 %v3347, 7
        %v3349 = vsub.s32 1, %v3348
        %v3350 = vrot.slane %v3239, %v3349
        %v3351 = vlaneseq
        %v3352 = vshrl.u32 %v3351, 7
        %v3353 = vsub.s32 2, %v3352
        %v3354 = vrot.slane %v3239, %v3353
        %v3355 = vlaneseq
        %v3356 = vshrl.u32 %v3355, 7
        %v3357 = vsub.s32 3, %v3356
        %v3358 = vrot.slane %v3239, %v3357
        %v3359 = vlaneseq
        %v3360 = vshrl.u32 %v3359, 7
        %v3361 = vsub.s32 0, %v3360
        %v3362 = vrot.slane %v3246, %v3361
        %v3363 = vlaneseq
        %v3364 = vshrl.u32 %v3363, 7
        %v3365 = vsub.s32 1, %v3364
        %v3366 = vrot.slane %v3246, %v3365
        %v3367 = vlaneseq
        %v3368 = vshrl.u32 %v3367, 7
        %v3369 = vsub.s32 2, %v3368
        %v3370 = vrot.slane %v3246, %v3369
        %v3371 = vlaneseq
        %v3372 = vshrl.u32 %v3371, 7
        %v3373 = vsub.s32 3, %v3372
        %v3374 = vrot.slane %v3246, %v3373
        %v3375 = vmul.f32 %v3250, %v2803
        %v3376 = vmul.f32 %v3250, %v2804
        %v3377 = vmul.f32 %v3254, %v2805
        %v3378 = vmul.f32 %v3254, %v2806
        %v3379 = vmul.f32 %v3258, %v2807
        %v3380 = vmul.f32 %v3258, %v2808
        %v3381 = vmul.f32 %v3262, %v2809
        %v3382 = vmul.f32 %v3262, %v2810
        %v3383 = vmul.f32 %v3266, %v2803
        %v3384 = vmul.f32 %v3266, %v2804
        %v3385 = vmul.f32 %v3270, %v2805
        %v3386 = vmul.f32 %v3270, %v2806
        %v3387 = vmul.f32 %v3274, %v2807
        %v3388 = vmul.f32 %v3274, %v2808
        %v3389 = vmul.f32 %v3278, %v2809
        %v3390 = vmul.f32 %v3278, %v2810
        %v3391 = vmul.f32 %v3282, %v2803
        %v3392 = vmul.f32 %v3282, %v2804
        %v3393 = vmul.f32 %v3286, %v2805
        %v3394 = vmul.f32 %v3286, %v2806
        %v3395 = vmul.f32 %v3290, %v2807
        %v3396 = vmul.f32 %v3290, %v2808
        %v3397 = vmul.f32 %v3294, %v2809
        %v3398 = vmul.f32 %v3294, %v2810
        %v3399 = vmul.f32 %v3298, %v2803
        %v3400 = vmul.f32 %v3298, %v2804
        %v3401 = vmul.f32 %v3302, %v2805
        %v3402 = vmul.f32 %v3302, %v2806
        %v3403 = vmul.f32 %v3306, %v2807
        %v3404 = vmul.f32 %v3306, %v2808
        %v3405 = vmul.f32 %v3310, %v2809
        %v3406 = vmul.f32 %v3310, %v2810
        %v3407 = vmul.f32 %v3314, %v2803
        %v3408 = vmul.f32 %v3314, %v2804
        %v3409 = vmul.f32 %v3318, %v2805
        %v3410 = vmul.f32 %v3318, %v2806
        %v3411 = vmul.f32 %v3322, %v2807
        %v3412 = vmul.f32 %v3322, %v2808
        %v3413 = vmul.f32 %v3326, %v2809
        %v3414 = vmul.f32 %v3326, %v2810
        %v3415 = vmul.f32 %v3330, %v2803
        %v3416 = vmul.f32 %v3330, %v2804
        %v3417 = vmul.f32 %v3334, %v2805
        %v3418 = vmul.f32 %v3334, %v2806
        %v3419 = vmul.f32 %v3338, %v2807
        %v3420 = vmul.f32 %v3338, %v2808
        %v3421 = vmul.f32 %v3342, %v2809
        %v3422 = vmul.f32 %v3342, %v2810
        %v3423 = vmul.f32 %v3346, %v2803
        %v3424 = vmul.f32 %v3346, %v2804
        %v3425 = vmul.f32 %v3350, %v2805
        %v3426 = vmul.f32 %v3350, %v2806
        %v3427 = vmul.f32 %v3354, %v2807
        %v3428 = vmul.f32 %v3354, %v2808
        %v3429 = vmul.f32 %v3358, %v2809
        %v3430 = vmul.f32 %v3358, %v2810
        %v3431 = vmul.f32 %v3362, %v2803
        %v3432 = vmul.f32 %v3362, %v2804
        %v3433 = vmul.f32 %v3366, %v2805
        %v3434 = vmul.f32 %v3366, %v2806
        %v3435 = vmul.f32 %v3370, %v2807
        %v3436 = vmul.f32 %v3370, %v2808
        %v3437 = vmul.f32 %v3374, %v2809
        %v3438 = vmul.f32 %v3374, %v2810
        %v3439 = vsel %vm897, %v3375, 0.0
        %v3440 = vsel %vm897, %v3377, 0.0
        %v3441 = vadd.f32 %v3439, %v3440
        %v3442 = vsel %vm897, %v3379, 0.0
        %v3443 = vadd.f32 %v3441, %v3442
        %v3444 = vsel %vm897, %v3381, 0.0
        %v3445 = vadd.f32 %v3443, %v3444
        %v3446 = vsel %vm897, %v3376, 0.0
        %v3447 = vsel %vm897, %v3378, 0.0
        %v3448 = vadd.f32 %v3446, %v3447
        %v3449 = vsel %vm897, %v3380, 0.0
        %v3450 = vadd.f32 %v3448, %v3449
        %v3451 = vsel %vm897, %v3382, 0.0
        %v3452 = vadd.f32 %v3450, %v3451
        %v3453 = vsel %vm897, %v3383, 0.0
        %v3454 = vsel %vm897, %v3385, 0.0
        %v3455 = vadd.f32 %v3453, %v3454
        %v3456 = vsel %vm897, %v3387, 0.0
        %v3457 = vadd.f32 %v3455, %v3456
        %v3458 = vsel %vm897, %v3389, 0.0
        %v3459 = vadd.f32 %v3457, %v3458
        %v3460 = vsel %vm897, %v3384, 0.0
        %v3461 = vsel %vm897, %v3386, 0.0
        %v3462 = vadd.f32 %v3460, %v3461
        %v3463 = vsel %vm897, %v3388, 0.0
        %v3464 = vadd.f32 %v3462, %v3463
        %v3465 = vsel %vm897, %v3390, 0.0
        %v3466 = vadd.f32 %v3464, %v3465
        %v3467 = vsel %vm897, %v3391, 0.0
        %v3468 = vsel %vm897, %v3393, 0.0
        %v3469 = vadd.f32 %v3467, %v3468
        %v3470 = vsel %vm897, %v3395, 0.0
        %v3471 = vadd.f32 %v3469, %v3470
        %v3472 = vsel %vm897, %v3397, 0.0
        %v3473 = vadd.f32 %v3471, %v3472
        %v3474 = vsel %vm897, %v3392, 0.0
        %v3475 = vsel %vm897, %v3394, 0.0
        %v3476 = vadd.f32 %v3474, %v3475
        %v3477 = vsel %vm897, %v3396, 0.0
        %v3478 = vadd.f32 %v3476, %v3477
        %v3479 = vsel %vm897, %v3398, 0.0
        %v3480 = vadd.f32 %v3478, %v3479
        %v3481 = vsel %vm897, %v3399, 0.0
        %v3482 = vsel %vm897, %v3401, 0.0
        %v3483 = vadd.f32 %v3481, %v3482
        %v3484 = vsel %vm897, %v3403, 0.0
        %v3485 = vadd.f32 %v3483, %v3484
        %v3486 = vsel %vm897, %v3405, 0.0
        %v3487 = vadd.f32 %v3485, %v3486
        %v3488 = vsel %vm897, %v3400, 0.0
        %v3489 = vsel %vm897, %v3402, 0.0
        %v3490 = vadd.f32 %v3488, %v3489
        %v3491 = vsel %vm897, %v3404, 0.0
        %v3492 = vadd.f32 %v3490, %v3491
        %v3493 = vsel %vm897, %v3406, 0.0
        %v3494 = vadd.f32 %v3492, %v3493
        %v3495 = vsel %vm897, %v3407, 0.0
        %v3496 = vsel %vm897, %v3409, 0.0
        %v3497 = vadd.f32 %v3495, %v3496
        %v3498 = vsel %vm897, %v3411, 0.0
        %v3499 = vadd.f32 %v3497, %v3498
        %v3500 = vsel %vm897, %v3413, 0.0
        %v3501 = vadd.f32 %v3499, %v3500
        %v3502 = vsel %vm897, %v3408, 0.0
        %v3503 = vsel %vm897, %v3410, 0.0
        %v3504 = vadd.f32 %v3502, %v3503
        %v3505 = vsel %vm897, %v3412, 0.0
        %v3506 = vadd.f32 %v3504, %v3505
        %v3507 = vsel %vm897, %v3414, 0.0
        %v3508 = vadd.f32 %v3506, %v3507
        %v3509 = vsel %vm897, %v3415, 0.0
        %v3510 = vsel %vm897, %v3417, 0.0
        %v3511 = vadd.f32 %v3509, %v3510
        %v3512 = vsel %vm897, %v3419, 0.0
        %v3513 = vadd.f32 %v3511, %v3512
        %v3514 = vsel %vm897, %v3421, 0.0
        %v3515 = vadd.f32 %v3513, %v3514
        %v3516 = vsel %vm897, %v3416, 0.0
        %v3517 = vsel %vm897, %v3418, 0.0
        %v3518 = vadd.f32 %v3516, %v3517
        %v3519 = vsel %vm897, %v3420, 0.0
        %v3520 = vadd.f32 %v3518, %v3519
        %v3521 = vsel %vm897, %v3422, 0.0
        %v3522 = vadd.f32 %v3520, %v3521
        %v3523 = vsel %vm897, %v3423, 0.0
        %v3524 = vsel %vm897, %v3425, 0.0
        %v3525 = vadd.f32 %v3523, %v3524
        %v3526 = vsel %vm897, %v3427, 0.0
        %v3527 = vadd.f32 %v3525, %v3526
        %v3528 = vsel %vm897, %v3429, 0.0
        %v3529 = vadd.f32 %v3527, %v3528
        %v3530 = vsel %vm897, %v3424, 0.0
        %v3531 = vsel %vm897, %v3426, 0.0
        %v3532 = vadd.f32 %v3530, %v3531
        %v3533 = vsel %vm897, %v3428, 0.0
        %v3534 = vadd.f32 %v3532, %v3533
        %v3535 = vsel %vm897, %v3430, 0.0
        %v3536 = vadd.f32 %v3534, %v3535
        %v3537 = vsel %vm897, %v3431, 0.0
        %v3538 = vsel %vm897, %v3433, 0.0
        %v3539 = vadd.f32 %v3537, %v3538
        %v3540 = vsel %vm897, %v3435, 0.0
        %v3541 = vadd.f32 %v3539, %v3540
        %v3542 = vsel %vm897, %v3437, 0.0
        %v3543 = vadd.f32 %v3541, %v3542
        %v3544 = vsel %vm897, %v3432, 0.0
        %v3545 = vsel %vm897, %v3434, 0.0
        %v3546 = vadd.f32 %v3544, %v3545
        %v3547 = vsel %vm897, %v3436, 0.0
        %v3548 = vadd.f32 %v3546, %v3547
        %v3549 = vsel %vm897, %v3438, 0.0
        %v3550 = vadd.f32 %v3548, %v3549
        %3567 = vrot.lane.b32.xlu0 %v3445, 127
        %v3568 = vpop.permute.xlu0 %3567
        %3569 = vrot.lane.b32.xlu0 %v3452, 127
        %v3570 = vpop.permute.xlu0 %3569
        %3571 = vrot.lane.b32.xlu0 %v3459, 127
        %v3572 = vpop.permute.xlu0 %3571
        %3573 = vrot.lane.b32.xlu0 %v3466, 127
        %v3574 = vpop.permute.xlu0 %3573
        %3575 = vrot.lane.b32.xlu0 %v3473, 127
        %v3576 = vpop.permute.xlu0 %3575
        %3577 = vrot.lane.b32.xlu0 %v3480, 127
        %v3578 = vpop.permute.xlu0 %3577
        %3579 = vrot.lane.b32.xlu0 %v3487, 127
        %v3580 = vpop.permute.xlu0 %3579
        %3581 = vrot.lane.b32.xlu0 %v3494, 127
        %v3582 = vpop.permute.xlu0 %3581
        %3583 = vrot.lane.b32.xlu0 %v3501, 127
        %v3584 = vpop.permute.xlu0 %3583
        %3585 = vrot.lane.b32.xlu0 %v3508, 127
        %v3586 = vpop.permute.xlu0 %3585
        %3587 = vrot.lane.b32.xlu0 %v3515, 127
        %v3588 = vpop.permute.xlu0 %3587
        %3589 = vrot.lane.b32.xlu0 %v3522, 127
        %v3590 = vpop.permute.xlu0 %3589
        %3591 = vrot.lane.b32.xlu0 %v3529, 127
        %v3592 = vpop.permute.xlu0 %3591
        %3593 = vrot.lane.b32.xlu0 %v3536, 127
        %v3594 = vpop.permute.xlu0 %3593
        %3595 = vrot.lane.b32.xlu0 %v3543, 127
        %v3596 = vpop.permute.xlu0 %3595
        %3597 = vrot.lane.b32.xlu0 %v3550, 127
        %v3598 = vpop.permute.xlu0 %3597
        %v3615 = vadd.f32 %v3173, %v3568
        %v3616 = vadd.f32 %v3174, %v3570
        %v3617 = vadd.f32 %v3175, %v3572
        %v3618 = vadd.f32 %v3176, %v3574
        %v3619 = vadd.f32 %v3177, %v3576
        %v3620 = vadd.f32 %v3178, %v3578
        %v3621 = vadd.f32 %v3179, %v3580
        %v3622 = vadd.f32 %v3180, %v3582
        %v3623 = vadd.f32 %v3181, %v3584
        %v3624 = vadd.f32 %v3182, %v3586
        %v3625 = vadd.f32 %v3183, %v3588
        %v3626 = vadd.f32 %v3184, %v3590
        %v3627 = vadd.f32 %v3185, %v3592
        %v3628 = vadd.f32 %v3186, %v3594
        %v3629 = vadd.f32 %v3187, %v3596
        %v3630 = vadd.f32 %v3188, %v3598
        %s3631 = scalar_lea.vmem %s1, 64
        %v3632 = vld [vmem:[%s3631] sm:$0xff]
        %v3633 = vlaneseq
        %v3634 = vshrl.u32 %v3633, 7
        %v3635 = vsub.s32 0, %v3634
        %v3636 = vrot.slane %v3632, %v3635
        %3638 = vbcast.lane.b32.xlu0 %v3636, 256
        %v3639 = vpop.permute.xlu0 %3638
        %v3640 = vlaneseq
        %v3641 = vshrl.u32 %v3640, 7
        %v3642 = vsub.s32 1, %v3641
        %v3643 = vrot.slane %v3632, %v3642
        %3645 = vbcast.lane.b32.xlu0 %v3643, 256
        %v3646 = vpop.permute.xlu0 %3645
        %v3647 = vlaneseq
        %v3648 = vshrl.u32 %v3647, 7
        %v3649 = vsub.s32 2, %v3648
        %v3650 = vrot.slane %v3632, %v3649
        %3652 = vbcast.lane.b32.xlu0 %v3650, 256
        %v3653 = vpop.permute.xlu0 %3652
        %v3654 = vlaneseq
        %v3655 = vshrl.u32 %v3654, 7
        %v3656 = vsub.s32 3, %v3655
        %v3657 = vrot.slane %v3632, %v3656
        %3659 = vbcast.lane.b32.xlu0 %v3657, 256
        %v3660 = vpop.permute.xlu0 %3659
        %v3661 = vlaneseq
        %v3662 = vshrl.u32 %v3661, 7
        %v3663 = vsub.s32 4, %v3662
        %v3664 = vrot.slane %v3632, %v3663
        %3666 = vbcast.lane.b32.xlu0 %v3664, 256
        %v3667 = vpop.permute.xlu0 %3666
        %v3668 = vlaneseq
        %v3669 = vshrl.u32 %v3668, 7
        %v3670 = vsub.s32 5, %v3669
        %v3671 = vrot.slane %v3632, %v3670
        %3673 = vbcast.lane.b32.xlu0 %v3671, 256
        %v3674 = vpop.permute.xlu0 %3673
        %v3675 = vlaneseq
        %v3676 = vshrl.u32 %v3675, 7
        %v3677 = vsub.s32 6, %v3676
        %v3678 = vrot.slane %v3632, %v3677
        %3680 = vbcast.lane.b32.xlu0 %v3678, 256
        %v3681 = vpop.permute.xlu0 %3680
        %v3682 = vlaneseq
        %v3683 = vshrl.u32 %v3682, 7
        %v3684 = vsub.s32 7, %v3683
        %v3685 = vrot.slane %v3632, %v3684
        %3687 = vbcast.lane.b32.xlu0 %v3685, 256
        %v3688 = vpop.permute.xlu0 %3687
        %v3689 = vlaneseq
        %v3690 = vshrl.u32 %v3689, 7
        %v3691 = vsub.s32 0, %v3690
        %v3692 = vrot.slane %v3639, %v3691
        %v3693 = vlaneseq
        %v3694 = vshrl.u32 %v3693, 7
        %v3695 = vsub.s32 1, %v3694
        %v3696 = vrot.slane %v3639, %v3695
        %v3697 = vlaneseq
        %v3698 = vshrl.u32 %v3697, 7
        %v3699 = vsub.s32 2, %v3698
        %v3700 = vrot.slane %v3639, %v3699
        %v3701 = vlaneseq
        %v3702 = vshrl.u32 %v3701, 7
        %v3703 = vsub.s32 3, %v3702
        %v3704 = vrot.slane %v3639, %v3703
        %v3705 = vlaneseq
        %v3706 = vshrl.u32 %v3705, 7
        %v3707 = vsub.s32 0, %v3706
        %v3708 = vrot.slane %v3646, %v3707
        %v3709 = vlaneseq
        %v3710 = vshrl.u32 %v3709, 7
        %v3711 = vsub.s32 1, %v3710
        %v3712 = vrot.slane %v3646, %v3711
        %v3713 = vlaneseq
        %v3714 = vshrl.u32 %v3713, 7
        %v3715 = vsub.s32 2, %v3714
        %v3716 = vrot.slane %v3646, %v3715
        %v3717 = vlaneseq
        %v3718 = vshrl.u32 %v3717, 7
        %v3719 = vsub.s32 3, %v3718
        %v3720 = vrot.slane %v3646, %v3719
        %v3721 = vlaneseq
        %v3722 = vshrl.u32 %v3721, 7
        %v3723 = vsub.s32 0, %v3722
        %v3724 = vrot.slane %v3653, %v3723
        %v3725 = vlaneseq
        %v3726 = vshrl.u32 %v3725, 7
        %v3727 = vsub.s32 1, %v3726
        %v3728 = vrot.slane %v3653, %v3727
        %v3729 = vlaneseq
        %v3730 = vshrl.u32 %v3729, 7
        %v3731 = vsub.s32 2, %v3730
        %v3732 = vrot.slane %v3653, %v3731
        %v3733 = vlaneseq
        %v3734 = vshrl.u32 %v3733, 7
        %v3735 = vsub.s32 3, %v3734
        %v3736 = vrot.slane %v3653, %v3735
        %v3737 = vlaneseq
        %v3738 = vshrl.u32 %v3737, 7
        %v3739 = vsub.s32 0, %v3738
        %v3740 = vrot.slane %v3660, %v3739
        %v3741 = vlaneseq
        %v3742 = vshrl.u32 %v3741, 7
        %v3743 = vsub.s32 1, %v3742
        %v3744 = vrot.slane %v3660, %v3743
        %v3745 = vlaneseq
        %v3746 = vshrl.u32 %v3745, 7
        %v3747 = vsub.s32 2, %v3746
        %v3748 = vrot.slane %v3660, %v3747
        %v3749 = vlaneseq
        %v3750 = vshrl.u32 %v3749, 7
        %v3751 = vsub.s32 3, %v3750
        %v3752 = vrot.slane %v3660, %v3751
        %v3753 = vlaneseq
        %v3754 = vshrl.u32 %v3753, 7
        %v3755 = vsub.s32 0, %v3754
        %v3756 = vrot.slane %v3667, %v3755
        %v3757 = vlaneseq
        %v3758 = vshrl.u32 %v3757, 7
        %v3759 = vsub.s32 1, %v3758
        %v3760 = vrot.slane %v3667, %v3759
        %v3761 = vlaneseq
        %v3762 = vshrl.u32 %v3761, 7
        %v3763 = vsub.s32 2, %v3762
        %v3764 = vrot.slane %v3667, %v3763
        %v3765 = vlaneseq
        %v3766 = vshrl.u32 %v3765, 7
        %v3767 = vsub.s32 3, %v3766
        %v3768 = vrot.slane %v3667, %v3767
        %v3769 = vlaneseq
        %v3770 = vshrl.u32 %v3769, 7
        %v3771 = vsub.s32 0, %v3770
        %v3772 = vrot.slane %v3674, %v3771
        %v3773 = vlaneseq
        %v3774 = vshrl.u32 %v3773, 7
        %v3775 = vsub.s32 1, %v3774
        %v3776 = vrot.slane %v3674, %v3775
        %v3777 = vlaneseq
        %v3778 = vshrl.u32 %v3777, 7
        %v3779 = vsub.s32 2, %v3778
        %v3780 = vrot.slane %v3674, %v3779
        %v3781 = vlaneseq
        %v3782 = vshrl.u32 %v3781, 7
        %v3783 = vsub.s32 3, %v3782
        %v3784 = vrot.slane %v3674, %v3783
        %v3785 = vlaneseq
        %v3786 = vshrl.u32 %v3785, 7
        %v3787 = vsub.s32 0, %v3786
        %v3788 = vrot.slane %v3681, %v3787
        %v3789 = vlaneseq
        %v3790 = vshrl.u32 %v3789, 7
        %v3791 = vsub.s32 1, %v3790
        %v3792 = vrot.slane %v3681, %v3791
        %v3793 = vlaneseq
        %v3794 = vshrl.u32 %v3793, 7
        %v3795 = vsub.s32 2, %v3794
        %v3796 = vrot.slane %v3681, %v3795
        %v3797 = vlaneseq
        %v3798 = vshrl.u32 %v3797, 7
        %v3799 = vsub.s32 3, %v3798
        %v3800 = vrot.slane %v3681, %v3799
        %v3801 = vlaneseq
        %v3802 = vshrl.u32 %v3801, 7
        %v3803 = vsub.s32 0, %v3802
        %v3804 = vrot.slane %v3688, %v3803
        %v3805 = vlaneseq
        %v3806 = vshrl.u32 %v3805, 7
        %v3807 = vsub.s32 1, %v3806
        %v3808 = vrot.slane %v3688, %v3807
        %v3809 = vlaneseq
        %v3810 = vshrl.u32 %v3809, 7
        %v3811 = vsub.s32 2, %v3810
        %v3812 = vrot.slane %v3688, %v3811
        %v3813 = vlaneseq
        %v3814 = vshrl.u32 %v3813, 7
        %v3815 = vsub.s32 3, %v3814
        %v3816 = vrot.slane %v3688, %v3815
        %v3817 = vmul.f32 %v3692, %v2803
        %v3818 = vmul.f32 %v3692, %v2804
        %v3819 = vmul.f32 %v3696, %v2805
        %v3820 = vmul.f32 %v3696, %v2806
        %v3821 = vmul.f32 %v3700, %v2807
        %v3822 = vmul.f32 %v3700, %v2808
        %v3823 = vmul.f32 %v3704, %v2809
        %v3824 = vmul.f32 %v3704, %v2810
        %v3825 = vmul.f32 %v3708, %v2803
        %v3826 = vmul.f32 %v3708, %v2804
        %v3827 = vmul.f32 %v3712, %v2805
        %v3828 = vmul.f32 %v3712, %v2806
        %v3829 = vmul.f32 %v3716, %v2807
        %v3830 = vmul.f32 %v3716, %v2808
        %v3831 = vmul.f32 %v3720, %v2809
        %v3832 = vmul.f32 %v3720, %v2810
        %v3833 = vmul.f32 %v3724, %v2803
        %v3834 = vmul.f32 %v3724, %v2804
        %v3835 = vmul.f32 %v3728, %v2805
        %v3836 = vmul.f32 %v3728, %v2806
        %v3837 = vmul.f32 %v3732, %v2807
        %v3838 = vmul.f32 %v3732, %v2808
        %v3839 = vmul.f32 %v3736, %v2809
        %v3840 = vmul.f32 %v3736, %v2810
        %v3841 = vmul.f32 %v3740, %v2803
        %v3842 = vmul.f32 %v3740, %v2804
        %v3843 = vmul.f32 %v3744, %v2805
        %v3844 = vmul.f32 %v3744, %v2806
        %v3845 = vmul.f32 %v3748, %v2807
        %v3846 = vmul.f32 %v3748, %v2808
        %v3847 = vmul.f32 %v3752, %v2809
        %v3848 = vmul.f32 %v3752, %v2810
        %v3849 = vmul.f32 %v3756, %v2803
        %v3850 = vmul.f32 %v3756, %v2804
        %v3851 = vmul.f32 %v3760, %v2805
        %v3852 = vmul.f32 %v3760, %v2806
        %v3853 = vmul.f32 %v3764, %v2807
        %v3854 = vmul.f32 %v3764, %v2808
        %v3855 = vmul.f32 %v3768, %v2809
        %v3856 = vmul.f32 %v3768, %v2810
        %v3857 = vmul.f32 %v3772, %v2803
        %v3858 = vmul.f32 %v3772, %v2804
        %v3859 = vmul.f32 %v3776, %v2805
        %v3860 = vmul.f32 %v3776, %v2806
        %v3861 = vmul.f32 %v3780, %v2807
        %v3862 = vmul.f32 %v3780, %v2808
        %v3863 = vmul.f32 %v3784, %v2809
        %v3864 = vmul.f32 %v3784, %v2810
        %v3865 = vmul.f32 %v3788, %v2803
        %v3866 = vmul.f32 %v3788, %v2804
        %v3867 = vmul.f32 %v3792, %v2805
        %v3868 = vmul.f32 %v3792, %v2806
        %v3869 = vmul.f32 %v3796, %v2807
        %v3870 = vmul.f32 %v3796, %v2808
        %v3871 = vmul.f32 %v3800, %v2809
        %v3872 = vmul.f32 %v3800, %v2810
        %v3873 = vmul.f32 %v3804, %v2803
        %v3874 = vmul.f32 %v3804, %v2804
        %v3875 = vmul.f32 %v3808, %v2805
        %v3876 = vmul.f32 %v3808, %v2806
        %v3877 = vmul.f32 %v3812, %v2807
        %v3878 = vmul.f32 %v3812, %v2808
        %v3879 = vmul.f32 %v3816, %v2809
        %v3880 = vmul.f32 %v3816, %v2810
        %v3881 = vsel %vm1340, %v3817, 0.0
        %v3882 = vsel %vm1340, %v3819, 0.0
        %v3883 = vadd.f32 %v3881, %v3882
        %v3884 = vsel %vm1340, %v3821, 0.0
        %v3885 = vadd.f32 %v3883, %v3884
        %v3886 = vsel %vm1340, %v3823, 0.0
        %v3887 = vadd.f32 %v3885, %v3886
        %v3888 = vsel %vm1340, %v3818, 0.0
        %v3889 = vsel %vm1340, %v3820, 0.0
        %v3890 = vadd.f32 %v3888, %v3889
        %v3891 = vsel %vm1340, %v3822, 0.0
        %v3892 = vadd.f32 %v3890, %v3891
        %v3893 = vsel %vm1340, %v3824, 0.0
        %v3894 = vadd.f32 %v3892, %v3893
        %v3895 = vsel %vm1340, %v3825, 0.0
        %v3896 = vsel %vm1340, %v3827, 0.0
        %v3897 = vadd.f32 %v3895, %v3896
        %v3898 = vsel %vm1340, %v3829, 0.0
        %v3899 = vadd.f32 %v3897, %v3898
        %v3900 = vsel %vm1340, %v3831, 0.0
        %v3901 = vadd.f32 %v3899, %v3900
        %v3902 = vsel %vm1340, %v3826, 0.0
        %v3903 = vsel %vm1340, %v3828, 0.0
        %v3904 = vadd.f32 %v3902, %v3903
        %v3905 = vsel %vm1340, %v3830, 0.0
        %v3906 = vadd.f32 %v3904, %v3905
        %v3907 = vsel %vm1340, %v3832, 0.0
        %v3908 = vadd.f32 %v3906, %v3907
        %v3909 = vsel %vm1340, %v3833, 0.0
        %v3910 = vsel %vm1340, %v3835, 0.0
        %v3911 = vadd.f32 %v3909, %v3910
        %v3912 = vsel %vm1340, %v3837, 0.0
        %v3913 = vadd.f32 %v3911, %v3912
        %v3914 = vsel %vm1340, %v3839, 0.0
        %v3915 = vadd.f32 %v3913, %v3914
        %v3916 = vsel %vm1340, %v3834, 0.0
        %v3917 = vsel %vm1340, %v3836, 0.0
        %v3918 = vadd.f32 %v3916, %v3917
        %v3919 = vsel %vm1340, %v3838, 0.0
        %v3920 = vadd.f32 %v3918, %v3919
        %v3921 = vsel %vm1340, %v3840, 0.0
        %v3922 = vadd.f32 %v3920, %v3921
        %v3923 = vsel %vm1340, %v3841, 0.0
        %v3924 = vsel %vm1340, %v3843, 0.0
        %v3925 = vadd.f32 %v3923, %v3924
        %v3926 = vsel %vm1340, %v3845, 0.0
        %v3927 = vadd.f32 %v3925, %v3926
        %v3928 = vsel %vm1340, %v3847, 0.0
        %v3929 = vadd.f32 %v3927, %v3928
        %v3930 = vsel %vm1340, %v3842, 0.0
        %v3931 = vsel %vm1340, %v3844, 0.0
        %v3932 = vadd.f32 %v3930, %v3931
        %v3933 = vsel %vm1340, %v3846, 0.0
        %v3934 = vadd.f32 %v3932, %v3933
        %v3935 = vsel %vm1340, %v3848, 0.0
        %v3936 = vadd.f32 %v3934, %v3935
        %v3937 = vsel %vm1340, %v3849, 0.0
        %v3938 = vsel %vm1340, %v3851, 0.0
        %v3939 = vadd.f32 %v3937, %v3938
        %v3940 = vsel %vm1340, %v3853, 0.0
        %v3941 = vadd.f32 %v3939, %v3940
        %v3942 = vsel %vm1340, %v3855, 0.0
        %v3943 = vadd.f32 %v3941, %v3942
        %v3944 = vsel %vm1340, %v3850, 0.0
        %v3945 = vsel %vm1340, %v3852, 0.0
        %v3946 = vadd.f32 %v3944, %v3945
        %v3947 = vsel %vm1340, %v3854, 0.0
        %v3948 = vadd.f32 %v3946, %v3947
        %v3949 = vsel %vm1340, %v3856, 0.0
        %v3950 = vadd.f32 %v3948, %v3949
        %v3951 = vsel %vm1340, %v3857, 0.0
        %v3952 = vsel %vm1340, %v3859, 0.0
        %v3953 = vadd.f32 %v3951, %v3952
        %v3954 = vsel %vm1340, %v3861, 0.0
        %v3955 = vadd.f32 %v3953, %v3954
        %v3956 = vsel %vm1340, %v3863, 0.0
        %v3957 = vadd.f32 %v3955, %v3956
        %v3958 = vsel %vm1340, %v3858, 0.0
        %v3959 = vsel %vm1340, %v3860, 0.0
        %v3960 = vadd.f32 %v3958, %v3959
        %v3961 = vsel %vm1340, %v3862, 0.0
        %v3962 = vadd.f32 %v3960, %v3961
        %v3963 = vsel %vm1340, %v3864, 0.0
        %v3964 = vadd.f32 %v3962, %v3963
        %v3965 = vsel %vm1340, %v3865, 0.0
        %v3966 = vsel %vm1340, %v3867, 0.0
        %v3967 = vadd.f32 %v3965, %v3966
        %v3968 = vsel %vm1340, %v3869, 0.0
        %v3969 = vadd.f32 %v3967, %v3968
        %v3970 = vsel %vm1340, %v3871, 0.0
        %v3971 = vadd.f32 %v3969, %v3970
        %v3972 = vsel %vm1340, %v3866, 0.0
        %v3973 = vsel %vm1340, %v3868, 0.0
        %v3974 = vadd.f32 %v3972, %v3973
        %v3975 = vsel %vm1340, %v3870, 0.0
        %v3976 = vadd.f32 %v3974, %v3975
        %v3977 = vsel %vm1340, %v3872, 0.0
        %v3978 = vadd.f32 %v3976, %v3977
        %v3979 = vsel %vm1340, %v3873, 0.0
        %v3980 = vsel %vm1340, %v3875, 0.0
        %v3981 = vadd.f32 %v3979, %v3980
        %v3982 = vsel %vm1340, %v3877, 0.0
        %v3983 = vadd.f32 %v3981, %v3982
        %v3984 = vsel %vm1340, %v3879, 0.0
        %v3985 = vadd.f32 %v3983, %v3984
        %v3986 = vsel %vm1340, %v3874, 0.0
        %v3987 = vsel %vm1340, %v3876, 0.0
        %v3988 = vadd.f32 %v3986, %v3987
        %v3989 = vsel %vm1340, %v3878, 0.0
        %v3990 = vadd.f32 %v3988, %v3989
        %v3991 = vsel %vm1340, %v3880, 0.0
        %v3992 = vadd.f32 %v3990, %v3991
        %4009 = vrot.lane.b32.xlu0 %v3887, 126
        %v4010 = vpop.permute.xlu0 %4009
        %4011 = vrot.lane.b32.xlu0 %v3894, 126
        %v4012 = vpop.permute.xlu0 %4011
        %4013 = vrot.lane.b32.xlu0 %v3901, 126
        %v4014 = vpop.permute.xlu0 %4013
        %4015 = vrot.lane.b32.xlu0 %v3908, 126
        %v4016 = vpop.permute.xlu0 %4015
        %4017 = vrot.lane.b32.xlu0 %v3915, 126
        %v4018 = vpop.permute.xlu0 %4017
        %4019 = vrot.lane.b32.xlu0 %v3922, 126
        %v4020 = vpop.permute.xlu0 %4019
        %4021 = vrot.lane.b32.xlu0 %v3929, 126
        %v4022 = vpop.permute.xlu0 %4021
        %4023 = vrot.lane.b32.xlu0 %v3936, 126
        %v4024 = vpop.permute.xlu0 %4023
        %4025 = vrot.lane.b32.xlu0 %v3943, 126
        %v4026 = vpop.permute.xlu0 %4025
        %4027 = vrot.lane.b32.xlu0 %v3950, 126
        %v4028 = vpop.permute.xlu0 %4027
        %4029 = vrot.lane.b32.xlu0 %v3957, 126
        %v4030 = vpop.permute.xlu0 %4029
        %4031 = vrot.lane.b32.xlu0 %v3964, 126
        %v4032 = vpop.permute.xlu0 %4031
        %4033 = vrot.lane.b32.xlu0 %v3971, 126
        %v4034 = vpop.permute.xlu0 %4033
        %4035 = vrot.lane.b32.xlu0 %v3978, 126
        %v4036 = vpop.permute.xlu0 %4035
        %4037 = vrot.lane.b32.xlu0 %v3985, 126
        %v4038 = vpop.permute.xlu0 %4037
        %4039 = vrot.lane.b32.xlu0 %v3992, 126
        %v4040 = vpop.permute.xlu0 %4039
        %v4057 = vadd.f32 %v3615, %v4010
        %v4058 = vadd.f32 %v3616, %v4012
        %v4059 = vadd.f32 %v3617, %v4014
        %v4060 = vadd.f32 %v3618, %v4016
        %v4061 = vadd.f32 %v3619, %v4018
        %v4062 = vadd.f32 %v3620, %v4020
        %v4063 = vadd.f32 %v3621, %v4022
        %v4064 = vadd.f32 %v3622, %v4024
        %v4065 = vadd.f32 %v3623, %v4026
        %v4066 = vadd.f32 %v3624, %v4028
        %v4067 = vadd.f32 %v3625, %v4030
        %v4068 = vadd.f32 %v3626, %v4032
        %v4069 = vadd.f32 %v3627, %v4034
        %v4070 = vadd.f32 %v3628, %v4036
        %v4071 = vadd.f32 %v3629, %v4038
        %v4072 = vadd.f32 %v3630, %v4040
        %v4073 = vld [vmem:[%s2] sm:$0x1]
        %v4074 = vld [vmem:[%s2 + $0x1] sm:$0x1]
        %v4075 = vld [vmem:[%s2 + $0x2] sm:$0x1]
        %v4076 = vld [vmem:[%s2 + $0x3] sm:$0x1]
        %v4077 = vld [vmem:[%s2 + $0x4] sm:$0x1]
        %v4078 = vld [vmem:[%s2 + $0x5] sm:$0x1]
        %v4079 = vld [vmem:[%s2 + $0x6] sm:$0x1]
        %v4080 = vld [vmem:[%s2 + $0x7] sm:$0x1]
        %v4089 = vlaneseq
        %v4090 = vshrl.u32 %v4089, 7
        %v4091 = vsub.s32 0, %v4090
        %v4092 = vrot.slane %v4073, %v4091
        %v4093 = vlaneseq
        %v4094 = vshrl.u32 %v4093, 7
        %v4095 = vsub.s32 0, %v4094
        %v4096 = vrot.slane %v4074, %v4095
        %v4097 = vlaneseq
        %v4098 = vshrl.u32 %v4097, 7
        %v4099 = vsub.s32 0, %v4098
        %v4100 = vrot.slane %v4075, %v4099
        %v4101 = vlaneseq
        %v4102 = vshrl.u32 %v4101, 7
        %v4103 = vsub.s32 0, %v4102
        %v4104 = vrot.slane %v4076, %v4103
        %v4105 = vlaneseq
        %v4106 = vshrl.u32 %v4105, 7
        %v4107 = vsub.s32 0, %v4106
        %v4108 = vrot.slane %v4077, %v4107
        %v4109 = vlaneseq
        %v4110 = vshrl.u32 %v4109, 7
        %v4111 = vsub.s32 0, %v4110
        %v4112 = vrot.slane %v4078, %v4111
        %v4113 = vlaneseq
        %v4114 = vshrl.u32 %v4113, 7
        %v4115 = vsub.s32 0, %v4114
        %v4116 = vrot.slane %v4079, %v4115
        %v4117 = vlaneseq
        %v4118 = vshrl.u32 %v4117, 7
        %v4119 = vsub.s32 0, %v4118
        %v4120 = vrot.slane %v4080, %v4119
        %4121 = vset.pattern.permute.xlu0 0
        %4122 = vperm.xlu0 %4121, %v4092
        %v4123 = vpop.permute.xlu0 %4122
        %4125 = vset.pattern.permute.xlu0 0
        %4126 = vperm.xlu0 %4125, %v4096
        %v4127 = vpop.permute.xlu0 %4126
        %4129 = vset.pattern.permute.xlu0 0
        %4130 = vperm.xlu0 %4129, %v4100
        %v4131 = vpop.permute.xlu0 %4130
        %4133 = vset.pattern.permute.xlu0 0
        %4134 = vperm.xlu0 %4133, %v4104
        %v4135 = vpop.permute.xlu0 %4134
        %4137 = vset.pattern.permute.xlu0 0
        %4138 = vperm.xlu0 %4137, %v4108
        %v4139 = vpop.permute.xlu0 %4138
        %4141 = vset.pattern.permute.xlu0 0
        %4142 = vperm.xlu0 %4141, %v4112
        %v4143 = vpop.permute.xlu0 %4142
        %4145 = vset.pattern.permute.xlu0 0
        %4146 = vperm.xlu0 %4145, %v4116
        %v4147 = vpop.permute.xlu0 %4146
        %4149 = vset.pattern.permute.xlu0 0
        %4150 = vperm.xlu0 %4149, %v4120
        %v4151 = vpop.permute.xlu0 %4150
        %v4153 = vadd.f32 %v4057, %v4123
        %v4154 = vadd.f32 %v4058, %v4123
        %v4155 = vadd.f32 %v4059, %v4127
        %v4156 = vadd.f32 %v4060, %v4127
        %v4157 = vadd.f32 %v4061, %v4131
        %v4158 = vadd.f32 %v4062, %v4131
        %v4159 = vadd.f32 %v4063, %v4135
        %v4160 = vadd.f32 %v4064, %v4135
        %v4161 = vadd.f32 %v4065, %v4139
        %v4162 = vadd.f32 %v4066, %v4139
        %v4163 = vadd.f32 %v4067, %v4143
        %v4164 = vadd.f32 %v4068, %v4143
        %v4165 = vadd.f32 %v4069, %v4147
        %v4166 = vadd.f32 %v4070, %v4147
        %v4167 = vadd.f32 %v4071, %v4151
        %v4168 = vadd.f32 %v4072, %v4151
        %v4169 = vmax.f32 %v4153, 0.0
        %v4170 = vmax.f32 %v4154, 0.0
        %v4171 = vmax.f32 %v4155, 0.0
        %v4172 = vmax.f32 %v4156, 0.0
        %v4173 = vmax.f32 %v4157, 0.0
        %v4174 = vmax.f32 %v4158, 0.0
        %v4175 = vmax.f32 %v4159, 0.0
        %v4176 = vmax.f32 %v4160, 0.0
        %v4177 = vmax.f32 %v4161, 0.0
        %v4178 = vmax.f32 %v4162, 0.0
        %v4179 = vmax.f32 %v4163, 0.0
        %v4180 = vmax.f32 %v4164, 0.0
        %v4181 = vmax.f32 %v4165, 0.0
        %v4182 = vmax.f32 %v4166, 0.0
        %v4183 = vmax.f32 %v4167, 0.0
        %v4184 = vmax.f32 %v4168, 0.0
        %v4185 = vmin.f32 %v4169, 6.0
        %v4186 = vmin.f32 %v4170, 6.0
        %v4187 = vmin.f32 %v4171, 6.0
        %v4188 = vmin.f32 %v4172, 6.0
        %v4189 = vmin.f32 %v4173, 6.0
        %v4190 = vmin.f32 %v4174, 6.0
        %v4191 = vmin.f32 %v4175, 6.0
        %v4192 = vmin.f32 %v4176, 6.0
        %v4193 = vmin.f32 %v4177, 6.0
        %v4194 = vmin.f32 %v4178, 6.0
        %v4195 = vmin.f32 %v4179, 6.0
        %v4196 = vmin.f32 %v4180, 6.0
        %v4197 = vmin.f32 %v4181, 6.0
        %v4198 = vmin.f32 %v4182, 6.0
        %v4199 = vmin.f32 %v4183, 6.0
        %v4200 = vmin.f32 %v4184, 6.0
        %4201 = vst.msk [vmem:[%s245] sm:$0xff] %vm518, %v4185
        %4202 = vst.msk [vmem:[%s245 + $0x8] sm:$0xff] %vm518, %v4186
        %4203 = vst.msk [vmem:[%s245 + $0x10] sm:$0xff] %vm518, %v4187
        %4204 = vst.msk [vmem:[%s245 + $0x18] sm:$0xff] %vm518, %v4188
        %4205 = vst.msk [vmem:[%s245 + $0x20] sm:$0xff] %vm518, %v4189
        %4206 = vst.msk [vmem:[%s245 + $0x28] sm:$0xff] %vm518, %v4190
        %4207 = vst.msk [vmem:[%s245 + $0x30] sm:$0xff] %vm518, %v4191
        %4208 = vst.msk [vmem:[%s245 + $0x38] sm:$0xff] %vm518, %v4192
        %4209 = vst.msk [vmem:[%s245 + $0x40] sm:$0xff] %vm518, %v4193
        %4210 = vst.msk [vmem:[%s245 + $0x48] sm:$0xff] %vm518, %v4194
        %4211 = vst.msk [vmem:[%s245 + $0x50] sm:$0xff] %vm518, %v4195
        %4212 = vst.msk [vmem:[%s245 + $0x58] sm:$0xff] %vm518, %v4196
        %4213 = vst.msk [vmem:[%s245 + $0x60] sm:$0xff] %vm518, %v4197
        %4214 = vst.msk [vmem:[%s245 + $0x68] sm:$0xff] %vm518, %v4198
        %4215 = vst.msk [vmem:[%s245 + $0x70] sm:$0xff] %vm518, %v4199
        %4216 = vst.msk [vmem:[%s245 + $0x78] sm:$0xff] %vm518, %v4200
        %v4217 = vsel %vm518, %v4185, 0.0
        %4218 = vadd.xlane.f32.xlu0 %v4217
        %v4219 = vpop.xlane.xlu0 %4218
        %v4220 = vsel %vm518, %v4186, 0.0
        %4221 = vadd.xlane.f32.xlu0 %v4220
        %v4222 = vpop.xlane.xlu0 %4221
        %v4223 = vsel %vm518, %v4187, 0.0
        %4224 = vadd.xlane.f32.xlu0 %v4223
        %v4225 = vpop.xlane.xlu0 %4224
        %v4226 = vsel %vm518, %v4188, 0.0
        %4227 = vadd.xlane.f32.xlu0 %v4226
        %v4228 = vpop.xlane.xlu0 %4227
        %v4229 = vsel %vm518, %v4189, 0.0
        %4230 = vadd.xlane.f32.xlu0 %v4229
        %v4231 = vpop.xlane.xlu0 %4230
        %v4232 = vsel %vm518, %v4190, 0.0
        %4233 = vadd.xlane.f32.xlu0 %v4232
        %v4234 = vpop.xlane.xlu0 %4233
        %v4235 = vsel %vm518, %v4191, 0.0
        %4236 = vadd.xlane.f32.xlu0 %v4235
        %v4237 = vpop.xlane.xlu0 %4236
        %v4238 = vsel %vm518, %v4192, 0.0
        %4239 = vadd.xlane.f32.xlu0 %v4238
        %v4240 = vpop.xlane.xlu0 %4239
        %v4241 = vsel %vm518, %v4193, 0.0
        %4242 = vadd.xlane.f32.xlu0 %v4241
        %v4243 = vpop.xlane.xlu0 %4242
        %v4244 = vsel %vm518, %v4194, 0.0
        %4245 = vadd.xlane.f32.xlu0 %v4244
        %v4246 = vpop.xlane.xlu0 %4245
        %v4247 = vsel %vm518, %v4195, 0.0
        %4248 = vadd.xlane.f32.xlu0 %v4247
        %v4249 = vpop.xlane.xlu0 %4248
        %v4250 = vsel %vm518, %v4196, 0.0
        %4251 = vadd.xlane.f32.xlu0 %v4250
        %v4252 = vpop.xlane.xlu0 %4251
        %v4253 = vsel %vm518, %v4197, 0.0
        %4254 = vadd.xlane.f32.xlu0 %v4253
        %v4255 = vpop.xlane.xlu0 %4254
        %v4256 = vsel %vm518, %v4198, 0.0
        %4257 = vadd.xlane.f32.xlu0 %v4256
        %v4258 = vpop.xlane.xlu0 %4257
        %v4259 = vsel %vm518, %v4199, 0.0
        %4260 = vadd.xlane.f32.xlu0 %v4259
        %v4261 = vpop.xlane.xlu0 %4260
        %v4262 = vsel %vm518, %v4200, 0.0
        %4263 = vadd.xlane.f32.xlu0 %v4262
        %v4264 = vpop.xlane.xlu0 %4263
        %v4281 = vlaneseq
        %v4282 = vand.u32 %v4281, 127
        %v4283 = vlaneseq
        %v4284 = vshrl.u32 %v4283, 7
        %v4285 = vsub.s32 %v4282, %v4284
        %v4286 = vrot.slane %v4219, %v4285
        %v4287 = vadd.s32 %v4282, 4294967288
        %v4288 = vlaneseq
        %v4289 = vshrl.u32 %v4288, 7
        %v4290 = vsub.s32 %v4287, %v4289
        %v4291 = vrot.slane %v4222, %v4290
        %vm4292 = vcmask 130112
        %v4293 = vsel %vm4292, %v4291, %v4286
        %v4294 = vlaneseq
        %v4295 = vshrl.u32 %v4294, 7
        %v4296 = vsub.s32 %v4282, %v4295
        %v4297 = vrot.slane %v4225, %v4296
        %v4298 = vlaneseq
        %v4299 = vshrl.u32 %v4298, 7
        %v4300 = vsub.s32 %v4287, %v4299
        %v4301 = vrot.slane %v4228, %v4300
        %v4302 = vsel %vm4292, %v4301, %v4297
        %v4303 = vlaneseq
        %v4304 = vshrl.u32 %v4303, 7
        %v4305 = vsub.s32 %v4282, %v4304
        %v4306 = vrot.slane %v4231, %v4305
        %v4307 = vlaneseq
        %v4308 = vshrl.u32 %v4307, 7
        %v4309 = vsub.s32 %v4287, %v4308
        %v4310 = vrot.slane %v4234, %v4309
        %v4311 = vsel %vm4292, %v4310, %v4306
        %v4312 = vlaneseq
        %v4313 = vshrl.u32 %v4312, 7
        %v4314 = vsub.s32 %v4282, %v4313
        %v4315 = vrot.slane %v4237, %v4314
        %v4316 = vlaneseq
        %v4317 = vshrl.u32 %v4316, 7
        %v4318 = vsub.s32 %v4287, %v4317
        %v4319 = vrot.slane %v4240, %v4318
        %v4320 = vsel %vm4292, %v4319, %v4315
        %v4321 = vlaneseq
        %v4322 = vshrl.u32 %v4321, 7
        %v4323 = vsub.s32 %v4282, %v4322
        %v4324 = vrot.slane %v4243, %v4323
        %v4325 = vlaneseq
        %v4326 = vshrl.u32 %v4325, 7
        %v4327 = vsub.s32 %v4287, %v4326
        %v4328 = vrot.slane %v4246, %v4327
        %v4329 = vsel %vm4292, %v4328, %v4324
        %v4330 = vlaneseq
        %v4331 = vshrl.u32 %v4330, 7
        %v4332 = vsub.s32 %v4282, %v4331
        %v4333 = vrot.slane %v4249, %v4332
        %v4334 = vlaneseq
        %v4335 = vshrl.u32 %v4334, 7
        %v4336 = vsub.s32 %v4287, %v4335
        %v4337 = vrot.slane %v4252, %v4336
        %v4338 = vsel %vm4292, %v4337, %v4333
        %v4339 = vlaneseq
        %v4340 = vshrl.u32 %v4339, 7
        %v4341 = vsub.s32 %v4282, %v4340
        %v4342 = vrot.slane %v4255, %v4341
        %v4343 = vlaneseq
        %v4344 = vshrl.u32 %v4343, 7
        %v4345 = vsub.s32 %v4287, %v4344
        %v4346 = vrot.slane %v4258, %v4345
        %v4347 = vsel %vm4292, %v4346, %v4342
        %v4348 = vlaneseq
        %v4349 = vshrl.u32 %v4348, 7
        %v4350 = vsub.s32 %v4282, %v4349
        %v4351 = vrot.slane %v4261, %v4350
        %v4352 = vlaneseq
        %v4353 = vshrl.u32 %v4352, 7
        %v4354 = vsub.s32 %v4287, %v4353
        %v4355 = vrot.slane %v4264, %v4354
        %v4356 = vsel %vm4292, %v4355, %v4351
        %vm4357 = vcmask 1041409
        %v4358 = vsel %vm4357, %v4302, %v4293
        %vm4359 = vcmask 1042434
        %v4360 = vsel %vm4359, %v4311, %v4358
        %vm4361 = vcmask 1043459
        %v4362 = vsel %vm4361, %v4320, %v4360
        %vm4363 = vcmask 1044484
        %v4364 = vsel %vm4363, %v4329, %v4362
        %vm4365 = vcmask 1045509
        %v4366 = vsel %vm4365, %v4338, %v4364
        %vm4367 = vcmask 1046534
        %v4368 = vsel %vm4367, %v4347, %v4366
        %vm4369 = vcmask 1047559
        %v4370 = vsel %vm4369, %v4356, %v4368
        %v4372 = vsel %vm518, %v4370, 0.0
        %4373 = vadd.xlane.f32.xlu0 %v4372
        %v4374 = vpop.xlane.xlu0 %4373
        %v4375 = vld [vmem:[%s3] sm:$0xff]
        %v4376 = vlaneseq
        %v4377 = vshrl.u32 %v4376, 7
        %v4378 = vsub.s32 0, %v4377
        %v4379 = vrot.slane %v4375, %v4378
        %4381 = vbcast.lane.b32.xlu0 %v4379, 256
        %v4382 = vpop.permute.xlu0 %4381
        %v4383 = vlaneseq
        %v4384 = vshrl.u32 %v4383, 7
        %v4385 = vsub.s32 1, %v4384
        %v4386 = vrot.slane %v4375, %v4385
        %4388 = vbcast.lane.b32.xlu0 %v4386, 256
        %v4389 = vpop.permute.xlu0 %4388
        %v4390 = vlaneseq
        %v4391 = vshrl.u32 %v4390, 7
        %v4392 = vsub.s32 2, %v4391
        %v4393 = vrot.slane %v4375, %v4392
        %4395 = vbcast.lane.b32.xlu0 %v4393, 256
        %v4396 = vpop.permute.xlu0 %4395
        %v4397 = vlaneseq
        %v4398 = vshrl.u32 %v4397, 7
        %v4399 = vsub.s32 3, %v4398
        %v4400 = vrot.slane %v4375, %v4399
        %4402 = vbcast.lane.b32.xlu0 %v4400, 256
        %v4403 = vpop.permute.xlu0 %4402
        %v4404 = vlaneseq
        %v4405 = vshrl.u32 %v4404, 7
        %v4406 = vsub.s32 4, %v4405
        %v4407 = vrot.slane %v4375, %v4406
        %4409 = vbcast.lane.b32.xlu0 %v4407, 256
        %v4410 = vpop.permute.xlu0 %4409
        %v4411 = vlaneseq
        %v4412 = vshrl.u32 %v4411, 7
        %v4413 = vsub.s32 5, %v4412
        %v4414 = vrot.slane %v4375, %v4413
        %4416 = vbcast.lane.b32.xlu0 %v4414, 256
        %v4417 = vpop.permute.xlu0 %4416
        %v4418 = vlaneseq
        %v4419 = vshrl.u32 %v4418, 7
        %v4420 = vsub.s32 6, %v4419
        %v4421 = vrot.slane %v4375, %v4420
        %4423 = vbcast.lane.b32.xlu0 %v4421, 256
        %v4424 = vpop.permute.xlu0 %4423
        %v4425 = vlaneseq
        %v4426 = vshrl.u32 %v4425, 7
        %v4427 = vsub.s32 7, %v4426
        %v4428 = vrot.slane %v4375, %v4427
        %4430 = vbcast.lane.b32.xlu0 %v4428, 256
        %v4431 = vpop.permute.xlu0 %4430
        %v4432 = vmul.f32 %v4382, %v4374
        %v4433 = vmul.f32 %v4389, %v4374
        %v4434 = vmul.f32 %v4396, %v4374
        %v4435 = vmul.f32 %v4403, %v4374
        %v4436 = vmul.f32 %v4410, %v4374
        %v4437 = vmul.f32 %v4417, %v4374
        %v4438 = vmul.f32 %v4424, %v4374
        %v4439 = vmul.f32 %v4431, %v4374
        %v4440 = vrot.slane %v4432, 4
        %v4441 = vadd.f32 %v4432, %v4440
        %v4442 = vrot.slane %v4441, 2
        %v4443 = vadd.f32 %v4441, %v4442
        %v4444 = vrot.slane %v4443, 1
        %v4445 = vadd.f32 %v4443, %v4444
        %v4446 = vrot.slane %v4433, 4
        %v4447 = vadd.f32 %v4433, %v4446
        %v4448 = vrot.slane %v4447, 2
        %v4449 = vadd.f32 %v4447, %v4448
        %v4450 = vrot.slane %v4449, 1
        %v4451 = vadd.f32 %v4449, %v4450
        %v4452 = vrot.slane %v4434, 4
        %v4453 = vadd.f32 %v4434, %v4452
        %v4454 = vrot.slane %v4453, 2
        %v4455 = vadd.f32 %v4453, %v4454
        %v4456 = vrot.slane %v4455, 1
        %v4457 = vadd.f32 %v4455, %v4456
        %v4458 = vrot.slane %v4435, 4
        %v4459 = vadd.f32 %v4435, %v4458
        %v4460 = vrot.slane %v4459, 2
        %v4461 = vadd.f32 %v4459, %v4460
        %v4462 = vrot.slane %v4461, 1
        %v4463 = vadd.f32 %v4461, %v4462
        %v4464 = vrot.slane %v4436, 4
        %v4465 = vadd.f32 %v4436, %v4464
        %v4466 = vrot.slane %v4465, 2
        %v4467 = vadd.f32 %v4465, %v4466
        %v4468 = vrot.slane %v4467, 1
        %v4469 = vadd.f32 %v4467, %v4468
        %v4470 = vrot.slane %v4437, 4
        %v4471 = vadd.f32 %v4437, %v4470
        %v4472 = vrot.slane %v4471, 2
        %v4473 = vadd.f32 %v4471, %v4472
        %v4474 = vrot.slane %v4473, 1
        %v4475 = vadd.f32 %v4473, %v4474
        %v4476 = vrot.slane %v4438, 4
        %v4477 = vadd.f32 %v4438, %v4476
        %v4478 = vrot.slane %v4477, 2
        %v4479 = vadd.f32 %v4477, %v4478
        %v4480 = vrot.slane %v4479, 1
        %v4481 = vadd.f32 %v4479, %v4480
        %v4482 = vrot.slane %v4439, 4
        %v4483 = vadd.f32 %v4439, %v4482
        %v4484 = vrot.slane %v4483, 2
        %v4485 = vadd.f32 %v4483, %v4484
        %v4486 = vrot.slane %v4485, 1
        %v4487 = vadd.f32 %v4485, %v4486
        %v4488 = vld [vmem:[%s4] sm:$0xff]
        %v4490 = vrot.slane %v4488, 1
        %v4491 = vrot.slane %v4488, 2
        %v4492 = vrot.slane %v4488, 3
        %v4493 = vrot.slane %v4488, 4
        %v4494 = vrot.slane %v4488, 5
        %v4495 = vrot.slane %v4488, 6
        %v4496 = vrot.slane %v4488, 7
        %v4505 = vadd.f32 %v4445, %v4488
        %v4506 = vadd.f32 %v4451, %v4490
        %v4507 = vadd.f32 %v4457, %v4491
        %v4508 = vadd.f32 %v4463, %v4492
        %v4509 = vadd.f32 %v4469, %v4493
        %v4510 = vadd.f32 %v4475, %v4494
        %v4511 = vadd.f32 %v4481, %v4495
        %v4512 = vadd.f32 %v4487, %v4496
        %v4513 = vsub.f32 0.0, %v4505
        %v4514 = vsub.f32 0.0, %v4506
        %v4515 = vsub.f32 0.0, %v4507
        %v4516 = vsub.f32 0.0, %v4508
        %v4517 = vsub.f32 0.0, %v4509
        %v4518 = vsub.f32 0.0, %v4510
        %v4519 = vsub.f32 0.0, %v4511
        %v4520 = vsub.f32 0.0, %v4512
        %v4521 = vmul.f32 %v4513, 1.442695
        %v4522 = vpow.pop %v4521
        %v4523 = vmul.f32 %v4514, 1.442695
        %v4524 = vpow.pop %v4523
        %v4525 = vmul.f32 %v4515, 1.442695
        %v4526 = vpow.pop %v4525
        %v4527 = vmul.f32 %v4516, 1.442695
        %v4528 = vpow.pop %v4527
        %v4529 = vmul.f32 %v4517, 1.442695
        %v4530 = vpow.pop %v4529
        %v4531 = vmul.f32 %v4518, 1.442695
        %v4532 = vpow.pop %v4531
        %v4533 = vmul.f32 %v4519, 1.442695
        %v4534 = vpow.pop %v4533
        %v4535 = vmul.f32 %v4520, 1.442695
        %v4536 = vpow.pop %v4535
        %v4537 = vadd.f32 %v4522, 1.0
        %v4538 = vadd.f32 %v4524, 1.0
        %v4539 = vadd.f32 %v4526, 1.0
        %v4540 = vadd.f32 %v4528, 1.0
        %v4541 = vadd.f32 %v4530, 1.0
        %v4542 = vadd.f32 %v4532, 1.0
        %v4543 = vadd.f32 %v4534, 1.0
        %v4544 = vadd.f32 %v4536, 1.0
        %v4545 = vrcp.pop %v4537
        %v4546 = vmul.f32 1.0, %v4545
        %v4547 = vrcp.pop %v4538
        %v4548 = vmul.f32 1.0, %v4547
        %v4549 = vrcp.pop %v4539
        %v4550 = vmul.f32 1.0, %v4549
        %v4551 = vrcp.pop %v4540
        %v4552 = vmul.f32 1.0, %v4551
        %v4553 = vrcp.pop %v4541
        %v4554 = vmul.f32 1.0, %v4553
        %v4555 = vrcp.pop %v4542
        %v4556 = vmul.f32 1.0, %v4555
        %v4557 = vrcp.pop %v4543
        %v4558 = vmul.f32 1.0, %v4557
        %v4559 = vrcp.pop %v4544
        %v4560 = vmul.f32 1.0, %v4559
        %v4569 = vrot.slane %v4548, 7
        %v4570 = vsel %vm4357, %v4569, %v4546
        %v4571 = vrot.slane %v4550, 6
        %v4572 = vsel %vm4359, %v4571, %v4570
        %v4573 = vrot.slane %v4552, 5
        %v4574 = vsel %vm4361, %v4573, %v4572
        %v4575 = vrot.slane %v4554, 4
        %v4576 = vsel %vm4363, %v4575, %v4574
        %v4577 = vrot.slane %v4556, 3
        %v4578 = vsel %vm4365, %v4577, %v4576
        %v4579 = vrot.slane %v4558, 2
        %v4580 = vsel %vm4367, %v4579, %v4578
        %v4581 = vrot.slane %v4560, 1
        %v4582 = vsel %vm4369, %v4581, %v4580
        %vm4584 = vcmask 7168
        %4585 = vst.msk [vmem:[%s260] sm:$0xff] %vm4584, %v4582
        %s4586 = sand.u32 %s139, 1
        %s4587 = scalar_lea.sflag [#allocation3], %s4586
        %s4588 = sand.u32 %s139, 1
        %s4589 = smul.addr %s4588, 128
        %s4590 = scalar_lea.vmem [#allocation2], %s4589
        %p4591 = scmp.lt.s32.totalorder %s21, 1
        %s4592 = scalar_select %p4591, %s21, 1
        %s4593 = smul.addr %s4592, 8
        %s4594 = scalar_lea.vmem %s6, %s4593
        // Predicated region
        $region41: #{tpu_custom_call.1} parent=39 // pred_check
          %p4595 = pneg %p149
        $region42: #{tpu_custom_call.1} parent=39 // pred_check_branch
          %4597 = sbr.rel (%p4595) target = $region44
        $region43: #{tpu_custom_call.1} parent=39 // pred_region
          %s4599 = ssub.s32 2048, 2048
          %4600 = vsyncadd %s4587, %s4599
          %s4601 = smul.addr %s21, 16
          %s4602 = smul.addr %s4601, 128
          %s4603 = scalar_lea.hbm %s5, %s4602
          %s4604 = sshll.u32 %s4590, 4
          %s4605 = int_to_ptr.vmem [resolvable:$true] %s4604
          %4610 = dma.vmem_to_hbm [thread:$0]  %s4605, 2048, %s4603, %s4587, 128, 128, 8
        $region44: #{tpu_custom_call.1} parent=39 // pred_fallthru
          _
        // Predicated region
        $region45: #{tpu_custom_call.1} parent=39 // pred_check
          %p4611 = pneg %p175
        $region46: #{tpu_custom_call.1} parent=39 // pred_check_branch
          %4613 = sbr.rel (%p4611) target = $region48
        $region47: #{tpu_custom_call.1} parent=39 // pred_region
          _
        $region48: #{tpu_custom_call.1} parent=39 // pred_fallthru
          _
      $region40: #{tpu_custom_call.1} parent=5 // pred_fallthru
        _
      %p4614 = scmp.le.s32.totalorder 2, %s16
      // Predicated region
      $region49: #{tpu_custom_call.1} parent=5 // pred_check
        %p4615 = pneg %p4614
      $region50: #{tpu_custom_call.1} parent=5 // pred_check_branch
        %4617 = sbr.rel (%p4615) target = $region52
      $region51: #{tpu_custom_call.1} parent=5 // pred_region
        %s4618 = ssub.s32 %s16, 2
        // Predicated region
        $region53: #{tpu_custom_call.1} parent=51 // pred_check
          %p4619 = pneg %p155
        $region54: #{tpu_custom_call.1} parent=51 // pred_check_branch
          %4621 = sbr.rel (%p4619) target = $region56
        $region55: #{tpu_custom_call.1} parent=51 // pred_region
          %s4622 = sand.u32 %s140, 1
          %s4623 = scalar_lea.sflag [#allocation3], %s4622
          %s4624 = sand.u32 %s140, 1
          %s4625 = smul.addr %s4624, 128
          %s4626 = scalar_lea.vmem [#allocation2], %s4625
          %4627 = dma.done %s4623, 2048
        $region56: #{tpu_custom_call.1} parent=51 // pred_fallthru
          _
        // Predicated region
        $region57: #{tpu_custom_call.1} parent=51 // pred_check
          %p4628 = pneg %p181
        $region58: #{tpu_custom_call.1} parent=51 // pred_check_branch
          %4630 = sbr.rel (%p4628) target = $region60
        $region59: #{tpu_custom_call.1} parent=51 // pred_region
          %p4631 = scmp.lt.s32.totalorder %s22, 1
          %s4632 = scalar_select %p4631, %s22, 1
          %s4633 = smul.addr %s4632, 8
          %s4634 = scalar_lea.vmem %s6, %s4633
        $region60: #{tpu_custom_call.1} parent=51 // pred_fallthru
          _
      $region52: #{tpu_custom_call.1} parent=5 // pred_fallthru
        _
    $region6: #{tpu_custom_call.1} parent=1 // loop_footer
      %s20 = sadd.s32 1, %s16
    $region7: #{tpu_custom_call.1} parent=1 // loop_footer_branch
      %15 = sbr.rel target = $region3
    $region8: #{tpu_custom_call.1} parent=1 // loop_exit
      _
    %4635 = vsyncpa [#allocation3], 1
    %s4636 = scalar_lea.sflag [#allocation3], 1
    %4637 = vsyncpa %s4636, 1

</llo_original>
